<compile_context>
chip_gen: v7x
topology: tpu7x:2x2x1
jax: 0.10.0
libtpu: 0.0.40
codegen_flags: <defaults>
</compile_context>

<pallas_src>
import jax
import jax.numpy as jnp
from jax import lax
from jax.experimental import pallas as pl
from jax.experimental.pallas import tpu as pltpu

N_FEATURES = 28 * 28   # mnist
N_CLS = 10
N_INEQ = 200
NZ2 = N_CLS * N_CLS
EPS = 1e-4             # module eps
IPM_ITERS = 20         # qpth default maxIter
CG_ITERS = 8           # Jacobi-preconditioned CG on the 10x10 Newton system
TINY = 1e-8
BIG = 1e30
D_CLIP = 1e7


def optnet_kernel(x_ref, w1t_ref, b1_ref, w2t_ref, b2_ref,
                  qgt_ref, qflat_ref, dq_ref, g_ref, gt_ref, ggd_ref,
                  sel_ref, h_ref, out_ref):
    f32 = jnp.float32
    x = x_ref[...]                                              # (TB, 784)
    TB = x.shape[0]
    m = N_INEQ

    # ---------------- MLP hot path: fc1 -> relu -> fc2 -> relu (MXU) ----------------
    h1 = jnp.maximum(
        jnp.dot(x, w1t_ref[...], preferred_element_type=f32) + b1_ref[...], 0.0)
    p = jnp.maximum(
        jnp.dot(h1, w2t_ref[...], preferred_element_type=f32) + b2_ref[...], 0.0)  # (TB, nCls)

    # ------------- batch-independent QP data (precomputed in the wrapper) -------------
    QGt = qgt_ref[...]       # (10, 210)  = [G^T | Q]
    Qfl = qflat_ref[...]     # (1, 100)   row-major Q (i-major: col = i*10 + j)
    dQ = dq_ref[...]         # (1, 10)    diag(Q)
    G = g_ref[...]           # (200, 10)
    Gt = gt_ref[...]         # (10, 200)
    GGd = ggd_ref[...]       # (200, 110) = [G_ki*G_kj (i-major, 100 cols) | G_ki^2 (10 cols)]
    Ssel = sel_ref[...]      # (100, 10)  0/1 matrix summing contiguous lane-groups of 10
    h = h_ref[...]           # (1, 200)

    # ------------- batched Mehrotra predictor-corrector interior-point solve -------------
    z = jnp.zeros((TB, N_CLS), f32)
    s = jnp.ones((TB, m), f32)
    lam = jnp.ones((TB, m), f32)

    def step_len(s_, ds_, lam_, dlam_, frac):
        inv_ds = pl.reciprocal(jnp.where(ds_ < 0, ds_, -1.0), approx=True)
        inv_dl = pl.reciprocal(jnp.where(dlam_ < 0, dlam_, -1.0), approx=True)
        rs_ = jnp.where(ds_ < 0, -s_ * inv_ds, BIG)
        rl_ = jnp.where(dlam_ < 0, -lam_ * inv_dl, BIG)
        a = jnp.minimum(jnp.min(rs_, axis=1, keepdims=True),
                        jnp.min(rl_, axis=1, keepdims=True))
        return jnp.minimum(1.0, frac * a)                       # (TB, 1)

    def pcg_solve(a_flat, minv, rhs):
        """Jacobi-preconditioned CG on batched 10x10 SPD systems.

        a_flat: (TB, 100) row-major A = Q + G' diag(D) G, minv: (TB, 10), rhs: (TB, 10).
        The matvec is one elementwise multiply plus one tiny K=100 matmul (no K=200 work).
        """
        def matvec(v):
            vrep = jnp.concatenate([v] * N_CLS, axis=1)         # (TB, 100), lane-tiled copies
            return jnp.dot(a_flat * vrep, Ssel, preferred_element_type=f32)

        x0 = jnp.zeros_like(rhs)
        r0 = rhs
        z0 = minv * r0
        rz0 = jnp.sum(r0 * z0, axis=1, keepdims=True)

        def body(_, carry):
            xk, r, pdir, rzd = carry
            Ap = matvec(pdir)
            denom = jnp.sum(pdir * Ap, axis=1, keepdims=True)
            alpha = jnp.where(denom > TINY, rzd / jnp.maximum(denom, TINY), 0.0)
            xk = xk + alpha * pdir
            r = r - alpha * Ap
            zk = minv * r
            rz_new = jnp.sum(r * zk, axis=1, keepdims=True)
            beta = rz_new / jnp.maximum(rzd, TINY)
            pdir = zk + beta * pdir
            return xk, r, pdir, rz_new

        xk, _, _, _ = lax.fori_loop(0, CG_ITERS, body, (x0, r0, z0, rz0),
                                    unroll=True)
        return xk

    def ipm_body(_, carry):
        z, s, lam = carry
        s_safe = jnp.maximum(s, TINY)
        inv_s = pl.reciprocal(s_safe, approx=True)
        D = jnp.minimum(lam / s_safe, D_CLIP)                   # keep this divide exact

        # fused residual matmul: z @ [G^T | Q] in one MXU issue
        zQGt = jnp.dot(z, QGt, preferred_element_type=f32)      # (TB, 210)
        zGt = zQGt[:, :m]
        zQ = zQGt[:, m:]
        rz = zQ + p + jnp.dot(lam, G, preferred_element_type=f32)   # stationarity residual
        ri = zGt + s - h                                             # primal residual
        slam = s * lam
        mu = jnp.mean(slam, axis=1, keepdims=True)

        # Assemble A = Q + G' diag(D) G once per IPM iteration with a single
        # (TB,200)x(200,110) matmul; columns 100..109 give diag(G'DG) for Jacobi.
        AD = jnp.dot(D, GGd, preferred_element_type=f32)        # (TB, 110)
        a_flat = Qfl + AD[:, :NZ2]                              # (TB, 100)
        diag_a = dQ + AD[:, NZ2:]                               # (TB, 10)
        minv = pl.reciprocal(diag_a, approx=True)               # Jacobi preconditioner

        def newton(rhs3):
            w = (rhs3 + lam * ri) * inv_s
            rhs_dz = -rz - jnp.dot(w, G, preferred_element_type=f32)
            dz = pcg_solve(a_flat, minv, rhs_dz)
            gdz = jnp.dot(dz, Gt, preferred_element_type=f32)
            ds = -ri - gdz
            dlam = w + D * gdz
            return dz, ds, dlam

        # predictor (affine) step
        dz_a, ds_a, dl_a = newton(-slam)
        a_aff = step_len(s, ds_a, lam, dl_a, 1.0)
        mu_aff = jnp.mean((s + a_aff * ds_a) * (lam + a_aff * dl_a),
                          axis=1, keepdims=True)
        ratio = mu_aff * pl.reciprocal(jnp.maximum(mu, TINY), approx=True)
        sigma = jnp.clip(ratio * ratio * ratio, 0.0, 1.0)

        # centering + corrector step (reuses the same assembled A / preconditioner)
        dz, ds, dlam = newton(-slam - ds_a * dl_a + sigma * mu)
        a = step_len(s, ds, lam, dlam, 0.99)
        return z + a * dz, s + a * ds, lam + a * dlam

    z, s, lam = lax.fori_loop(0, IPM_ITERS, ipm_body, (z, s, lam))

    # ---------------- log_softmax over classes (dim=1) ----------------
    zmax = jnp.max(z, axis=1, keepdims=True)
    lse = zmax + jnp.log(jnp.sum(jnp.exp(z - zmax), axis=1, keepdims=True))
    out_ref[...] = (z - lse).astype(out_ref.dtype)


def optnet_forward(x_img, params, *, batch_tile=128):
    """x_img: (B, 1, 28, 28) NCHW float32 -> (B, 10) log-probabilities."""
    B = x_img.shape[0]
    x = x_img.reshape(B, -1).astype(jnp.float32)                # x.view(nBatch, -1)

    w1t = params["w1"].T.astype(jnp.float32)                    # (784, nHidden)
    b1 = params["b1"].reshape(1, -1).astype(jnp.float32)
    w2t = params["w2"].T.astype(jnp.float32)                    # (nHidden, nCls)
    b2 = params["b2"].reshape(1, -1).astype(jnp.float32)
    nH = w1t.shape[1]

    # ---- batch-independent QP data, hoisted out of the kernel ----
    M = jnp.tril(jnp.ones((N_CLS, N_CLS), jnp.float32))
    Lm = M * params["L"].astype(jnp.float32)                    # L = M * self.L
    Q = Lm @ Lm.T + EPS * jnp.eye(N_CLS, dtype=jnp.float32)
    G = params["G"].astype(jnp.float32)                         # (200, 10)
    Gt = G.T                                                    # (10, 200)
    h = (params["z0"].reshape(1, -1).astype(jnp.float32) @ Gt
         + params["s0"].reshape(1, -1).astype(jnp.float32))     # (1, 200)
    qgt = jnp.concatenate([Gt, Q], axis=1)                      # (10, 210) = [G^T | Q]
    qflat = Q.reshape(1, NZ2)                                   # (1, 100), i-major
    diagq = jnp.diag(Q).reshape(1, N_CLS)                       # (1, 10)
    gg = (G[:, :, None] * G[:, None, :]).reshape(N_INEQ, NZ2)   # (200, 100), i-major
    ggd = jnp.concatenate([gg, G * G], axis=1)                  # (200, 110)
    sel = jnp.repeat(jnp.eye(N_CLS, dtype=jnp.float32), N_CLS, axis=0)   # (100, 10)

    # ---- batch tiling: pad batch to a multiple of the tile (sublane multiple of 8) ----
    B8 = max(8, ((B + 7) // 8) * 8)
    TB = min(batch_tile, B8)
    Bp = ((B8 + TB - 1) // TB) * TB
    if Bp != B:
        x = jnp.pad(x, ((0, Bp - B), (0, 0)))

    const_args = (w1t, b1, w2t, b2, qgt, qflat, diagq, G, Gt, ggd, sel, h)
    in_specs = [pl.BlockSpec((TB, N_FEATURES), lambda i: (i, 0))]
    in_specs += [pl.BlockSpec(a.shape, lambda i: (0, 0)) for a in const_args]

    # advisory cost estimate (compute-dense kernel; keep XLA's scheduler honest)
    per_row_mlp = 2 * N_FEATURES * nH + 2 * nH * N_CLS
    per_row_ipm = (2 * N_CLS * (N_INEQ + N_CLS)                 # z @ [Gt|Q]
                   + 2 * N_INEQ * N_CLS                         # lam @ G
                   + 2 * N_INEQ * (NZ2 + N_CLS)                 # D @ GGd (A assembly)
                   + 2 * (4 * N_INEQ * N_CLS                    # w@G + dz@Gt (x2 newtons)
                          + CG_ITERS * (2 * NZ2 * N_CLS + 4 * NZ2))
                   + 16 * N_INEQ)                               # elementwise
    flops = Bp * (per_row_mlp + IPM_ITERS * per_row_ipm)
    transcendentals = Bp * (IPM_ITERS * (3 * N_INEQ + 2 * N_CLS + 2) + N_CLS)
    bytes_accessed = 4 * (x.size + sum(a.size for a in const_args) + Bp * N_CLS)
    cost = pl.CostEstimate(flops=int(flops),
                           transcendentals=int(transcendentals),
                           bytes_accessed=int(bytes_accessed))

    out = pl.pallas_call(
        optnet_kernel,
        out_shape=jax.ShapeDtypeStruct((Bp, N_CLS), jnp.float32),
        grid_spec=pltpu.PrefetchScalarGridSpec(
            num_scalar_prefetch=0,
            grid=(Bp // TB,),
            in_specs=in_specs,
            out_specs=pl.BlockSpec((TB, N_CLS), lambda i: (i, 0)),
        ),
        compiler_params=pltpu.CompilerParams(
            dimension_semantics=("parallel",),
            vmem_limit_bytes=32 * 1024 * 1024,
        ),
        cost_estimate=cost,
    )(x, *const_args)
    return out[:B]


def init_params(key, n_hidden):
    ks = jax.random.split(key, 6)
    bound1 = 1.0 / (N_FEATURES ** 0.5)
    w1 = jax.random.uniform(ks[0], (n_hidden, N_FEATURES), jnp.float32, -bound1, bound1)
    b1 = jax.random.uniform(ks[1], (n_hidden,), jnp.float32, -bound1, bound1)
    bound2 = 1.0 / (n_hidden ** 0.5)
    w2 = jax.random.uniform(ks[2], (N_CLS, n_hidden), jnp.float32, -bound2, bound2)
    b2 = jax.random.uniform(ks[3], (N_CLS,), jnp.float32, -bound2, bound2)
    L = jnp.tril(jax.random.uniform(ks[4], (N_CLS, N_CLS), jnp.float32, 0.0, 1.0))
    G = jax.random.uniform(ks[5], (N_INEQ, N_CLS), jnp.float32, -1.0, 1.0)
    z0 = jnp.zeros((N_CLS,), jnp.float32)                       # self.z0
    s0 = jnp.ones((N_INEQ,), jnp.float32)                       # self.s0
    return dict(w1=w1, b1=b1, w2=w2, b2=b2, L=L, G=G, z0=z0, s0=s0)


if __name__ == "__main__":
    key = jax.random.PRNGKey(0)
    k_x, k_p = jax.random.split(key)
    n_hidden = 32
    params = init_params(k_p, n_hidden)
    x = jax.random.normal(k_x, (2, 1, 28, 28), jnp.float32)     # small NCHW mnist-like batch

    fwd = jax.jit(optnet_forward)
    out = jax.block_until_ready(fwd(x, params))

    assert out.shape == (2, N_CLS), out.shape
    assert bool(jnp.all(jnp.isfinite(out)))
    # rows of log_softmax must (approximately) sum to 1 in prob space
    assert bool(jnp.all(jnp.abs(jnp.sum(jnp.exp(out), axis=1) - 1.0) < 1e-3))
    print("KERNEL_OK")
</pallas_src>

<mosaic_0001>
module attributes {stable_mosaic.version = 11 : i64} {
  func.func @optnet_kernel(%arg0: i32, %arg1: memref<8x784xf32, #tpu.memory_space<vmem>>, %arg2: memref<784x32xf32, #tpu.memory_space<vmem>>, %arg3: memref<1x32xf32, #tpu.memory_space<vmem>>, %arg4: memref<32x10xf32, #tpu.memory_space<vmem>>, %arg5: memref<1x10xf32, #tpu.memory_space<vmem>>, %arg6: memref<10x210xf32, #tpu.memory_space<vmem>>, %arg7: memref<1x100xf32, #tpu.memory_space<vmem>>, %arg8: memref<1x10xf32, #tpu.memory_space<vmem>>, %arg9: memref<200x10xf32, #tpu.memory_space<vmem>>, %arg10: memref<10x200xf32, #tpu.memory_space<vmem>>, %arg11: memref<200x110xf32, #tpu.memory_space<vmem>>, %arg12: memref<100x10xf32, #tpu.memory_space<vmem>>, %arg13: memref<1x200xf32, #tpu.memory_space<vmem>>, %arg14: memref<8x10xf32, #tpu.memory_space<vmem>>) attributes {dimension_semantics = [#tpu.dimension_semantics<parallel>], iteration_bounds = array<i64: 1>, scalar_prefetch = 0 : i64, scratch_operands = 0 : i64, tpu.core_type = #tpu.core_type<tc>, window_params = [{transform_indices = @transform_0, window_bounds = array<i64: 8, 784>}, {pipeline_mode = #tpu.pipeline_mode<synchronous>, transform_indices = @transform_1, window_bounds = array<i64: 784, 32>}, {pipeline_mode = #tpu.pipeline_mode<synchronous>, transform_indices = @transform_2, window_bounds = array<i64: 1, 32>}, {pipeline_mode = #tpu.pipeline_mode<synchronous>, transform_indices = @transform_3, window_bounds = array<i64: 32, 10>}, {pipeline_mode = #tpu.pipeline_mode<synchronous>, transform_indices = @transform_4, window_bounds = array<i64: 1, 10>}, {pipeline_mode = #tpu.pipeline_mode<synchronous>, transform_indices = @transform_5, window_bounds = array<i64: 10, 210>}, {pipeline_mode = #tpu.pipeline_mode<synchronous>, transform_indices = @transform_6, window_bounds = array<i64: 1, 100>}, {pipeline_mode = #tpu.pipeline_mode<synchronous>, transform_indices = @transform_7, window_bounds = array<i64: 1, 10>}, {pipeline_mode = #tpu.pipeline_mode<synchronous>, transform_indices = @transform_8, window_bounds = array<i64: 200, 10>}, {pipeline_mode = #tpu.pipeline_mode<synchronous>, transform_indices = @transform_9, window_bounds = array<i64: 10, 200>}, {pipeline_mode = #tpu.pipeline_mode<synchronous>, transform_indices = @transform_10, window_bounds = array<i64: 200, 110>}, {pipeline_mode = #tpu.pipeline_mode<synchronous>, transform_indices = @transform_11, window_bounds = array<i64: 100, 10>}, {pipeline_mode = #tpu.pipeline_mode<synchronous>, transform_indices = @transform_12, window_bounds = array<i64: 1, 200>}, {transform_indices = @transform_13, window_bounds = array<i64: 8, 10>}]} {
    %c0 = arith.constant 0 : index
    %c0_0 = arith.constant 0 : index
    %0 = vector.load %arg1[%c0, %c0_0] : memref<8x784xf32, #tpu.memory_space<vmem>>, vector<8x784xf32>
    %c0_1 = arith.constant 0 : index
    %c0_2 = arith.constant 0 : index
    %1 = vector.load %arg2[%c0_1, %c0_2] : memref<784x32xf32, #tpu.memory_space<vmem>>, vector<784x32xf32>
    %cst = arith.constant dense<0.000000e+00> : vector<8x32xf32>
    %2 = tpu.matmul %0, %1, %cst {dimension_numbers = #tpu.dot_dimension_numbers<[1], [0], [0], [1], [0, 0, 1, 1], [], []>} : vector<8x784xf32>, vector<784x32xf32>, vector<8x32xf32> -> vector<8x32xf32>
    %c0_3 = arith.constant 0 : index
    %c0_4 = arith.constant 0 : index
    %3 = vector.load %arg3[%c0_3, %c0_4] : memref<1x32xf32, #tpu.memory_space<vmem>>, vector<1x32xf32>
    %4 = vector.broadcast %3 : vector<1x32xf32> to vector<8x32xf32>
    %5 = arith.addf %2, %4 : vector<8x32xf32>
    %cst_5 = arith.constant 0.000000e+00 : f32
    %6 = vector.broadcast %cst_5 : f32 to vector<8x32xf32>
    %7 = arith.maximumf %5, %6 : vector<8x32xf32>
    %c0_6 = arith.constant 0 : index
    %c0_7 = arith.constant 0 : index
    %8 = vector.load %arg4[%c0_6, %c0_7] : memref<32x10xf32, #tpu.memory_space<vmem>>, vector<32x10xf32>
    %cst_8 = arith.constant dense<0.000000e+00> : vector<8x10xf32>
    %9 = tpu.matmul %7, %8, %cst_8 {dimension_numbers = #tpu.dot_dimension_numbers<[1], [0], [0], [1], [0, 0, 1, 1], [], []>} : vector<8x32xf32>, vector<32x10xf32>, vector<8x10xf32> -> vector<8x10xf32>
    %c0_9 = arith.constant 0 : index
    %c0_10 = arith.constant 0 : index
    %10 = vector.load %arg5[%c0_9, %c0_10] : memref<1x10xf32, #tpu.memory_space<vmem>>, vector<1x10xf32>
    %11 = vector.broadcast %10 : vector<1x10xf32> to vector<8x10xf32>
    %12 = arith.addf %9, %11 : vector<8x10xf32>
    %cst_11 = arith.constant 0.000000e+00 : f32
    %13 = vector.broadcast %cst_11 : f32 to vector<8x10xf32>
    %14 = arith.maximumf %12, %13 : vector<8x10xf32>
    %c0_12 = arith.constant 0 : index
    %c0_13 = arith.constant 0 : index
    %15 = vector.load %arg6[%c0_12, %c0_13] : memref<10x210xf32, #tpu.memory_space<vmem>>, vector<10x210xf32>
    %c0_14 = arith.constant 0 : index
    %c0_15 = arith.constant 0 : index
    %16 = vector.load %arg7[%c0_14, %c0_15] : memref<1x100xf32, #tpu.memory_space<vmem>>, vector<1x100xf32>
    %c0_16 = arith.constant 0 : index
    %c0_17 = arith.constant 0 : index
    %17 = vector.load %arg8[%c0_16, %c0_17] : memref<1x10xf32, #tpu.memory_space<vmem>>, vector<1x10xf32>
    %c0_18 = arith.constant 0 : index
    %c0_19 = arith.constant 0 : index
    %18 = vector.load %arg9[%c0_18, %c0_19] : memref<200x10xf32, #tpu.memory_space<vmem>>, vector<200x10xf32>
    %c0_20 = arith.constant 0 : index
    %c0_21 = arith.constant 0 : index
    %19 = vector.load %arg10[%c0_20, %c0_21] : memref<10x200xf32, #tpu.memory_space<vmem>>, vector<10x200xf32>
    %c0_22 = arith.constant 0 : index
    %c0_23 = arith.constant 0 : index
    %20 = vector.load %arg11[%c0_22, %c0_23] : memref<200x110xf32, #tpu.memory_space<vmem>>, vector<200x110xf32>
    %c0_24 = arith.constant 0 : index
    %c0_25 = arith.constant 0 : index
    %21 = vector.load %arg12[%c0_24, %c0_25] : memref<100x10xf32, #tpu.memory_space<vmem>>, vector<100x10xf32>
    %c0_26 = arith.constant 0 : index
    %c0_27 = arith.constant 0 : index
    %22 = vector.load %arg13[%c0_26, %c0_27] : memref<1x200xf32, #tpu.memory_space<vmem>>, vector<1x200xf32>
    %cst_28 = arith.constant 0.000000e+00 : f32
    %23 = vector.broadcast %cst_28 : f32 to vector<8x10xf32>
    %cst_29 = arith.constant 1.000000e+00 : f32
    %24 = vector.broadcast %cst_29 : f32 to vector<8x200xf32>
    %cst_30 = arith.constant 1.000000e+00 : f32
    %25 = vector.broadcast %cst_30 : f32 to vector<8x200xf32>
    %c0_i32 = arith.constant 0 : i32
    %c20_i32 = arith.constant 20 : i32
    %26 = arith.addi %c0_i32, %c20_i32 : i32
    %c1_i32 = arith.constant 1 : i32
    %27:3 = scf.for %arg15 = %c0_i32 to %26 step %c1_i32 iter_args(%arg16 = %23, %arg17 = %24, %arg18 = %25) -> (vector<8x10xf32>, vector<8x200xf32>, vector<8x200xf32>)  : i32 {
      %cst_35 = arith.constant 9.99999993E-9 : f32
      %40 = vector.broadcast %cst_35 : f32 to vector<8x200xf32>
      %41 = arith.maximumf %arg17, %40 : vector<8x200xf32>
      %42 = tpu.reciprocal %41 {approx = true} : vector<8x200xf32> -> vector<8x200xf32>
      %43 = arith.divf %arg18, %41 : vector<8x200xf32>
      %cst_36 = arith.constant 1.000000e+07 : f32
      %44 = vector.broadcast %cst_36 : f32 to vector<8x200xf32>
      %45 = arith.minimumf %43, %44 : vector<8x200xf32>
      %cst_37 = arith.constant dense<0.000000e+00> : vector<8x210xf32>
      %46 = tpu.matmul %arg16, %15, %cst_37 {dimension_numbers = #tpu.dot_dimension_numbers<[1], [0], [0], [1], [0, 0, 1, 1], [], []>} : vector<8x10xf32>, vector<10x210xf32>, vector<8x210xf32> -> vector<8x210xf32>
      %47 = vector.extract_strided_slice %46 {offsets = [0, 0], sizes = [8, 200], strides = [1, 1]} : vector<8x210xf32> to vector<8x200xf32>
      %48 = vector.extract_strided_slice %46 {offsets = [0, 200], sizes = [8, 10], strides = [1, 1]} : vector<8x210xf32> to vector<8x10xf32>
      %49 = arith.addf %48, %14 : vector<8x10xf32>
      %cst_38 = arith.constant dense<0.000000e+00> : vector<8x10xf32>
      %50 = tpu.matmul %arg18, %18, %cst_38 {dimension_numbers = #tpu.dot_dimension_numbers<[1], [0], [0], [1], [0, 0, 1, 1], [], []>} : vector<8x200xf32>, vector<200x10xf32>, vector<8x10xf32> -> vector<8x10xf32>
      %51 = arith.addf %49, %50 : vector<8x10xf32>
      %52 = arith.addf %47, %arg17 : vector<8x200xf32>
      %53 = vector.broadcast %22 : vector<1x200xf32> to vector<8x200xf32>
      %54 = arith.subf %52, %53 : vector<8x200xf32>
      %55 = arith.mulf %arg17, %arg18 : vector<8x200xf32>
      %cst_39 = arith.constant dense<0.000000e+00> : vector<8xf32>
      %56 = vector.multi_reduction <add>, %55, %cst_39 [1] : vector<8x200xf32> to vector<8xf32>
      %57 = vector.shape_cast %56 : vector<8xf32> to vector<8x1xf32>
      %cst_40 = arith.constant 2.000000e+02 : f32
      %58 = vector.broadcast %cst_40 : f32 to vector<8x1xf32>
      %59 = arith.divf %57, %58 : vector<8x1xf32>
      %cst_41 = arith.constant dense<0.000000e+00> : vector<8x110xf32>
      %60 = tpu.matmul %45, %20, %cst_41 {dimension_numbers = #tpu.dot_dimension_numbers<[1], [0], [0], [1], [0, 0, 1, 1], [], []>} : vector<8x200xf32>, vector<200x110xf32>, vector<8x110xf32> -> vector<8x110xf32>
      %61 = vector.extract_strided_slice %60 {offsets = [0, 0], sizes = [8, 100], strides = [1, 1]} : vector<8x110xf32> to vector<8x100xf32>
      %62 = vector.broadcast %16 : vector<1x100xf32> to vector<8x100xf32>
      %63 = arith.addf %62, %61 : vector<8x100xf32>
      %64 = vector.extract_strided_slice %60 {offsets = [0, 100], sizes = [8, 10], strides = [1, 1]} : vector<8x110xf32> to vector<8x10xf32>
      %65 = vector.broadcast %17 : vector<1x10xf32> to vector<8x10xf32>
      %66 = arith.addf %65, %64 : vector<8x10xf32>
      %67 = tpu.reciprocal %66 {approx = true} : vector<8x10xf32> -> vector<8x10xf32>
      %cst_42 = arith.constant 0.000000e+00 : f32
      %68 = vector.broadcast %cst_42 : f32 to vector<8x200xf32>
      %69 = arith.subf %68, %55 : vector<8x200xf32>
      %70 = arith.mulf %arg18, %54 : vector<8x200xf32>
      %71 = arith.addf %69, %70 : vector<8x200xf32>
      %72 = arith.mulf %71, %42 : vector<8x200xf32>
      %cst_43 = arith.constant 0.000000e+00 : f32
      %73 = vector.broadcast %cst_43 : f32 to vector<8x10xf32>
      %74 = arith.subf %73, %51 : vector<8x10xf32>
      %cst_44 = arith.constant dense<0.000000e+00> : vector<8x10xf32>
      %75 = tpu.matmul %72, %18, %cst_44 {dimension_numbers = #tpu.dot_dimension_numbers<[1], [0], [0], [1], [0, 0, 1, 1], [], []>} : vector<8x200xf32>, vector<200x10xf32>, vector<8x10xf32> -> vector<8x10xf32>
      %76 = arith.subf %74, %75 : vector<8x10xf32>
      %cst_45 = arith.constant 0.000000e+00 : f32
      %77 = vector.broadcast %cst_45 : f32 to vector<8x10xf32>
      %78 = arith.mulf %67, %76 : vector<8x10xf32>
      %79 = arith.mulf %76, %78 : vector<8x10xf32>
      %cst_46 = arith.constant dense<0.000000e+00> : vector<8xf32>
      %80 = vector.multi_reduction <add>, %79, %cst_46 [1] : vector<8x10xf32> to vector<8xf32>
      %81 = vector.shape_cast %80 : vector<8xf32> to vector<8x1xf32>
      %c0_i32_47 = arith.constant 0 : i32
      %82 = tpu.concatenate %78, %78, %78, %78, %78, %78, %78, %78, %78, %78 in 1 : vector<8x10xf32>, vector<8x10xf32>, vector<8x10xf32>, vector<8x10xf32>, vector<8x10xf32>, vector<8x10xf32>, vector<8x10xf32>, vector<8x10xf32>, vector<8x10xf32>, vector<8x10xf32> -> vector<8x100xf32>
      %83 = arith.mulf %63, %82 : vector<8x100xf32>
      %cst_48 = arith.constant dense<0.000000e+00> : vector<8x10xf32>
      %84 = tpu.matmul %83, %21, %cst_48 {dimension_numbers = #tpu.dot_dimension_numbers<[1], [0], [0], [1], [0, 0, 1, 1], [], []>} : vector<8x100xf32>, vector<100x10xf32>, vector<8x10xf32> -> vector<8x10xf32>
      %85 = arith.mulf %78, %84 : vector<8x10xf32>
      %cst_49 = arith.constant dense<0.000000e+00> : vector<8xf32>
      %86 = vector.multi_reduction <add>, %85, %cst_49 [1] : vector<8x10xf32> to vector<8xf32>
      %87 = vector.shape_cast %86 : vector<8xf32> to vector<8x1xf32>
      %cst_50 = arith.constant 9.99999993E-9 : f32
      %88 = vector.broadcast %cst_50 : f32 to vector<8x1xf32>
      %89 = arith.cmpf ogt, %87, %88 : vector<8x1xf32>
      %cst_51 = arith.constant 9.99999993E-9 : f32
      %90 = vector.broadcast %cst_51 : f32 to vector<8x1xf32>
      %91 = arith.maximumf %87, %90 : vector<8x1xf32>
      %92 = arith.divf %81, %91 : vector<8x1xf32>
      %cst_52 = arith.constant 0.000000e+00 : f32
      %93 = vector.broadcast %cst_52 : f32 to vector<8x1xf32>
      %94 = arith.select %89, %92, %93 : vector<8x1xi1>, vector<8x1xf32>
      %95 = vector.broadcast %94 : vector<8x1xf32> to vector<8x10xf32>
      %96 = arith.mulf %95, %78 : vector<8x10xf32>
      %97 = arith.addf %77, %96 : vector<8x10xf32>
      %98 = vector.broadcast %94 : vector<8x1xf32> to vector<8x10xf32>
      %99 = arith.mulf %98, %84 : vector<8x10xf32>
      %100 = arith.subf %76, %99 : vector<8x10xf32>
      %101 = arith.mulf %67, %100 : vector<8x10xf32>
      %102 = arith.mulf %100, %101 : vector<8x10xf32>
      %cst_53 = arith.constant dense<0.000000e+00> : vector<8xf32>
      %103 = vector.multi_reduction <add>, %102, %cst_53 [1] : vector<8x10xf32> to vector<8xf32>
      %104 = vector.shape_cast %103 : vector<8xf32> to vector<8x1xf32>
      %cst_54 = arith.constant 9.99999993E-9 : f32
      %105 = vector.broadcast %cst_54 : f32 to vector<8x1xf32>
      %106 = arith.maximumf %81, %105 : vector<8x1xf32>
      %107 = arith.divf %104, %106 : vector<8x1xf32>
      %108 = vector.broadcast %107 : vector<8x1xf32> to vector<8x10xf32>
      %109 = arith.mulf %108, %78 : vector<8x10xf32>
      %110 = arith.addf %101, %109 : vector<8x10xf32>
      %c1_i32_55 = arith.constant 1 : i32
      %111 = tpu.concatenate %110, %110, %110, %110, %110, %110, %110, %110, %110, %110 in 1 : vector<8x10xf32>, vector<8x10xf32>, vector<8x10xf32>, vector<8x10xf32>, vector<8x10xf32>, vector<8x10xf32>, vector<8x10xf32>, vector<8x10xf32>, vector<8x10xf32>, vector<8x10xf32> -> vector<8x100xf32>
      %112 = arith.mulf %63, %111 : vector<8x100xf32>
      %cst_56 = arith.constant dense<0.000000e+00> : vector<8x10xf32>
      %113 = tpu.matmul %112, %21, %cst_56 {dimension_numbers = #tpu.dot_dimension_numbers<[1], [0], [0], [1], [0, 0, 1, 1], [], []>} : vector<8x100xf32>, vector<100x10xf32>, vector<8x10xf32> -> vector<8x10xf32>
      %114 = arith.mulf %110, %113 : vector<8x10xf32>
      %cst_57 = arith.constant dense<0.000000e+00> : vector<8xf32>
      %115 = vector.multi_reduction <add>, %114, %cst_57 [1] : vector<8x10xf32> to vector<8xf32>
      %116 = vector.shape_cast %115 : vector<8xf32> to vector<8x1xf32>
      %cst_58 = arith.constant 9.99999993E-9 : f32
      %117 = vector.broadcast %cst_58 : f32 to vector<8x1xf32>
      %118 = arith.cmpf ogt, %116, %117 : vector<8x1xf32>
      %cst_59 = arith.constant 9.99999993E-9 : f32
      %119 = vector.broadcast %cst_59 : f32 to vector<8x1xf32>
      %120 = arith.maximumf %116, %119 : vector<8x1xf32>
      %121 = arith.divf %104, %120 : vector<8x1xf32>
      %cst_60 = arith.constant 0.000000e+00 : f32
      %122 = vector.broadcast %cst_60 : f32 to vector<8x1xf32>
      %123 = arith.select %118, %121, %122 : vector<8x1xi1>, vector<8x1xf32>
      %124 = vector.broadcast %123 : vector<8x1xf32> to vector<8x10xf32>
      %125 = arith.mulf %124, %110 : vector<8x10xf32>
      %126 = arith.addf %97, %125 : vector<8x10xf32>
      %127 = vector.broadcast %123 : vector<8x1xf32> to vector<8x10xf32>
      %128 = arith.mulf %127, %113 : vector<8x10xf32>
      %129 = arith.subf %100, %128 : vector<8x10xf32>
      %130 = arith.mulf %67, %129 : vector<8x10xf32>
      %131 = arith.mulf %129, %130 : vector<8x10xf32>
      %cst_61 = arith.constant dense<0.000000e+00> : vector<8xf32>
      %132 = vector.multi_reduction <add>, %131, %cst_61 [1] : vector<8x10xf32> to vector<8xf32>
      %133 = vector.shape_cast %132 : vector<8xf32> to vector<8x1xf32>
      %cst_62 = arith.constant 9.99999993E-9 : f32
      %134 = vector.broadcast %cst_62 : f32 to vector<8x1xf32>
      %135 = arith.maximumf %104, %134 : vector<8x1xf32>
      %136 = arith.divf %133, %135 : vector<8x1xf32>
      %137 = vector.broadcast %136 : vector<8x1xf32> to vector<8x10xf32>
      %138 = arith.mulf %137, %110 : vector<8x10xf32>
      %139 = arith.addf %130, %138 : vector<8x10xf32>
      %c2_i32 = arith.constant 2 : i32
      %140 = tpu.concatenate %139, %139, %139, %139, %139, %139, %139, %139, %139, %139 in 1 : vector<8x10xf32>, vector<8x10xf32>, vector<8x10xf32>, vector<8x10xf32>, vector<8x10xf32>, vector<8x10xf32>, vector<8x10xf32>, vector<8x10xf32>, vector<8x10xf32>, vector<8x10xf32> -> vector<8x100xf32>
      %141 = arith.mulf %63, %140 : vector<8x100xf32>
      %cst_63 = arith.constant dense<0.000000e+00> : vector<8x10xf32>
      %142 = tpu.matmul %141, %21, %cst_63 {dimension_numbers = #tpu.dot_dimension_numbers<[1], [0], [0], [1], [0, 0, 1, 1], [], []>} : vector<8x100xf32>, vector<100x10xf32>, vector<8x10xf32> -> vector<8x10xf32>
      %143 = arith.mulf %139, %142 : vector<8x10xf32>
      %cst_64 = arith.constant dense<0.000000e+00> : vector<8xf32>
      %144 = vector.multi_reduction <add>, %143, %cst_64 [1] : vector<8x10xf32> to vector<8xf32>
      %145 = vector.shape_cast %144 : vector<8xf32> to vector<8x1xf32>
      %cst_65 = arith.constant 9.99999993E-9 : f32
      %146 = vector.broadcast %cst_65 : f32 to vector<8x1xf32>
      %147 = arith.cmpf ogt, %145, %146 : vector<8x1xf32>
      %cst_66 = arith.constant 9.99999993E-9 : f32
      %148 = vector.broadcast %cst_66 : f32 to vector<8x1xf32>
      %149 = arith.maximumf %145, %148 : vector<8x1xf32>
      %150 = arith.divf %133, %149 : vector<8x1xf32>
      %cst_67 = arith.constant 0.000000e+00 : f32
      %151 = vector.broadcast %cst_67 : f32 to vector<8x1xf32>
      %152 = arith.select %147, %150, %151 : vector<8x1xi1>, vector<8x1xf32>
      %153 = vector.broadcast %152 : vector<8x1xf32> to vector<8x10xf32>
      %154 = arith.mulf %153, %139 : vector<8x10xf32>
      %155 = arith.addf %126, %154 : vector<8x10xf32>
      %156 = vector.broadcast %152 : vector<8x1xf32> to vector<8x10xf32>
      %157 = arith.mulf %156, %142 : vector<8x10xf32>
      %158 = arith.subf %129, %157 : vector<8x10xf32>
      %159 = arith.mulf %67, %158 : vector<8x10xf32>
      %160 = arith.mulf %158, %159 : vector<8x10xf32>
      %cst_68 = arith.constant dense<0.000000e+00> : vector<8xf32>
      %161 = vector.multi_reduction <add>, %160, %cst_68 [1] : vector<8x10xf32> to vector<8xf32>
      %162 = vector.shape_cast %161 : vector<8xf32> to vector<8x1xf32>
      %cst_69 = arith.constant 9.99999993E-9 : f32
      %163 = vector.broadcast %cst_69 : f32 to vector<8x1xf32>
      %164 = arith.maximumf %133, %163 : vector<8x1xf32>
      %165 = arith.divf %162, %164 : vector<8x1xf32>
      %166 = vector.broadcast %165 : vector<8x1xf32> to vector<8x10xf32>
      %167 = arith.mulf %166, %139 : vector<8x10xf32>
      %168 = arith.addf %159, %167 : vector<8x10xf32>
      %c3_i32 = arith.constant 3 : i32
      %169 = tpu.concatenate %168, %168, %168, %168, %168, %168, %168, %168, %168, %168 in 1 : vector<8x10xf32>, vector<8x10xf32>, vector<8x10xf32>, vector<8x10xf32>, vector<8x10xf32>, vector<8x10xf32>, vector<8x10xf32>, vector<8x10xf32>, vector<8x10xf32>, vector<8x10xf32> -> vector<8x100xf32>
      %170 = arith.mulf %63, %169 : vector<8x100xf32>
      %cst_70 = arith.constant dense<0.000000e+00> : vector<8x10xf32>
      %171 = tpu.matmul %170, %21, %cst_70 {dimension_numbers = #tpu.dot_dimension_numbers<[1], [0], [0], [1], [0, 0, 1, 1], [], []>} : vector<8x100xf32>, vector<100x10xf32>, vector<8x10xf32> -> vector<8x10xf32>
      %172 = arith.mulf %168, %171 : vector<8x10xf32>
      %cst_71 = arith.constant dense<0.000000e+00> : vector<8xf32>
      %173 = vector.multi_reduction <add>, %172, %cst_71 [1] : vector<8x10xf32> to vector<8xf32>
      %174 = vector.shape_cast %173 : vector<8xf32> to vector<8x1xf32>
      %cst_72 = arith.constant 9.99999993E-9 : f32
      %175 = vector.broadcast %cst_72 : f32 to vector<8x1xf32>
      %176 = arith.cmpf ogt, %174, %175 : vector<8x1xf32>
      %cst_73 = arith.constant 9.99999993E-9 : f32
      %177 = vector.broadcast %cst_73 : f32 to vector<8x1xf32>
      %178 = arith.maximumf %174, %177 : vector<8x1xf32>
      %179 = arith.divf %162, %178 : vector<8x1xf32>
      %cst_74 = arith.constant 0.000000e+00 : f32
      %180 = vector.broadcast %cst_74 : f32 to vector<8x1xf32>
      %181 = arith.select %176, %179, %180 : vector<8x1xi1>, vector<8x1xf32>
      %182 = vector.broadcast %181 : vector<8x1xf32> to vector<8x10xf32>
      %183 = arith.mulf %182, %168 : vector<8x10xf32>
      %184 = arith.addf %155, %183 : vector<8x10xf32>
      %185 = vector.broadcast %181 : vector<8x1xf32> to vector<8x10xf32>
      %186 = arith.mulf %185, %171 : vector<8x10xf32>
      %187 = arith.subf %158, %186 : vector<8x10xf32>
      %188 = arith.mulf %67, %187 : vector<8x10xf32>
      %189 = arith.mulf %187, %188 : vector<8x10xf32>
      %cst_75 = arith.constant dense<0.000000e+00> : vector<8xf32>
      %190 = vector.multi_reduction <add>, %189, %cst_75 [1] : vector<8x10xf32> to vector<8xf32>
      %191 = vector.shape_cast %190 : vector<8xf32> to vector<8x1xf32>
      %cst_76 = arith.constant 9.99999993E-9 : f32
      %192 = vector.broadcast %cst_76 : f32 to vector<8x1xf32>
      %193 = arith.maximumf %162, %192 : vector<8x1xf32>
      %194 = arith.divf %191, %193 : vector<8x1xf32>
      %195 = vector.broadcast %194 : vector<8x1xf32> to vector<8x10xf32>
      %196 = arith.mulf %195, %168 : vector<8x10xf32>
      %197 = arith.addf %188, %196 : vector<8x10xf32>
      %c4_i32 = arith.constant 4 : i32
      %198 = tpu.concatenate %197, %197, %197, %197, %197, %197, %197, %197, %197, %197 in 1 : vector<8x10xf32>, vector<8x10xf32>, vector<8x10xf32>, vector<8x10xf32>, vector<8x10xf32>, vector<8x10xf32>, vector<8x10xf32>, vector<8x10xf32>, vector<8x10xf32>, vector<8x10xf32> -> vector<8x100xf32>
      %199 = arith.mulf %63, %198 : vector<8x100xf32>
      %cst_77 = arith.constant dense<0.000000e+00> : vector<8x10xf32>
      %200 = tpu.matmul %199, %21, %cst_77 {dimension_numbers = #tpu.dot_dimension_numbers<[1], [0], [0], [1], [0, 0, 1, 1], [], []>} : vector<8x100xf32>, vector<100x10xf32>, vector<8x10xf32> -> vector<8x10xf32>
      %201 = arith.mulf %197, %200 : vector<8x10xf32>
      %cst_78 = arith.constant dense<0.000000e+00> : vector<8xf32>
      %202 = vector.multi_reduction <add>, %201, %cst_78 [1] : vector<8x10xf32> to vector<8xf32>
      %203 = vector.shape_cast %202 : vector<8xf32> to vector<8x1xf32>
      %cst_79 = arith.constant 9.99999993E-9 : f32
      %204 = vector.broadcast %cst_79 : f32 to vector<8x1xf32>
      %205 = arith.cmpf ogt, %203, %204 : vector<8x1xf32>
      %cst_80 = arith.constant 9.99999993E-9 : f32
      %206 = vector.broadcast %cst_80 : f32 to vector<8x1xf32>
      %207 = arith.maximumf %203, %206 : vector<8x1xf32>
      %208 = arith.divf %191, %207 : vector<8x1xf32>
      %cst_81 = arith.constant 0.000000e+00 : f32
      %209 = vector.broadcast %cst_81 : f32 to vector<8x1xf32>
      %210 = arith.select %205, %208, %209 : vector<8x1xi1>, vector<8x1xf32>
      %211 = vector.broadcast %210 : vector<8x1xf32> to vector<8x10xf32>
      %212 = arith.mulf %211, %197 : vector<8x10xf32>
      %213 = arith.addf %184, %212 : vector<8x10xf32>
      %214 = vector.broadcast %210 : vector<8x1xf32> to vector<8x10xf32>
      %215 = arith.mulf %214, %200 : vector<8x10xf32>
      %216 = arith.subf %187, %215 : vector<8x10xf32>
      %217 = arith.mulf %67, %216 : vector<8x10xf32>
      %218 = arith.mulf %216, %217 : vector<8x10xf32>
      %cst_82 = arith.constant dense<0.000000e+00> : vector<8xf32>
      %219 = vector.multi_reduction <add>, %218, %cst_82 [1] : vector<8x10xf32> to vector<8xf32>
      %220 = vector.shape_cast %219 : vector<8xf32> to vector<8x1xf32>
      %cst_83 = arith.constant 9.99999993E-9 : f32
      %221 = vector.broadcast %cst_83 : f32 to vector<8x1xf32>
      %222 = arith.maximumf %191, %221 : vector<8x1xf32>
      %223 = arith.divf %220, %222 : vector<8x1xf32>
      %224 = vector.broadcast %223 : vector<8x1xf32> to vector<8x10xf32>
      %225 = arith.mulf %224, %197 : vector<8x10xf32>
      %226 = arith.addf %217, %225 : vector<8x10xf32>
      %c5_i32 = arith.constant 5 : i32
      %227 = tpu.concatenate %226, %226, %226, %226, %226, %226, %226, %226, %226, %226 in 1 : vector<8x10xf32>, vector<8x10xf32>, vector<8x10xf32>, vector<8x10xf32>, vector<8x10xf32>, vector<8x10xf32>, vector<8x10xf32>, vector<8x10xf32>, vector<8x10xf32>, vector<8x10xf32> -> vector<8x100xf32>
      %228 = arith.mulf %63, %227 : vector<8x100xf32>
      %cst_84 = arith.constant dense<0.000000e+00> : vector<8x10xf32>
      %229 = tpu.matmul %228, %21, %cst_84 {dimension_numbers = #tpu.dot_dimension_numbers<[1], [0], [0], [1], [0, 0, 1, 1], [], []>} : vector<8x100xf32>, vector<100x10xf32>, vector<8x10xf32> -> vector<8x10xf32>
      %230 = arith.mulf %226, %229 : vector<8x10xf32>
      %cst_85 = arith.constant dense<0.000000e+00> : vector<8xf32>
      %231 = vector.multi_reduction <add>, %230, %cst_85 [1] : vector<8x10xf32> to vector<8xf32>
      %232 = vector.shape_cast %231 : vector<8xf32> to vector<8x1xf32>
      %cst_86 = arith.constant 9.99999993E-9 : f32
      %233 = vector.broadcast %cst_86 : f32 to vector<8x1xf32>
      %234 = arith.cmpf ogt, %232, %233 : vector<8x1xf32>
      %cst_87 = arith.constant 9.99999993E-9 : f32
      %235 = vector.broadcast %cst_87 : f32 to vector<8x1xf32>
      %236 = arith.maximumf %232, %235 : vector<8x1xf32>
      %237 = arith.divf %220, %236 : vector<8x1xf32>
      %cst_88 = arith.constant 0.000000e+00 : f32
      %238 = vector.broadcast %cst_88 : f32 to vector<8x1xf32>
      %239 = arith.select %234, %237, %238 : vector<8x1xi1>, vector<8x1xf32>
      %240 = vector.broadcast %239 : vector<8x1xf32> to vector<8x10xf32>
      %241 = arith.mulf %240, %226 : vector<8x10xf32>
      %242 = arith.addf %213, %241 : vector<8x10xf32>
      %243 = vector.broadcast %239 : vector<8x1xf32> to vector<8x10xf32>
      %244 = arith.mulf %243, %229 : vector<8x10xf32>
      %245 = arith.subf %216, %244 : vector<8x10xf32>
      %246 = arith.mulf %67, %245 : vector<8x10xf32>
      %247 = arith.mulf %245, %246 : vector<8x10xf32>
      %cst_89 = arith.constant dense<0.000000e+00> : vector<8xf32>
      %248 = vector.multi_reduction <add>, %247, %cst_89 [1] : vector<8x10xf32> to vector<8xf32>
      %249 = vector.shape_cast %248 : vector<8xf32> to vector<8x1xf32>
      %cst_90 = arith.constant 9.99999993E-9 : f32
      %250 = vector.broadcast %cst_90 : f32 to vector<8x1xf32>
      %251 = arith.maximumf %220, %250 : vector<8x1xf32>
      %252 = arith.divf %249, %251 : vector<8x1xf32>
      %253 = vector.broadcast %252 : vector<8x1xf32> to vector<8x10xf32>
      %254 = arith.mulf %253, %226 : vector<8x10xf32>
      %255 = arith.addf %246, %254 : vector<8x10xf32>
      %c6_i32 = arith.constant 6 : i32
      %256 = tpu.concatenate %255, %255, %255, %255, %255, %255, %255, %255, %255, %255 in 1 : vector<8x10xf32>, vector<8x10xf32>, vector<8x10xf32>, vector<8x10xf32>, vector<8x10xf32>, vector<8x10xf32>, vector<8x10xf32>, vector<8x10xf32>, vector<8x10xf32>, vector<8x10xf32> -> vector<8x100xf32>
      %257 = arith.mulf %63, %256 : vector<8x100xf32>
      %cst_91 = arith.constant dense<0.000000e+00> : vector<8x10xf32>
      %258 = tpu.matmul %257, %21, %cst_91 {dimension_numbers = #tpu.dot_dimension_numbers<[1], [0], [0], [1], [0, 0, 1, 1], [], []>} : vector<8x100xf32>, vector<100x10xf32>, vector<8x10xf32> -> vector<8x10xf32>
      %259 = arith.mulf %255, %258 : vector<8x10xf32>
      %cst_92 = arith.constant dense<0.000000e+00> : vector<8xf32>
      %260 = vector.multi_reduction <add>, %259, %cst_92 [1] : vector<8x10xf32> to vector<8xf32>
      %261 = vector.shape_cast %260 : vector<8xf32> to vector<8x1xf32>
      %cst_93 = arith.constant 9.99999993E-9 : f32
      %262 = vector.broadcast %cst_93 : f32 to vector<8x1xf32>
      %263 = arith.cmpf ogt, %261, %262 : vector<8x1xf32>
      %cst_94 = arith.constant 9.99999993E-9 : f32
      %264 = vector.broadcast %cst_94 : f32 to vector<8x1xf32>
      %265 = arith.maximumf %261, %264 : vector<8x1xf32>
      %266 = arith.divf %249, %265 : vector<8x1xf32>
      %cst_95 = arith.constant 0.000000e+00 : f32
      %267 = vector.broadcast %cst_95 : f32 to vector<8x1xf32>
      %268 = arith.select %263, %266, %267 : vector<8x1xi1>, vector<8x1xf32>
      %269 = vector.broadcast %268 : vector<8x1xf32> to vector<8x10xf32>
      %270 = arith.mulf %269, %255 : vector<8x10xf32>
      %271 = arith.addf %242, %270 : vector<8x10xf32>
      %272 = vector.broadcast %268 : vector<8x1xf32> to vector<8x10xf32>
      %273 = arith.mulf %272, %258 : vector<8x10xf32>
      %274 = arith.subf %245, %273 : vector<8x10xf32>
      %275 = arith.mulf %67, %274 : vector<8x10xf32>
      %276 = arith.mulf %274, %275 : vector<8x10xf32>
      %cst_96 = arith.constant dense<0.000000e+00> : vector<8xf32>
      %277 = vector.multi_reduction <add>, %276, %cst_96 [1] : vector<8x10xf32> to vector<8xf32>
      %278 = vector.shape_cast %277 : vector<8xf32> to vector<8x1xf32>
      %cst_97 = arith.constant 9.99999993E-9 : f32
      %279 = vector.broadcast %cst_97 : f32 to vector<8x1xf32>
      %280 = arith.maximumf %249, %279 : vector<8x1xf32>
      %281 = arith.divf %278, %280 : vector<8x1xf32>
      %282 = vector.broadcast %281 : vector<8x1xf32> to vector<8x10xf32>
      %283 = arith.mulf %282, %255 : vector<8x10xf32>
      %284 = arith.addf %275, %283 : vector<8x10xf32>
      %c7_i32 = arith.constant 7 : i32
      %285 = tpu.concatenate %284, %284, %284, %284, %284, %284, %284, %284, %284, %284 in 1 : vector<8x10xf32>, vector<8x10xf32>, vector<8x10xf32>, vector<8x10xf32>, vector<8x10xf32>, vector<8x10xf32>, vector<8x10xf32>, vector<8x10xf32>, vector<8x10xf32>, vector<8x10xf32> -> vector<8x100xf32>
      %286 = arith.mulf %63, %285 : vector<8x100xf32>
      %cst_98 = arith.constant dense<0.000000e+00> : vector<8x10xf32>
      %287 = tpu.matmul %286, %21, %cst_98 {dimension_numbers = #tpu.dot_dimension_numbers<[1], [0], [0], [1], [0, 0, 1, 1], [], []>} : vector<8x100xf32>, vector<100x10xf32>, vector<8x10xf32> -> vector<8x10xf32>
      %288 = arith.mulf %284, %287 : vector<8x10xf32>
      %cst_99 = arith.constant dense<0.000000e+00> : vector<8xf32>
      %289 = vector.multi_reduction <add>, %288, %cst_99 [1] : vector<8x10xf32> to vector<8xf32>
      %290 = vector.shape_cast %289 : vector<8xf32> to vector<8x1xf32>
      %cst_100 = arith.constant 9.99999993E-9 : f32
      %291 = vector.broadcast %cst_100 : f32 to vector<8x1xf32>
      %292 = arith.cmpf ogt, %290, %291 : vector<8x1xf32>
      %cst_101 = arith.constant 9.99999993E-9 : f32
      %293 = vector.broadcast %cst_101 : f32 to vector<8x1xf32>
      %294 = arith.maximumf %290, %293 : vector<8x1xf32>
      %295 = arith.divf %278, %294 : vector<8x1xf32>
      %cst_102 = arith.constant 0.000000e+00 : f32
      %296 = vector.broadcast %cst_102 : f32 to vector<8x1xf32>
      %297 = arith.select %292, %295, %296 : vector<8x1xi1>, vector<8x1xf32>
      %298 = vector.broadcast %297 : vector<8x1xf32> to vector<8x10xf32>
      %299 = arith.mulf %298, %284 : vector<8x10xf32>
      %300 = arith.addf %271, %299 : vector<8x10xf32>
      %301 = vector.broadcast %297 : vector<8x1xf32> to vector<8x10xf32>
      %302 = arith.mulf %301, %287 : vector<8x10xf32>
      %303 = arith.subf %274, %302 : vector<8x10xf32>
      %304 = arith.mulf %67, %303 : vector<8x10xf32>
      %305 = arith.mulf %303, %304 : vector<8x10xf32>
      %cst_103 = arith.constant dense<0.000000e+00> : vector<8xf32>
      %306 = vector.multi_reduction <add>, %305, %cst_103 [1] : vector<8x10xf32> to vector<8xf32>
      %307 = vector.shape_cast %306 : vector<8xf32> to vector<8x1xf32>
      %cst_104 = arith.constant 9.99999993E-9 : f32
      %308 = vector.broadcast %cst_104 : f32 to vector<8x1xf32>
      %309 = arith.maximumf %278, %308 : vector<8x1xf32>
      %310 = arith.divf %307, %309 : vector<8x1xf32>
      %311 = vector.broadcast %310 : vector<8x1xf32> to vector<8x10xf32>
      %312 = arith.mulf %311, %284 : vector<8x10xf32>
      %313 = arith.addf %304, %312 : vector<8x10xf32>
      %cst_105 = arith.constant dense<0.000000e+00> : vector<8x200xf32>
      %314 = tpu.matmul %300, %19, %cst_105 {dimension_numbers = #tpu.dot_dimension_numbers<[1], [0], [0], [1], [0, 0, 1, 1], [], []>} : vector<8x10xf32>, vector<10x200xf32>, vector<8x200xf32> -> vector<8x200xf32>
      %cst_106 = arith.constant 0.000000e+00 : f32
      %315 = vector.broadcast %cst_106 : f32 to vector<8x200xf32>
      %316 = arith.subf %315, %54 : vector<8x200xf32>
      %317 = arith.subf %316, %314 : vector<8x200xf32>
      %318 = arith.mulf %45, %314 : vector<8x200xf32>
      %319 = arith.addf %72, %318 : vector<8x200xf32>
      %cst_107 = arith.constant 0.000000e+00 : f32
      %320 = vector.broadcast %cst_107 : f32 to vector<8x200xf32>
      %321 = arith.cmpf olt, %317, %320 : vector<8x200xf32>
      %cst_108 = arith.constant -1.000000e+00 : f32
      %322 = vector.broadcast %cst_108 : f32 to vector<8x200xf32>
      %323 = arith.select %321, %317, %322 : vector<8x200xi1>, vector<8x200xf32>
      %324 = tpu.reciprocal %323 {approx = true} : vector<8x200xf32> -> vector<8x200xf32>
      %cst_109 = arith.constant 0.000000e+00 : f32
      %325 = vector.broadcast %cst_109 : f32 to vector<8x200xf32>
      %326 = arith.cmpf olt, %319, %325 : vector<8x200xf32>
      %cst_110 = arith.constant -1.000000e+00 : f32
      %327 = vector.broadcast %cst_110 : f32 to vector<8x200xf32>
      %328 = arith.select %326, %319, %327 : vector<8x200xi1>, vector<8x200xf32>
      %329 = tpu.reciprocal %328 {approx = true} : vector<8x200xf32> -> vector<8x200xf32>
      %cst_111 = arith.constant 0.000000e+00 : f32
      %330 = vector.broadcast %cst_111 : f32 to vector<8x200xf32>
      %331 = arith.cmpf olt, %317, %330 : vector<8x200xf32>
      %cst_112 = arith.constant 0.000000e+00 : f32
      %332 = vector.broadcast %cst_112 : f32 to vector<8x200xf32>
      %333 = arith.subf %332, %arg17 : vector<8x200xf32>
      %334 = arith.mulf %333, %324 : vector<8x200xf32>
      %cst_113 = arith.constant 1.000000e+30 : f32
      %335 = vector.broadcast %cst_113 : f32 to vector<8x200xf32>
      %336 = arith.select %331, %334, %335 : vector<8x200xi1>, vector<8x200xf32>
      %cst_114 = arith.constant 0.000000e+00 : f32
      %337 = vector.broadcast %cst_114 : f32 to vector<8x200xf32>
      %338 = arith.cmpf olt, %319, %337 : vector<8x200xf32>
      %cst_115 = arith.constant 0.000000e+00 : f32
      %339 = vector.broadcast %cst_115 : f32 to vector<8x200xf32>
      %340 = arith.subf %339, %arg18 : vector<8x200xf32>
      %341 = arith.mulf %340, %329 : vector<8x200xf32>
      %cst_116 = arith.constant 1.000000e+30 : f32
      %342 = vector.broadcast %cst_116 : f32 to vector<8x200xf32>
      %343 = arith.select %338, %341, %342 : vector<8x200xi1>, vector<8x200xf32>
      %cst_117 = arith.constant dense<0x7F800000> : vector<8xf32>
      %344 = vector.multi_reduction <minimumf>, %336, %cst_117 [1] : vector<8x200xf32> to vector<8xf32>
      %345 = vector.shape_cast %344 : vector<8xf32> to vector<8x1xf32>
      %cst_118 = arith.constant dense<0x7F800000> : vector<8xf32>
      %346 = vector.multi_reduction <minimumf>, %343, %cst_118 [1] : vector<8x200xf32> to vector<8xf32>
      %347 = vector.shape_cast %346 : vector<8xf32> to vector<8x1xf32>
      %348 = arith.minimumf %345, %347 : vector<8x1xf32>
      %cst_119 = arith.constant 1.000000e+00 : f32
      %349 = vector.broadcast %cst_119 : f32 to vector<8x1xf32>
      %350 = arith.mulf %349, %348 : vector<8x1xf32>
      %cst_120 = arith.constant 1.000000e+00 : f32
      %351 = vector.broadcast %cst_120 : f32 to vector<8x1xf32>
      %352 = arith.minimumf %351, %350 : vector<8x1xf32>
      %353 = vector.broadcast %352 : vector<8x1xf32> to vector<8x200xf32>
      %354 = arith.mulf %353, %317 : vector<8x200xf32>
      %355 = arith.addf %arg17, %354 : vector<8x200xf32>
      %356 = vector.broadcast %352 : vector<8x1xf32> to vector<8x200xf32>
      %357 = arith.mulf %356, %319 : vector<8x200xf32>
      %358 = arith.addf %arg18, %357 : vector<8x200xf32>
      %359 = arith.mulf %355, %358 : vector<8x200xf32>
      %cst_121 = arith.constant dense<0.000000e+00> : vector<8xf32>
      %360 = vector.multi_reduction <add>, %359, %cst_121 [1] : vector<8x200xf32> to vector<8xf32>
      %361 = vector.shape_cast %360 : vector<8xf32> to vector<8x1xf32>
      %cst_122 = arith.constant 2.000000e+02 : f32
      %362 = vector.broadcast %cst_122 : f32 to vector<8x1xf32>
      %363 = arith.divf %361, %362 : vector<8x1xf32>
      %cst_123 = arith.constant 9.99999993E-9 : f32
      %364 = vector.broadcast %cst_123 : f32 to vector<8x1xf32>
      %365 = arith.maximumf %59, %364 : vector<8x1xf32>
      %366 = tpu.reciprocal %365 {approx = true} : vector<8x1xf32> -> vector<8x1xf32>
      %367 = arith.mulf %363, %366 : vector<8x1xf32>
      %368 = arith.mulf %367, %367 : vector<8x1xf32>
      %369 = arith.mulf %368, %367 : vector<8x1xf32>
      %cst_124 = arith.constant 0.000000e+00 : f32
      %cst_125 = arith.constant 1.000000e+00 : f32
      %370 = vector.broadcast %cst_124 : f32 to vector<8x1xf32>
      %371 = arith.maximumf %370, %369 : vector<8x1xf32>
      %372 = vector.broadcast %cst_125 : f32 to vector<8x1xf32>
      %373 = arith.minimumf %372, %371 : vector<8x1xf32>
      %cst_126 = arith.constant 0.000000e+00 : f32
      %374 = vector.broadcast %cst_126 : f32 to vector<8x200xf32>
      %375 = arith.subf %374, %55 : vector<8x200xf32>
      %376 = arith.mulf %317, %319 : vector<8x200xf32>
      %377 = arith.subf %375, %376 : vector<8x200xf32>
      %378 = arith.mulf %373, %59 : vector<8x1xf32>
      %379 = vector.broadcast %378 : vector<8x1xf32> to vector<8x200xf32>
      %380 = arith.addf %377, %379 : vector<8x200xf32>
      %381 = arith.mulf %arg18, %54 : vector<8x200xf32>
      %382 = arith.addf %380, %381 : vector<8x200xf32>
      %383 = arith.mulf %382, %42 : vector<8x200xf32>
      %cst_127 = arith.constant 0.000000e+00 : f32
      %384 = vector.broadcast %cst_127 : f32 to vector<8x10xf32>
      %385 = arith.subf %384, %51 : vector<8x10xf32>
      %cst_128 = arith.constant dense<0.000000e+00> : vector<8x10xf32>
      %386 = tpu.matmul %383, %18, %cst_128 {dimension_numbers = #tpu.dot_dimension_numbers<[1], [0], [0], [1], [0, 0, 1, 1], [], []>} : vector<8x200xf32>, vector<200x10xf32>, vector<8x10xf32> -> vector<8x10xf32>
      %387 = arith.subf %385, %386 : vector<8x10xf32>
      %cst_129 = arith.constant 0.000000e+00 : f32
      %388 = vector.broadcast %cst_129 : f32 to vector<8x10xf32>
      %389 = arith.mulf %67, %387 : vector<8x10xf32>
      %390 = arith.mulf %387, %389 : vector<8x10xf32>
      %cst_130 = arith.constant dense<0.000000e+00> : vector<8xf32>
      %391 = vector.multi_reduction <add>, %390, %cst_130 [1] : vector<8x10xf32> to vector<8xf32>
      %392 = vector.shape_cast %391 : vector<8xf32> to vector<8x1xf32>
      %c0_i32_131 = arith.constant 0 : i32
      %393 = tpu.concatenate %389, %389, %389, %389, %389, %389, %389, %389, %389, %389 in 1 : vector<8x10xf32>, vector<8x10xf32>, vector<8x10xf32>, vector<8x10xf32>, vector<8x10xf32>, vector<8x10xf32>, vector<8x10xf32>, vector<8x10xf32>, vector<8x10xf32>, vector<8x10xf32> -> vector<8x100xf32>
      %394 = arith.mulf %63, %393 : vector<8x100xf32>
      %cst_132 = arith.constant dense<0.000000e+00> : vector<8x10xf32>
      %395 = tpu.matmul %394, %21, %cst_132 {dimension_numbers = #tpu.dot_dimension_numbers<[1], [0], [0], [1], [0, 0, 1, 1], [], []>} : vector<8x100xf32>, vector<100x10xf32>, vector<8x10xf32> -> vector<8x10xf32>
      %396 = arith.mulf %389, %395 : vector<8x10xf32>
      %cst_133 = arith.constant dense<0.000000e+00> : vector<8xf32>
      %397 = vector.multi_reduction <add>, %396, %cst_133 [1] : vector<8x10xf32> to vector<8xf32>
      %398 = vector.shape_cast %397 : vector<8xf32> to vector<8x1xf32>
      %cst_134 = arith.constant 9.99999993E-9 : f32
      %399 = vector.broadcast %cst_134 : f32 to vector<8x1xf32>
      %400 = arith.cmpf ogt, %398, %399 : vector<8x1xf32>
      %cst_135 = arith.constant 9.99999993E-9 : f32
      %401 = vector.broadcast %cst_135 : f32 to vector<8x1xf32>
      %402 = arith.maximumf %398, %401 : vector<8x1xf32>
      %403 = arith.divf %392, %402 : vector<8x1xf32>
      %cst_136 = arith.constant 0.000000e+00 : f32
      %404 = vector.broadcast %cst_136 : f32 to vector<8x1xf32>
      %405 = arith.select %400, %403, %404 : vector<8x1xi1>, vector<8x1xf32>
      %406 = vector.broadcast %405 : vector<8x1xf32> to vector<8x10xf32>
      %407 = arith.mulf %406, %389 : vector<8x10xf32>
      %408 = arith.addf %388, %407 : vector<8x10xf32>
      %409 = vector.broadcast %405 : vector<8x1xf32> to vector<8x10xf32>
      %410 = arith.mulf %409, %395 : vector<8x10xf32>
      %411 = arith.subf %387, %410 : vector<8x10xf32>
      %412 = arith.mulf %67, %411 : vector<8x10xf32>
      %413 = arith.mulf %411, %412 : vector<8x10xf32>
      %cst_137 = arith.constant dense<0.000000e+00> : vector<8xf32>
      %414 = vector.multi_reduction <add>, %413, %cst_137 [1] : vector<8x10xf32> to vector<8xf32>
      %415 = vector.shape_cast %414 : vector<8xf32> to vector<8x1xf32>
      %cst_138 = arith.constant 9.99999993E-9 : f32
      %416 = vector.broadcast %cst_138 : f32 to vector<8x1xf32>
      %417 = arith.maximumf %392, %416 : vector<8x1xf32>
      %418 = arith.divf %415, %417 : vector<8x1xf32>
      %419 = vector.broadcast %418 : vector<8x1xf32> to vector<8x10xf32>
      %420 = arith.mulf %419, %389 : vector<8x10xf32>
      %421 = arith.addf %412, %420 : vector<8x10xf32>
      %c1_i32_139 = arith.constant 1 : i32
      %422 = tpu.concatenate %421, %421, %421, %421, %421, %421, %421, %421, %421, %421 in 1 : vector<8x10xf32>, vector<8x10xf32>, vector<8x10xf32>, vector<8x10xf32>, vector<8x10xf32>, vector<8x10xf32>, vector<8x10xf32>, vector<8x10xf32>, vector<8x10xf32>, vector<8x10xf32> -> vector<8x100xf32>
      %423 = arith.mulf %63, %422 : vector<8x100xf32>
      %cst_140 = arith.constant dense<0.000000e+00> : vector<8x10xf32>
      %424 = tpu.matmul %423, %21, %cst_140 {dimension_numbers = #tpu.dot_dimension_numbers<[1], [0], [0], [1], [0, 0, 1, 1], [], []>} : vector<8x100xf32>, vector<100x10xf32>, vector<8x10xf32> -> vector<8x10xf32>
      %425 = arith.mulf %421, %424 : vector<8x10xf32>
      %cst_141 = arith.constant dense<0.000000e+00> : vector<8xf32>
      %426 = vector.multi_reduction <add>, %425, %cst_141 [1] : vector<8x10xf32> to vector<8xf32>
      %427 = vector.shape_cast %426 : vector<8xf32> to vector<8x1xf32>
      %cst_142 = arith.constant 9.99999993E-9 : f32
      %428 = vector.broadcast %cst_142 : f32 to vector<8x1xf32>
      %429 = arith.cmpf ogt, %427, %428 : vector<8x1xf32>
      %cst_143 = arith.constant 9.99999993E-9 : f32
      %430 = vector.broadcast %cst_143 : f32 to vector<8x1xf32>
      %431 = arith.maximumf %427, %430 : vector<8x1xf32>
      %432 = arith.divf %415, %431 : vector<8x1xf32>
      %cst_144 = arith.constant 0.000000e+00 : f32
      %433 = vector.broadcast %cst_144 : f32 to vector<8x1xf32>
      %434 = arith.select %429, %432, %433 : vector<8x1xi1>, vector<8x1xf32>
      %435 = vector.broadcast %434 : vector<8x1xf32> to vector<8x10xf32>
      %436 = arith.mulf %435, %421 : vector<8x10xf32>
      %437 = arith.addf %408, %436 : vector<8x10xf32>
      %438 = vector.broadcast %434 : vector<8x1xf32> to vector<8x10xf32>
      %439 = arith.mulf %438, %424 : vector<8x10xf32>
      %440 = arith.subf %411, %439 : vector<8x10xf32>
      %441 = arith.mulf %67, %440 : vector<8x10xf32>
      %442 = arith.mulf %440, %441 : vector<8x10xf32>
      %cst_145 = arith.constant dense<0.000000e+00> : vector<8xf32>
      %443 = vector.multi_reduction <add>, %442, %cst_145 [1] : vector<8x10xf32> to vector<8xf32>
      %444 = vector.shape_cast %443 : vector<8xf32> to vector<8x1xf32>
      %cst_146 = arith.constant 9.99999993E-9 : f32
      %445 = vector.broadcast %cst_146 : f32 to vector<8x1xf32>
      %446 = arith.maximumf %415, %445 : vector<8x1xf32>
      %447 = arith.divf %444, %446 : vector<8x1xf32>
      %448 = vector.broadcast %447 : vector<8x1xf32> to vector<8x10xf32>
      %449 = arith.mulf %448, %421 : vector<8x10xf32>
      %450 = arith.addf %441, %449 : vector<8x10xf32>
      %c2_i32_147 = arith.constant 2 : i32
      %451 = tpu.concatenate %450, %450, %450, %450, %450, %450, %450, %450, %450, %450 in 1 : vector<8x10xf32>, vector<8x10xf32>, vector<8x10xf32>, vector<8x10xf32>, vector<8x10xf32>, vector<8x10xf32>, vector<8x10xf32>, vector<8x10xf32>, vector<8x10xf32>, vector<8x10xf32> -> vector<8x100xf32>
      %452 = arith.mulf %63, %451 : vector<8x100xf32>
      %cst_148 = arith.constant dense<0.000000e+00> : vector<8x10xf32>
      %453 = tpu.matmul %452, %21, %cst_148 {dimension_numbers = #tpu.dot_dimension_numbers<[1], [0], [0], [1], [0, 0, 1, 1], [], []>} : vector<8x100xf32>, vector<100x10xf32>, vector<8x10xf32> -> vector<8x10xf32>
      %454 = arith.mulf %450, %453 : vector<8x10xf32>
      %cst_149 = arith.constant dense<0.000000e+00> : vector<8xf32>
      %455 = vector.multi_reduction <add>, %454, %cst_149 [1] : vector<8x10xf32> to vector<8xf32>
      %456 = vector.shape_cast %455 : vector<8xf32> to vector<8x1xf32>
      %cst_150 = arith.constant 9.99999993E-9 : f32
      %457 = vector.broadcast %cst_150 : f32 to vector<8x1xf32>
      %458 = arith.cmpf ogt, %456, %457 : vector<8x1xf32>
      %cst_151 = arith.constant 9.99999993E-9 : f32
      %459 = vector.broadcast %cst_151 : f32 to vector<8x1xf32>
      %460 = arith.maximumf %456, %459 : vector<8x1xf32>
      %461 = arith.divf %444, %460 : vector<8x1xf32>
      %cst_152 = arith.constant 0.000000e+00 : f32
      %462 = vector.broadcast %cst_152 : f32 to vector<8x1xf32>
      %463 = arith.select %458, %461, %462 : vector<8x1xi1>, vector<8x1xf32>
      %464 = vector.broadcast %463 : vector<8x1xf32> to vector<8x10xf32>
      %465 = arith.mulf %464, %450 : vector<8x10xf32>
      %466 = arith.addf %437, %465 : vector<8x10xf32>
      %467 = vector.broadcast %463 : vector<8x1xf32> to vector<8x10xf32>
      %468 = arith.mulf %467, %453 : vector<8x10xf32>
      %469 = arith.subf %440, %468 : vector<8x10xf32>
      %470 = arith.mulf %67, %469 : vector<8x10xf32>
      %471 = arith.mulf %469, %470 : vector<8x10xf32>
      %cst_153 = arith.constant dense<0.000000e+00> : vector<8xf32>
      %472 = vector.multi_reduction <add>, %471, %cst_153 [1] : vector<8x10xf32> to vector<8xf32>
      %473 = vector.shape_cast %472 : vector<8xf32> to vector<8x1xf32>
      %cst_154 = arith.constant 9.99999993E-9 : f32
      %474 = vector.broadcast %cst_154 : f32 to vector<8x1xf32>
      %475 = arith.maximumf %444, %474 : vector<8x1xf32>
      %476 = arith.divf %473, %475 : vector<8x1xf32>
      %477 = vector.broadcast %476 : vector<8x1xf32> to vector<8x10xf32>
      %478 = arith.mulf %477, %450 : vector<8x10xf32>
      %479 = arith.addf %470, %478 : vector<8x10xf32>
      %c3_i32_155 = arith.constant 3 : i32
      %480 = tpu.concatenate %479, %479, %479, %479, %479, %479, %479, %479, %479, %479 in 1 : vector<8x10xf32>, vector<8x10xf32>, vector<8x10xf32>, vector<8x10xf32>, vector<8x10xf32>, vector<8x10xf32>, vector<8x10xf32>, vector<8x10xf32>, vector<8x10xf32>, vector<8x10xf32> -> vector<8x100xf32>
      %481 = arith.mulf %63, %480 : vector<8x100xf32>
      %cst_156 = arith.constant dense<0.000000e+00> : vector<8x10xf32>
      %482 = tpu.matmul %481, %21, %cst_156 {dimension_numbers = #tpu.dot_dimension_numbers<[1], [0], [0], [1], [0, 0, 1, 1], [], []>} : vector<8x100xf32>, vector<100x10xf32>, vector<8x10xf32> -> vector<8x10xf32>
      %483 = arith.mulf %479, %482 : vector<8x10xf32>
      %cst_157 = arith.constant dense<0.000000e+00> : vector<8xf32>
      %484 = vector.multi_reduction <add>, %483, %cst_157 [1] : vector<8x10xf32> to vector<8xf32>
      %485 = vector.shape_cast %484 : vector<8xf32> to vector<8x1xf32>
      %cst_158 = arith.constant 9.99999993E-9 : f32
      %486 = vector.broadcast %cst_158 : f32 to vector<8x1xf32>
      %487 = arith.cmpf ogt, %485, %486 : vector<8x1xf32>
      %cst_159 = arith.constant 9.99999993E-9 : f32
      %488 = vector.broadcast %cst_159 : f32 to vector<8x1xf32>
      %489 = arith.maximumf %485, %488 : vector<8x1xf32>
      %490 = arith.divf %473, %489 : vector<8x1xf32>
      %cst_160 = arith.constant 0.000000e+00 : f32
      %491 = vector.broadcast %cst_160 : f32 to vector<8x1xf32>
      %492 = arith.select %487, %490, %491 : vector<8x1xi1>, vector<8x1xf32>
      %493 = vector.broadcast %492 : vector<8x1xf32> to vector<8x10xf32>
      %494 = arith.mulf %493, %479 : vector<8x10xf32>
      %495 = arith.addf %466, %494 : vector<8x10xf32>
      %496 = vector.broadcast %492 : vector<8x1xf32> to vector<8x10xf32>
      %497 = arith.mulf %496, %482 : vector<8x10xf32>
      %498 = arith.subf %469, %497 : vector<8x10xf32>
      %499 = arith.mulf %67, %498 : vector<8x10xf32>
      %500 = arith.mulf %498, %499 : vector<8x10xf32>
      %cst_161 = arith.constant dense<0.000000e+00> : vector<8xf32>
      %501 = vector.multi_reduction <add>, %500, %cst_161 [1] : vector<8x10xf32> to vector<8xf32>
      %502 = vector.shape_cast %501 : vector<8xf32> to vector<8x1xf32>
      %cst_162 = arith.constant 9.99999993E-9 : f32
      %503 = vector.broadcast %cst_162 : f32 to vector<8x1xf32>
      %504 = arith.maximumf %473, %503 : vector<8x1xf32>
      %505 = arith.divf %502, %504 : vector<8x1xf32>
      %506 = vector.broadcast %505 : vector<8x1xf32> to vector<8x10xf32>
      %507 = arith.mulf %506, %479 : vector<8x10xf32>
      %508 = arith.addf %499, %507 : vector<8x10xf32>
      %c4_i32_163 = arith.constant 4 : i32
      %509 = tpu.concatenate %508, %508, %508, %508, %508, %508, %508, %508, %508, %508 in 1 : vector<8x10xf32>, vector<8x10xf32>, vector<8x10xf32>, vector<8x10xf32>, vector<8x10xf32>, vector<8x10xf32>, vector<8x10xf32>, vector<8x10xf32>, vector<8x10xf32>, vector<8x10xf32> -> vector<8x100xf32>
      %510 = arith.mulf %63, %509 : vector<8x100xf32>
      %cst_164 = arith.constant dense<0.000000e+00> : vector<8x10xf32>
      %511 = tpu.matmul %510, %21, %cst_164 {dimension_numbers = #tpu.dot_dimension_numbers<[1], [0], [0], [1], [0, 0, 1, 1], [], []>} : vector<8x100xf32>, vector<100x10xf32>, vector<8x10xf32> -> vector<8x10xf32>
      %512 = arith.mulf %508, %511 : vector<8x10xf32>
      %cst_165 = arith.constant dense<0.000000e+00> : vector<8xf32>
      %513 = vector.multi_reduction <add>, %512, %cst_165 [1] : vector<8x10xf32> to vector<8xf32>
      %514 = vector.shape_cast %513 : vector<8xf32> to vector<8x1xf32>
      %cst_166 = arith.constant 9.99999993E-9 : f32
      %515 = vector.broadcast %cst_166 : f32 to vector<8x1xf32>
      %516 = arith.cmpf ogt, %514, %515 : vector<8x1xf32>
      %cst_167 = arith.constant 9.99999993E-9 : f32
      %517 = vector.broadcast %cst_167 : f32 to vector<8x1xf32>
      %518 = arith.maximumf %514, %517 : vector<8x1xf32>
      %519 = arith.divf %502, %518 : vector<8x1xf32>
      %cst_168 = arith.constant 0.000000e+00 : f32
      %520 = vector.broadcast %cst_168 : f32 to vector<8x1xf32>
      %521 = arith.select %516, %519, %520 : vector<8x1xi1>, vector<8x1xf32>
      %522 = vector.broadcast %521 : vector<8x1xf32> to vector<8x10xf32>
      %523 = arith.mulf %522, %508 : vector<8x10xf32>
      %524 = arith.addf %495, %523 : vector<8x10xf32>
      %525 = vector.broadcast %521 : vector<8x1xf32> to vector<8x10xf32>
      %526 = arith.mulf %525, %511 : vector<8x10xf32>
      %527 = arith.subf %498, %526 : vector<8x10xf32>
      %528 = arith.mulf %67, %527 : vector<8x10xf32>
      %529 = arith.mulf %527, %528 : vector<8x10xf32>
      %cst_169 = arith.constant dense<0.000000e+00> : vector<8xf32>
      %530 = vector.multi_reduction <add>, %529, %cst_169 [1] : vector<8x10xf32> to vector<8xf32>
      %531 = vector.shape_cast %530 : vector<8xf32> to vector<8x1xf32>
      %cst_170 = arith.constant 9.99999993E-9 : f32
      %532 = vector.broadcast %cst_170 : f32 to vector<8x1xf32>
      %533 = arith.maximumf %502, %532 : vector<8x1xf32>
      %534 = arith.divf %531, %533 : vector<8x1xf32>
      %535 = vector.broadcast %534 : vector<8x1xf32> to vector<8x10xf32>
      %536 = arith.mulf %535, %508 : vector<8x10xf32>
      %537 = arith.addf %528, %536 : vector<8x10xf32>
      %c5_i32_171 = arith.constant 5 : i32
      %538 = tpu.concatenate %537, %537, %537, %537, %537, %537, %537, %537, %537, %537 in 1 : vector<8x10xf32>, vector<8x10xf32>, vector<8x10xf32>, vector<8x10xf32>, vector<8x10xf32>, vector<8x10xf32>, vector<8x10xf32>, vector<8x10xf32>, vector<8x10xf32>, vector<8x10xf32> -> vector<8x100xf32>
      %539 = arith.mulf %63, %538 : vector<8x100xf32>
      %cst_172 = arith.constant dense<0.000000e+00> : vector<8x10xf32>
      %540 = tpu.matmul %539, %21, %cst_172 {dimension_numbers = #tpu.dot_dimension_numbers<[1], [0], [0], [1], [0, 0, 1, 1], [], []>} : vector<8x100xf32>, vector<100x10xf32>, vector<8x10xf32> -> vector<8x10xf32>
      %541 = arith.mulf %537, %540 : vector<8x10xf32>
      %cst_173 = arith.constant dense<0.000000e+00> : vector<8xf32>
      %542 = vector.multi_reduction <add>, %541, %cst_173 [1] : vector<8x10xf32> to vector<8xf32>
      %543 = vector.shape_cast %542 : vector<8xf32> to vector<8x1xf32>
      %cst_174 = arith.constant 9.99999993E-9 : f32
      %544 = vector.broadcast %cst_174 : f32 to vector<8x1xf32>
      %545 = arith.cmpf ogt, %543, %544 : vector<8x1xf32>
      %cst_175 = arith.constant 9.99999993E-9 : f32
      %546 = vector.broadcast %cst_175 : f32 to vector<8x1xf32>
      %547 = arith.maximumf %543, %546 : vector<8x1xf32>
      %548 = arith.divf %531, %547 : vector<8x1xf32>
      %cst_176 = arith.constant 0.000000e+00 : f32
      %549 = vector.broadcast %cst_176 : f32 to vector<8x1xf32>
      %550 = arith.select %545, %548, %549 : vector<8x1xi1>, vector<8x1xf32>
      %551 = vector.broadcast %550 : vector<8x1xf32> to vector<8x10xf32>
      %552 = arith.mulf %551, %537 : vector<8x10xf32>
      %553 = arith.addf %524, %552 : vector<8x10xf32>
      %554 = vector.broadcast %550 : vector<8x1xf32> to vector<8x10xf32>
      %555 = arith.mulf %554, %540 : vector<8x10xf32>
      %556 = arith.subf %527, %555 : vector<8x10xf32>
      %557 = arith.mulf %67, %556 : vector<8x10xf32>
      %558 = arith.mulf %556, %557 : vector<8x10xf32>
      %cst_177 = arith.constant dense<0.000000e+00> : vector<8xf32>
      %559 = vector.multi_reduction <add>, %558, %cst_177 [1] : vector<8x10xf32> to vector<8xf32>
      %560 = vector.shape_cast %559 : vector<8xf32> to vector<8x1xf32>
      %cst_178 = arith.constant 9.99999993E-9 : f32
      %561 = vector.broadcast %cst_178 : f32 to vector<8x1xf32>
      %562 = arith.maximumf %531, %561 : vector<8x1xf32>
      %563 = arith.divf %560, %562 : vector<8x1xf32>
      %564 = vector.broadcast %563 : vector<8x1xf32> to vector<8x10xf32>
      %565 = arith.mulf %564, %537 : vector<8x10xf32>
      %566 = arith.addf %557, %565 : vector<8x10xf32>
      %c6_i32_179 = arith.constant 6 : i32
      %567 = tpu.concatenate %566, %566, %566, %566, %566, %566, %566, %566, %566, %566 in 1 : vector<8x10xf32>, vector<8x10xf32>, vector<8x10xf32>, vector<8x10xf32>, vector<8x10xf32>, vector<8x10xf32>, vector<8x10xf32>, vector<8x10xf32>, vector<8x10xf32>, vector<8x10xf32> -> vector<8x100xf32>
      %568 = arith.mulf %63, %567 : vector<8x100xf32>
      %cst_180 = arith.constant dense<0.000000e+00> : vector<8x10xf32>
      %569 = tpu.matmul %568, %21, %cst_180 {dimension_numbers = #tpu.dot_dimension_numbers<[1], [0], [0], [1], [0, 0, 1, 1], [], []>} : vector<8x100xf32>, vector<100x10xf32>, vector<8x10xf32> -> vector<8x10xf32>
      %570 = arith.mulf %566, %569 : vector<8x10xf32>
      %cst_181 = arith.constant dense<0.000000e+00> : vector<8xf32>
      %571 = vector.multi_reduction <add>, %570, %cst_181 [1] : vector<8x10xf32> to vector<8xf32>
      %572 = vector.shape_cast %571 : vector<8xf32> to vector<8x1xf32>
      %cst_182 = arith.constant 9.99999993E-9 : f32
      %573 = vector.broadcast %cst_182 : f32 to vector<8x1xf32>
      %574 = arith.cmpf ogt, %572, %573 : vector<8x1xf32>
      %cst_183 = arith.constant 9.99999993E-9 : f32
      %575 = vector.broadcast %cst_183 : f32 to vector<8x1xf32>
      %576 = arith.maximumf %572, %575 : vector<8x1xf32>
      %577 = arith.divf %560, %576 : vector<8x1xf32>
      %cst_184 = arith.constant 0.000000e+00 : f32
      %578 = vector.broadcast %cst_184 : f32 to vector<8x1xf32>
      %579 = arith.select %574, %577, %578 : vector<8x1xi1>, vector<8x1xf32>
      %580 = vector.broadcast %579 : vector<8x1xf32> to vector<8x10xf32>
      %581 = arith.mulf %580, %566 : vector<8x10xf32>
      %582 = arith.addf %553, %581 : vector<8x10xf32>
      %583 = vector.broadcast %579 : vector<8x1xf32> to vector<8x10xf32>
      %584 = arith.mulf %583, %569 : vector<8x10xf32>
      %585 = arith.subf %556, %584 : vector<8x10xf32>
      %586 = arith.mulf %67, %585 : vector<8x10xf32>
      %587 = arith.mulf %585, %586 : vector<8x10xf32>
      %cst_185 = arith.constant dense<0.000000e+00> : vector<8xf32>
      %588 = vector.multi_reduction <add>, %587, %cst_185 [1] : vector<8x10xf32> to vector<8xf32>
      %589 = vector.shape_cast %588 : vector<8xf32> to vector<8x1xf32>
      %cst_186 = arith.constant 9.99999993E-9 : f32
      %590 = vector.broadcast %cst_186 : f32 to vector<8x1xf32>
      %591 = arith.maximumf %560, %590 : vector<8x1xf32>
      %592 = arith.divf %589, %591 : vector<8x1xf32>
      %593 = vector.broadcast %592 : vector<8x1xf32> to vector<8x10xf32>
      %594 = arith.mulf %593, %566 : vector<8x10xf32>
      %595 = arith.addf %586, %594 : vector<8x10xf32>
      %c7_i32_187 = arith.constant 7 : i32
      %596 = tpu.concatenate %595, %595, %595, %595, %595, %595, %595, %595, %595, %595 in 1 : vector<8x10xf32>, vector<8x10xf32>, vector<8x10xf32>, vector<8x10xf32>, vector<8x10xf32>, vector<8x10xf32>, vector<8x10xf32>, vector<8x10xf32>, vector<8x10xf32>, vector<8x10xf32> -> vector<8x100xf32>
      %597 = arith.mulf %63, %596 : vector<8x100xf32>
      %cst_188 = arith.constant dense<0.000000e+00> : vector<8x10xf32>
      %598 = tpu.matmul %597, %21, %cst_188 {dimension_numbers = #tpu.dot_dimension_numbers<[1], [0], [0], [1], [0, 0, 1, 1], [], []>} : vector<8x100xf32>, vector<100x10xf32>, vector<8x10xf32> -> vector<8x10xf32>
      %599 = arith.mulf %595, %598 : vector<8x10xf32>
      %cst_189 = arith.constant dense<0.000000e+00> : vector<8xf32>
      %600 = vector.multi_reduction <add>, %599, %cst_189 [1] : vector<8x10xf32> to vector<8xf32>
      %601 = vector.shape_cast %600 : vector<8xf32> to vector<8x1xf32>
      %cst_190 = arith.constant 9.99999993E-9 : f32
      %602 = vector.broadcast %cst_190 : f32 to vector<8x1xf32>
      %603 = arith.cmpf ogt, %601, %602 : vector<8x1xf32>
      %cst_191 = arith.constant 9.99999993E-9 : f32
      %604 = vector.broadcast %cst_191 : f32 to vector<8x1xf32>
      %605 = arith.maximumf %601, %604 : vector<8x1xf32>
      %606 = arith.divf %589, %605 : vector<8x1xf32>
      %cst_192 = arith.constant 0.000000e+00 : f32
      %607 = vector.broadcast %cst_192 : f32 to vector<8x1xf32>
      %608 = arith.select %603, %606, %607 : vector<8x1xi1>, vector<8x1xf32>
      %609 = vector.broadcast %608 : vector<8x1xf32> to vector<8x10xf32>
      %610 = arith.mulf %609, %595 : vector<8x10xf32>
      %611 = arith.addf %582, %610 : vector<8x10xf32>
      %612 = vector.broadcast %608 : vector<8x1xf32> to vector<8x10xf32>
      %613 = arith.mulf %612, %598 : vector<8x10xf32>
      %614 = arith.subf %585, %613 : vector<8x10xf32>
      %615 = arith.mulf %67, %614 : vector<8x10xf32>
      %616 = arith.mulf %614, %615 : vector<8x10xf32>
      %cst_193 = arith.constant dense<0.000000e+00> : vector<8xf32>
      %617 = vector.multi_reduction <add>, %616, %cst_193 [1] : vector<8x10xf32> to vector<8xf32>
      %618 = vector.shape_cast %617 : vector<8xf32> to vector<8x1xf32>
      %cst_194 = arith.constant 9.99999993E-9 : f32
      %619 = vector.broadcast %cst_194 : f32 to vector<8x1xf32>
      %620 = arith.maximumf %589, %619 : vector<8x1xf32>
      %621 = arith.divf %618, %620 : vector<8x1xf32>
      %622 = vector.broadcast %621 : vector<8x1xf32> to vector<8x10xf32>
      %623 = arith.mulf %622, %595 : vector<8x10xf32>
      %624 = arith.addf %615, %623 : vector<8x10xf32>
      %cst_195 = arith.constant dense<0.000000e+00> : vector<8x200xf32>
      %625 = tpu.matmul %611, %19, %cst_195 {dimension_numbers = #tpu.dot_dimension_numbers<[1], [0], [0], [1], [0, 0, 1, 1], [], []>} : vector<8x10xf32>, vector<10x200xf32>, vector<8x200xf32> -> vector<8x200xf32>
      %cst_196 = arith.constant 0.000000e+00 : f32
      %626 = vector.broadcast %cst_196 : f32 to vector<8x200xf32>
      %627 = arith.subf %626, %54 : vector<8x200xf32>
      %628 = arith.subf %627, %625 : vector<8x200xf32>
      %629 = arith.mulf %45, %625 : vector<8x200xf32>
      %630 = arith.addf %383, %629 : vector<8x200xf32>
      %cst_197 = arith.constant 0.000000e+00 : f32
      %631 = vector.broadcast %cst_197 : f32 to vector<8x200xf32>
      %632 = arith.cmpf olt, %628, %631 : vector<8x200xf32>
      %cst_198 = arith.constant -1.000000e+00 : f32
      %633 = vector.broadcast %cst_198 : f32 to vector<8x200xf32>
      %634 = arith.select %632, %628, %633 : vector<8x200xi1>, vector<8x200xf32>
      %635 = tpu.reciprocal %634 {approx = true} : vector<8x200xf32> -> vector<8x200xf32>
      %cst_199 = arith.constant 0.000000e+00 : f32
      %636 = vector.broadcast %cst_199 : f32 to vector<8x200xf32>
      %637 = arith.cmpf olt, %630, %636 : vector<8x200xf32>
      %cst_200 = arith.constant -1.000000e+00 : f32
      %638 = vector.broadcast %cst_200 : f32 to vector<8x200xf32>
      %639 = arith.select %637, %630, %638 : vector<8x200xi1>, vector<8x200xf32>
      %640 = tpu.reciprocal %639 {approx = true} : vector<8x200xf32> -> vector<8x200xf32>
      %cst_201 = arith.constant 0.000000e+00 : f32
      %641 = vector.broadcast %cst_201 : f32 to vector<8x200xf32>
      %642 = arith.cmpf olt, %628, %641 : vector<8x200xf32>
      %cst_202 = arith.constant 0.000000e+00 : f32
      %643 = vector.broadcast %cst_202 : f32 to vector<8x200xf32>
      %644 = arith.subf %643, %arg17 : vector<8x200xf32>
      %645 = arith.mulf %644, %635 : vector<8x200xf32>
      %cst_203 = arith.constant 1.000000e+30 : f32
      %646 = vector.broadcast %cst_203 : f32 to vector<8x200xf32>
      %647 = arith.select %642, %645, %646 : vector<8x200xi1>, vector<8x200xf32>
      %cst_204 = arith.constant 0.000000e+00 : f32
      %648 = vector.broadcast %cst_204 : f32 to vector<8x200xf32>
      %649 = arith.cmpf olt, %630, %648 : vector<8x200xf32>
      %cst_205 = arith.constant 0.000000e+00 : f32
      %650 = vector.broadcast %cst_205 : f32 to vector<8x200xf32>
      %651 = arith.subf %650, %arg18 : vector<8x200xf32>
      %652 = arith.mulf %651, %640 : vector<8x200xf32>
      %cst_206 = arith.constant 1.000000e+30 : f32
      %653 = vector.broadcast %cst_206 : f32 to vector<8x200xf32>
      %654 = arith.select %649, %652, %653 : vector<8x200xi1>, vector<8x200xf32>
      %cst_207 = arith.constant dense<0x7F800000> : vector<8xf32>
      %655 = vector.multi_reduction <minimumf>, %647, %cst_207 [1] : vector<8x200xf32> to vector<8xf32>
      %656 = vector.shape_cast %655 : vector<8xf32> to vector<8x1xf32>
      %cst_208 = arith.constant dense<0x7F800000> : vector<8xf32>
      %657 = vector.multi_reduction <minimumf>, %654, %cst_208 [1] : vector<8x200xf32> to vector<8xf32>
      %658 = vector.shape_cast %657 : vector<8xf32> to vector<8x1xf32>
      %659 = arith.minimumf %656, %658 : vector<8x1xf32>
      %cst_209 = arith.constant 9.900000e-01 : f32
      %660 = vector.broadcast %cst_209 : f32 to vector<8x1xf32>
      %661 = arith.mulf %660, %659 : vector<8x1xf32>
      %cst_210 = arith.constant 1.000000e+00 : f32
      %662 = vector.broadcast %cst_210 : f32 to vector<8x1xf32>
      %663 = arith.minimumf %662, %661 : vector<8x1xf32>
      %664 = vector.broadcast %663 : vector<8x1xf32> to vector<8x10xf32>
      %665 = arith.mulf %664, %611 : vector<8x10xf32>
      %666 = arith.addf %arg16, %665 : vector<8x10xf32>
      %667 = vector.broadcast %663 : vector<8x1xf32> to vector<8x200xf32>
      %668 = arith.mulf %667, %628 : vector<8x200xf32>
      %669 = arith.addf %arg17, %668 : vector<8x200xf32>
      %670 = vector.broadcast %663 : vector<8x1xf32> to vector<8x200xf32>
      %671 = arith.mulf %670, %630 : vector<8x200xf32>
      %672 = arith.addf %arg18, %671 : vector<8x200xf32>
      scf.yield %666, %669, %672 : vector<8x10xf32>, vector<8x200xf32>, vector<8x200xf32>
    }
    %cst_31 = arith.constant dense<0xFF800000> : vector<8xf32>
    %28 = vector.multi_reduction <maximumf>, %27#0, %cst_31 [1] : vector<8x10xf32> to vector<8xf32>
    %29 = vector.shape_cast %28 : vector<8xf32> to vector<8x1xf32>
    %30 = vector.broadcast %29 : vector<8x1xf32> to vector<8x10xf32>
    %31 = arith.subf %27#0, %30 : vector<8x10xf32>
    %32 = math.exp %31 : vector<8x10xf32>
    %cst_32 = arith.constant dense<0.000000e+00> : vector<8xf32>
    %33 = vector.multi_reduction <add>, %32, %cst_32 [1] : vector<8x10xf32> to vector<8xf32>
    %34 = vector.shape_cast %33 : vector<8xf32> to vector<8x1xf32>
    %35 = math.log %34 : vector<8x1xf32>
    %36 = arith.addf %29, %35 : vector<8x1xf32>
    %37 = vector.broadcast %36 : vector<8x1xf32> to vector<8x10xf32>
    %38 = arith.subf %27#0, %37 : vector<8x10xf32>
    %c0_33 = arith.constant 0 : index
    %c0_34 = arith.constant 0 : index
    %39 = vector.load %arg14[%c0_33, %c0_34] : memref<8x10xf32, #tpu.memory_space<vmem>>, vector<8x10xf32>
    tpu.vector_store %arg14[%c0_33, %c0_34], %38 {strides = array<i32>} : memref<8x10xf32, #tpu.memory_space<vmem>>, vector<8x10xf32>,
    return
  }
  func.func @transform_0(%arg0: i32) -> (i32, i32) {
    %c0_i32 = arith.constant 0 : i32
    %c0_i32_0 = arith.constant 0 : i32
    return %arg0, %c0_i32 : i32, i32
  }
  func.func @transform_1(%arg0: i32) -> (i32, i32) {
    %c0_i32 = arith.constant 0 : i32
    %c0_i32_0 = arith.constant 0 : i32
    %c0_i32_1 = arith.constant 0 : i32
    return %c0_i32, %c0_i32_0 : i32, i32
  }
  func.func @transform_2(%arg0: i32) -> (i32, i32) {
    %c0_i32 = arith.constant 0 : i32
    %c0_i32_0 = arith.constant 0 : i32
    %c0_i32_1 = arith.constant 0 : i32
    return %c0_i32, %c0_i32_0 : i32, i32
  }
  func.func @transform_3(%arg0: i32) -> (i32, i32) {
    %c0_i32 = arith.constant 0 : i32
    %c0_i32_0 = arith.constant 0 : i32
    %c0_i32_1 = arith.constant 0 : i32
    return %c0_i32, %c0_i32_0 : i32, i32
  }
  func.func @transform_4(%arg0: i32) -> (i32, i32) {
    %c0_i32 = arith.constant 0 : i32
    %c0_i32_0 = arith.constant 0 : i32
    %c0_i32_1 = arith.constant 0 : i32
    return %c0_i32, %c0_i32_0 : i32, i32
  }
  func.func @transform_5(%arg0: i32) -> (i32, i32) {
    %c0_i32 = arith.constant 0 : i32
    %c0_i32_0 = arith.constant 0 : i32
    %c0_i32_1 = arith.constant 0 : i32
    return %c0_i32, %c0_i32_0 : i32, i32
  }
  func.func @transform_6(%arg0: i32) -> (i32, i32) {
    %c0_i32 = arith.constant 0 : i32
    %c0_i32_0 = arith.constant 0 : i32
    %c0_i32_1 = arith.constant 0 : i32
    return %c0_i32, %c0_i32_0 : i32, i32
  }
  func.func @transform_7(%arg0: i32) -> (i32, i32) {
    %c0_i32 = arith.constant 0 : i32
    %c0_i32_0 = arith.constant 0 : i32
    %c0_i32_1 = arith.constant 0 : i32
    return %c0_i32, %c0_i32_0 : i32, i32
  }
  func.func @transform_8(%arg0: i32) -> (i32, i32) {
    %c0_i32 = arith.constant 0 : i32
    %c0_i32_0 = arith.constant 0 : i32
    %c0_i32_1 = arith.constant 0 : i32
    return %c0_i32, %c0_i32_0 : i32, i32
  }
  func.func @transform_9(%arg0: i32) -> (i32, i32) {
    %c0_i32 = arith.constant 0 : i32
    %c0_i32_0 = arith.constant 0 : i32
    %c0_i32_1 = arith.constant 0 : i32
    return %c0_i32, %c0_i32_0 : i32, i32
  }
  func.func @transform_10(%arg0: i32) -> (i32, i32) {
    %c0_i32 = arith.constant 0 : i32
    %c0_i32_0 = arith.constant 0 : i32
    %c0_i32_1 = arith.constant 0 : i32
    return %c0_i32, %c0_i32_0 : i32, i32
  }
  func.func @transform_11(%arg0: i32) -> (i32, i32) {
    %c0_i32 = arith.constant 0 : i32
    %c0_i32_0 = arith.constant 0 : i32
    %c0_i32_1 = arith.constant 0 : i32
    return %c0_i32, %c0_i32_0 : i32, i32
  }
  func.func @transform_12(%arg0: i32) -> (i32, i32) {
    %c0_i32 = arith.constant 0 : i32
    %c0_i32_0 = arith.constant 0 : i32
    %c0_i32_1 = arith.constant 0 : i32
    return %c0_i32, %c0_i32_0 : i32, i32
  }
  func.func @transform_13(%arg0: i32) -> (i32, i32) {
    %c0_i32 = arith.constant 0 : i32
    %c0_i32_0 = arith.constant 0 : i32
    return %arg0, %c0_i32 : i32, i32
  }
}

</mosaic_0001>

<llo_original>
// kernel: optnet_forward.1
$region0: #{optnet_forward.1}
  #allocation0 [shape = 'u32[]', space=smem, size = 0x4, offset = 0x4, fixed_abs, tag = 'smem constant byte address 0x4 - core index']
  #allocation1 [shape = 'u32[144,128]{1,0:T(1,128)}', space=vmem, size = 0x12000, scoped, tag = 'internal scratch']
  %s0 = inlined_call_operand.vmem [shape: f32[8,784], index: 0, kind: input, shape index: {}]
  %s1 = inlined_call_operand.vmem [shape: f32[784,32], index: 1, kind: input, shape index: {}]
  %s2 = inlined_call_operand.vmem [shape: f32[1,32], index: 2, kind: input, shape index: {}]
  %s3 = inlined_call_operand.vmem [shape: f32[32,10], index: 3, kind: input, shape index: {}]
  %s4 = inlined_call_operand.vmem [shape: f32[1,10], index: 4, kind: input, shape index: {}]
  %s5 = inlined_call_operand.vmem [shape: f32[10,210], index: 5, kind: input, shape index: {}]
  %s6 = inlined_call_operand.vmem [shape: f32[1,100], index: 6, kind: input, shape index: {}]
  %s7 = inlined_call_operand.vmem [shape: f32[1,10], index: 7, kind: input, shape index: {}]
  %s8 = inlined_call_operand.vmem [shape: f32[200,10], index: 8, kind: input, shape index: {}]
  %s9 = inlined_call_operand.vmem [shape: f32[10,200], index: 9, kind: input, shape index: {}]
  %s10 = inlined_call_operand.vmem [shape: f32[200,110], index: 10, kind: input, shape index: {}]
  %s11 = inlined_call_operand.vmem [shape: f32[100,10], index: 11, kind: input, shape index: {}]
  %s12 = inlined_call_operand.vmem [shape: f32[1,200], index: 12, kind: input, shape index: {}]
  %s13 = inlined_call_operand.vmem [shape: f32[8,10], index: 13, kind: output, shape index: {}]
  %s14 = sld [smem:[#allocation0]]
  $region69: #{optnet_forward.1} parent=0
    _
  %s16 = ssub.s32 1, %s14
  %s17 = scalar_select 0, %s16, %s14
  // Predicated region
  $region2: #{optnet_forward.1} parent=0 // pred_check
    _
  $region3: #{optnet_forward.1} parent=0 // pred_check_branch
    %19 = sbr.rel (0) target = $region5
  $region4: #{optnet_forward.1} parent=0 // pred_region
    _
  $region5: #{optnet_forward.1} parent=0 // pred_fallthru
    _
  // Predicated region
  $region6: #{optnet_forward.1} parent=0 // pred_check
    _
  $region7: #{optnet_forward.1} parent=0 // pred_check_branch
    %21 = sbr.rel (0) target = $region9
  $region8: #{optnet_forward.1} parent=0 // pred_region
    _
  $region9: #{optnet_forward.1} parent=0 // pred_fallthru
    _
  // Predicated region
  $region10: #{optnet_forward.1} parent=0 // pred_check
    _
  $region11: #{optnet_forward.1} parent=0 // pred_check_branch
    %23 = sbr.rel (0) target = $region13
  $region12: #{optnet_forward.1} parent=0 // pred_region
    _
  $region13: #{optnet_forward.1} parent=0 // pred_fallthru
    _
  // Predicated region
  $region14: #{optnet_forward.1} parent=0 // pred_check
    _
  $region15: #{optnet_forward.1} parent=0 // pred_check_branch
    %25 = sbr.rel (0) target = $region17
  $region16: #{optnet_forward.1} parent=0 // pred_region
    _
  $region17: #{optnet_forward.1} parent=0 // pred_fallthru
    _
  // Predicated region
  $region18: #{optnet_forward.1} parent=0 // pred_check
    _
  $region19: #{optnet_forward.1} parent=0 // pred_check_branch
    %27 = sbr.rel (0) target = $region21
  $region20: #{optnet_forward.1} parent=0 // pred_region
    _
  $region21: #{optnet_forward.1} parent=0 // pred_fallthru
    _
  // Predicated region
  $region22: #{optnet_forward.1} parent=0 // pred_check
    _
  $region23: #{optnet_forward.1} parent=0 // pred_check_branch
    %29 = sbr.rel (0) target = $region25
  $region24: #{optnet_forward.1} parent=0 // pred_region
    _
  $region25: #{optnet_forward.1} parent=0 // pred_fallthru
    _
  // Predicated region
  $region26: #{optnet_forward.1} parent=0 // pred_check
    _
  $region27: #{optnet_forward.1} parent=0 // pred_check_branch
    %31 = sbr.rel (0) target = $region29
  $region28: #{optnet_forward.1} parent=0 // pred_region
    _
  $region29: #{optnet_forward.1} parent=0 // pred_fallthru
    _
  // Predicated region
  $region30: #{optnet_forward.1} parent=0 // pred_check
    _
  $region31: #{optnet_forward.1} parent=0 // pred_check_branch
    %33 = sbr.rel (0) target = $region33
  $region32: #{optnet_forward.1} parent=0 // pred_region
    _
  $region33: #{optnet_forward.1} parent=0 // pred_fallthru
    _
  // Predicated region
  $region34: #{optnet_forward.1} parent=0 // pred_check
    _
  $region35: #{optnet_forward.1} parent=0 // pred_check_branch
    %35 = sbr.rel (0) target = $region37
  $region36: #{optnet_forward.1} parent=0 // pred_region
    _
  $region37: #{optnet_forward.1} parent=0 // pred_fallthru
    _
  // Predicated region
  $region38: #{optnet_forward.1} parent=0 // pred_check
    _
  $region39: #{optnet_forward.1} parent=0 // pred_check_branch
    %37 = sbr.rel (0) target = $region41
  $region40: #{optnet_forward.1} parent=0 // pred_region
    _
  $region41: #{optnet_forward.1} parent=0 // pred_fallthru
    _
  // Predicated region
  $region42: #{optnet_forward.1} parent=0 // pred_check
    _
  $region43: #{optnet_forward.1} parent=0 // pred_check_branch
    %39 = sbr.rel (0) target = $region45
  $region44: #{optnet_forward.1} parent=0 // pred_region
    _
  $region45: #{optnet_forward.1} parent=0 // pred_fallthru
    _
  // Predicated region
  $region46: #{optnet_forward.1} parent=0 // pred_check
    _
  $region47: #{optnet_forward.1} parent=0 // pred_check_branch
    %41 = sbr.rel (0) target = $region49
  $region48: #{optnet_forward.1} parent=0 // pred_region
    _
  $region49: #{optnet_forward.1} parent=0 // pred_fallthru
    _
  // Predicated region
  $region50: #{optnet_forward.1} parent=0 // pred_check
    _
  $region51: #{optnet_forward.1} parent=0 // pred_check_branch
    %43 = sbr.rel (0) target = $region53
  $region52: #{optnet_forward.1} parent=0 // pred_region
    _
  $region53: #{optnet_forward.1} parent=0 // pred_fallthru
    _
  %v44 = vld [vmem:[%s0] sm:$0xff]
  %v45 = vld [vmem:[%s0 + $0x8] sm:$0xff]
  %v46 = vld [vmem:[%s0 + $0x10] sm:$0xff]
  %v47 = vld [vmem:[%s0 + $0x18] sm:$0xff]
  %v48 = vld [vmem:[%s0 + $0x20] sm:$0xff]
  %v49 = vld [vmem:[%s0 + $0x28] sm:$0xff]
  %v50 = vld [vmem:[%s0 + $0x30] sm:$0xff]
  %v51 = vld [vmem:[%s1] sm:$0xff]
  %v52 = vld [vmem:[%s1 + $0x8] sm:$0xff]
  %v53 = vld [vmem:[%s1 + $0x10] sm:$0xff]
  %v54 = vld [vmem:[%s1 + $0x18] sm:$0xff]
  %v55 = vld [vmem:[%s1 + $0x20] sm:$0xff]
  %v56 = vld [vmem:[%s1 + $0x28] sm:$0xff]
  %v57 = vld [vmem:[%s1 + $0x30] sm:$0xff]
  %v58 = vld [vmem:[%s1 + $0x38] sm:$0xff]
  %v59 = vld [vmem:[%s1 + $0x40] sm:$0xff]
  %v60 = vld [vmem:[%s1 + $0x48] sm:$0xff]
  %v61 = vld [vmem:[%s1 + $0x50] sm:$0xff]
  %v62 = vld [vmem:[%s1 + $0x58] sm:$0xff]
  %v63 = vld [vmem:[%s1 + $0x60] sm:$0xff]
  %v64 = vld [vmem:[%s1 + $0x68] sm:$0xff]
  %v65 = vld [vmem:[%s1 + $0x70] sm:$0xff]
  %v66 = vld [vmem:[%s1 + $0x78] sm:$0xff]
  %v67 = vld [vmem:[%s1 + $0x80] sm:$0xff]
  %v68 = vld [vmem:[%s1 + $0x88] sm:$0xff]
  %v69 = vld [vmem:[%s1 + $0x90] sm:$0xff]
  %v70 = vld [vmem:[%s1 + $0x98] sm:$0xff]
  %v71 = vld [vmem:[%s1 + $0xa0] sm:$0xff]
  %v72 = vld [vmem:[%s1 + $0xa8] sm:$0xff]
  %v73 = vld [vmem:[%s1 + $0xb0] sm:$0xff]
  %v74 = vld [vmem:[%s1 + $0xb8] sm:$0xff]
  %v75 = vld [vmem:[%s1 + $0xc0] sm:$0xff]
  %v76 = vld [vmem:[%s1 + $0xc8] sm:$0xff]
  %v77 = vld [vmem:[%s1 + $0xd0] sm:$0xff]
  %v78 = vld [vmem:[%s1 + $0xd8] sm:$0xff]
  %v79 = vld [vmem:[%s1 + $0xe0] sm:$0xff]
  %v80 = vld [vmem:[%s1 + $0xe8] sm:$0xff]
  %v81 = vld [vmem:[%s1 + $0xf0] sm:$0xff]
  %v82 = vld [vmem:[%s1 + $0xf8] sm:$0xff]
  %v83 = vld [vmem:[%s1 + $0x100] sm:$0xff]
  %v84 = vld [vmem:[%s1 + $0x108] sm:$0xff]
  %v85 = vld [vmem:[%s1 + $0x110] sm:$0xff]
  %v86 = vld [vmem:[%s1 + $0x118] sm:$0xff]
  %v87 = vld [vmem:[%s1 + $0x120] sm:$0xff]
  %v88 = vld [vmem:[%s1 + $0x128] sm:$0xff]
  %v89 = vld [vmem:[%s1 + $0x130] sm:$0xff]
  %v90 = vld [vmem:[%s1 + $0x138] sm:$0xff]
  %v91 = vld [vmem:[%s1 + $0x140] sm:$0xff]
  %v92 = vld [vmem:[%s1 + $0x148] sm:$0xff]
  %v93 = vld [vmem:[%s1 + $0x150] sm:$0xff]
  %v94 = vld [vmem:[%s1 + $0x158] sm:$0xff]
  %v95 = vld [vmem:[%s1 + $0x160] sm:$0xff]
  %v96 = vld [vmem:[%s1 + $0x168] sm:$0xff]
  %v97 = vld [vmem:[%s1 + $0x170] sm:$0xff]
  %v98 = vld [vmem:[%s1 + $0x178] sm:$0xff]
  %v99 = vld [vmem:[%s1 + $0x180] sm:$0xff]
  %v100 = vld [vmem:[%s1 + $0x188] sm:$0xff]
  %v101 = vld [vmem:[%s1 + $0x190] sm:$0xff]
  %v102 = vld [vmem:[%s1 + $0x198] sm:$0xff]
  %v103 = vld [vmem:[%s1 + $0x1a0] sm:$0xff]
  %v104 = vld [vmem:[%s1 + $0x1a8] sm:$0xff]
  %v105 = vld [vmem:[%s1 + $0x1b0] sm:$0xff]
  %v106 = vld [vmem:[%s1 + $0x1b8] sm:$0xff]
  %v107 = vld [vmem:[%s1 + $0x1c0] sm:$0xff]
  %v108 = vld [vmem:[%s1 + $0x1c8] sm:$0xff]
  %v109 = vld [vmem:[%s1 + $0x1d0] sm:$0xff]
  %v110 = vld [vmem:[%s1 + $0x1d8] sm:$0xff]
  %v111 = vld [vmem:[%s1 + $0x1e0] sm:$0xff]
  %v112 = vld [vmem:[%s1 + $0x1e8] sm:$0xff]
  %v113 = vld [vmem:[%s1 + $0x1f0] sm:$0xff]
  %v114 = vld [vmem:[%s1 + $0x1f8] sm:$0xff]
  %v115 = vld [vmem:[%s1 + $0x200] sm:$0xff]
  %v116 = vld [vmem:[%s1 + $0x208] sm:$0xff]
  %v117 = vld [vmem:[%s1 + $0x210] sm:$0xff]
  %v118 = vld [vmem:[%s1 + $0x218] sm:$0xff]
  %v119 = vld [vmem:[%s1 + $0x220] sm:$0xff]
  %v120 = vld [vmem:[%s1 + $0x228] sm:$0xff]
  %v121 = vld [vmem:[%s1 + $0x230] sm:$0xff]
  %v122 = vld [vmem:[%s1 + $0x238] sm:$0xff]
  %v123 = vld [vmem:[%s1 + $0x240] sm:$0xff]
  %v124 = vld [vmem:[%s1 + $0x248] sm:$0xff]
  %v125 = vld [vmem:[%s1 + $0x250] sm:$0xff]
  %v126 = vld [vmem:[%s1 + $0x258] sm:$0xff]
  %v127 = vld [vmem:[%s1 + $0x260] sm:$0xff]
  %v128 = vld [vmem:[%s1 + $0x268] sm:$0xff]
  %v129 = vld [vmem:[%s1 + $0x270] sm:$0xff]
  %v130 = vld [vmem:[%s1 + $0x278] sm:$0xff]
  %v131 = vld [vmem:[%s1 + $0x280] sm:$0xff]
  %v132 = vld [vmem:[%s1 + $0x288] sm:$0xff]
  %v133 = vld [vmem:[%s1 + $0x290] sm:$0xff]
  %v134 = vld [vmem:[%s1 + $0x298] sm:$0xff]
  %v135 = vld [vmem:[%s1 + $0x2a0] sm:$0xff]
  %v136 = vld [vmem:[%s1 + $0x2a8] sm:$0xff]
  %v137 = vld [vmem:[%s1 + $0x2b0] sm:$0xff]
  %v138 = vld [vmem:[%s1 + $0x2b8] sm:$0xff]
  %v139 = vld [vmem:[%s1 + $0x2c0] sm:$0xff]
  %v140 = vld [vmem:[%s1 + $0x2c8] sm:$0xff]
  %v141 = vld [vmem:[%s1 + $0x2d0] sm:$0xff]
  %v142 = vld [vmem:[%s1 + $0x2d8] sm:$0xff]
  %v143 = vld [vmem:[%s1 + $0x2e0] sm:$0xff]
  %v144 = vld [vmem:[%s1 + $0x2e8] sm:$0xff]
  %v145 = vld [vmem:[%s1 + $0x2f0] sm:$0xff]
  %v146 = vld [vmem:[%s1 + $0x2f8] sm:$0xff]
  %v147 = vld [vmem:[%s1 + $0x300] sm:$0xff]
  %v148 = vld [vmem:[%s1 + $0x308] sm:$0xff]
  %v149 = vld [vmem:[%s2] sm:$0x1]
  %v151 = vlaneseq
  %v152 = vshrl.u32 %v151, 7
  %v153 = vsub.s32 0, %v152
  %v154 = vrot.slane %v149, %v153
  %vm156 = vcmask 130048
  %v158 = vsel %vm156, %v50, 0
  %160 = vmatprep.subr.mxu0 0.0
  %161 = vmatpush1.msra.mxu0 %v51
  %162 = vmatprep.subr.mxu0 0.0
  %163 = vmatpush1.msra.mxu0 %v52
  %164 = vmatprep.subr.mxu0 0.0
  %165 = vmatpush1.msra.mxu0 %v53
  %166 = vmatprep.subr.mxu0 0.0
  %167 = vmatpush1.msra.mxu0 %v54
  %168 = vmatprep.subr.mxu0 0.0
  %169 = vmatpush1.msra.mxu0 %v55
  %170 = vmatprep.subr.mxu0 0.0
  %171 = vmatpush1.msra.mxu0 %v56
  %172 = vmatprep.subr.mxu0 0.0
  %173 = vmatpush1.msra.mxu0 %v57
  %174 = vmatprep.subr.mxu0 0.0
  %175 = vmatpush1.msra.mxu0 %v58
  %176 = vmatprep.subr.mxu0 0.0
  %177 = vmatpush1.msra.mxu0 %v59
  %178 = vmatprep.subr.mxu0 0.0
  %179 = vmatpush1.msra.mxu0 %v60
  %180 = vmatprep.subr.mxu0 0.0
  %181 = vmatpush1.msra.mxu0 %v61
  %182 = vmatprep.subr.mxu0 0.0
  %183 = vmatpush1.msra.mxu0 %v62
  %184 = vmatprep.subr.mxu0 0.0
  %185 = vmatpush1.msra.mxu0 %v63
  %186 = vmatprep.subr.mxu0 0.0
  %187 = vmatpush1.msra.mxu0 %v64
  %188 = vmatprep.subr.mxu0 0.0
  %189 = vmatpush1.msra.mxu0 %v65
  %190 = vmatprep.subr.mxu0 0.0
  %191 = vmatpush1.msra.mxu0 %v66
  %192 = vmatprep.subr.mxu0 0.0
  %193 = vmatpush1.msra.mxu0 %v67
  %194 = vmatprep.subr.mxu0 0.0
  %195 = vmatpush1.msra.mxu0 %v68
  %196 = vmatprep.subr.mxu0 0.0
  %197 = vmatpush1.msra.mxu0 %v69
  %198 = vmatprep.subr.mxu0 0.0
  %199 = vmatpush1.msra.mxu0 %v70
  %200 = vmatprep.subr.mxu0 0.0
  %201 = vmatpush1.msra.mxu0 %v71
  %202 = vmatprep.subr.mxu0 0.0
  %203 = vmatpush1.msra.mxu0 %v72
  %204 = vmatprep.subr.mxu0 0.0
  %205 = vmatpush1.msra.mxu0 %v73
  %206 = vmatprep.subr.mxu0 0.0
  %207 = vmatpush1.msra.mxu0 %v74
  %208 = vmatprep.subr.mxu0 0.0
  %209 = vmatpush1.msra.mxu0 %v75
  %210 = vmatprep.subr.mxu0 0.0
  %211 = vmatpush1.msra.mxu0 %v76
  %212 = vmatprep.subr.mxu0 0.0
  %213 = vmatpush1.msra.mxu0 %v77
  %214 = vmatprep.subr.mxu0 0.0
  %215 = vmatpush1.msra.mxu0 %v78
  %216 = vmatprep.subr.mxu0 0.0
  %217 = vmatpush1.msra.mxu0 %v79
  %218 = vmatprep.subr.mxu0 0.0
  %219 = vmatpush1.msra.mxu0 %v80
  %220 = vmatprep.subr.mxu0 0.0
  %221 = vmatpush1.msra.mxu0 %v81
  %222 = vmatprep.subr.mxu0 0.0
  %223 = vmatpush1.msra.mxu0 %v82
  %224 = vmatprep.mubr.f32.mxu0 %v45
  %225 = vmatmul.mubr.f32.gmra.mrb[0].mxu0 %v44
  %v226 = vpop.f32.mrb[0].mxu0
  %v227 = vadd.f32 %v154, %v226
  %v228 = vpop.f32.mrb[0].mxu0
  %229 = vdwg.mxu0
  %230 = vmatprep.subr.mxu0 0.0
  %231 = vmatpush1.msra.mxu0 %v83
  %232 = vmatprep.subr.mxu0 0.0
  %233 = vmatpush1.msra.mxu0 %v84
  %234 = vmatprep.subr.mxu0 0.0
  %235 = vmatpush1.msra.mxu0 %v85
  %236 = vmatprep.subr.mxu0 0.0
  %237 = vmatpush1.msra.mxu0 %v86
  %238 = vmatprep.subr.mxu0 0.0
  %239 = vmatpush1.msra.mxu0 %v87
  %240 = vmatprep.subr.mxu0 0.0
  %241 = vmatpush1.msra.mxu0 %v88
  %242 = vmatprep.subr.mxu0 0.0
  %243 = vmatpush1.msra.mxu0 %v89
  %244 = vmatprep.subr.mxu0 0.0
  %245 = vmatpush1.msra.mxu0 %v90
  %246 = vmatprep.subr.mxu0 0.0
  %247 = vmatpush1.msra.mxu0 %v91
  %248 = vmatprep.subr.mxu0 0.0
  %249 = vmatpush1.msra.mxu0 %v92
  %250 = vmatprep.subr.mxu0 0.0
  %251 = vmatpush1.msra.mxu0 %v93
  %252 = vmatprep.subr.mxu0 0.0
  %253 = vmatpush1.msra.mxu0 %v94
  %254 = vmatprep.subr.mxu0 0.0
  %255 = vmatpush1.msra.mxu0 %v95
  %256 = vmatprep.subr.mxu0 0.0
  %257 = vmatpush1.msra.mxu0 %v96
  %258 = vmatprep.subr.mxu0 0.0
  %259 = vmatpush1.msra.mxu0 %v97
  %260 = vmatprep.subr.mxu0 0.0
  %261 = vmatpush1.msra.mxu0 %v98
  %262 = vmatprep.subr.mxu0 0.0
  %263 = vmatpush1.msra.mxu0 %v99
  %264 = vmatprep.subr.mxu0 0.0
  %265 = vmatpush1.msra.mxu0 %v100
  %266 = vmatprep.subr.mxu0 0.0
  %267 = vmatpush1.msra.mxu0 %v101
  %268 = vmatprep.subr.mxu0 0.0
  %269 = vmatpush1.msra.mxu0 %v102
  %270 = vmatprep.subr.mxu0 0.0
  %271 = vmatpush1.msra.mxu0 %v103
  %272 = vmatprep.subr.mxu0 0.0
  %273 = vmatpush1.msra.mxu0 %v104
  %274 = vmatprep.subr.mxu0 0.0
  %275 = vmatpush1.msra.mxu0 %v105
  %276 = vmatprep.subr.mxu0 0.0
  %277 = vmatpush1.msra.mxu0 %v106
  %278 = vmatprep.subr.mxu0 0.0
  %279 = vmatpush1.msra.mxu0 %v107
  %280 = vmatprep.subr.mxu0 0.0
  %281 = vmatpush1.msra.mxu0 %v108
  %282 = vmatprep.subr.mxu0 0.0
  %283 = vmatpush1.msra.mxu0 %v109
  %284 = vmatprep.subr.mxu0 0.0
  %285 = vmatpush1.msra.mxu0 %v110
  %286 = vmatprep.subr.mxu0 0.0
  %287 = vmatpush1.msra.mxu0 %v111
  %288 = vmatprep.subr.mxu0 0.0
  %289 = vmatpush1.msra.mxu0 %v112
  %290 = vmatprep.subr.mxu0 0.0
  %291 = vmatpush1.msra.mxu0 %v113
  %292 = vmatprep.subr.mxu0 0.0
  %293 = vmatpush1.msra.mxu0 %v114
  %294 = vmatprep.mubr.f32.mxu0 %v47
  %295 = vmatmul.mubr.f32.gmra.mrb[0].mxu0 %v46
  %v296 = vpop.f32.mrb[0].mxu0
  %v297 = vadd.f32 %v227, %v296
  %v298 = vpop.f32.mrb[0].mxu0
  %299 = vdwg.mxu0
  %300 = vmatprep.subr.mxu0 0.0
  %301 = vmatpush1.msra.mxu0 %v115
  %302 = vmatprep.subr.mxu0 0.0
  %303 = vmatpush1.msra.mxu0 %v116
  %304 = vmatprep.subr.mxu0 0.0
  %305 = vmatpush1.msra.mxu0 %v117
  %306 = vmatprep.subr.mxu0 0.0
  %307 = vmatpush1.msra.mxu0 %v118
  %308 = vmatprep.subr.mxu0 0.0
  %309 = vmatpush1.msra.mxu0 %v119
  %310 = vmatprep.subr.mxu0 0.0
  %311 = vmatpush1.msra.mxu0 %v120
  %312 = vmatprep.subr.mxu0 0.0
  %313 = vmatpush1.msra.mxu0 %v121
  %314 = vmatprep.subr.mxu0 0.0
  %315 = vmatpush1.msra.mxu0 %v122
  %316 = vmatprep.subr.mxu0 0.0
  %317 = vmatpush1.msra.mxu0 %v123
  %318 = vmatprep.subr.mxu0 0.0
  %319 = vmatpush1.msra.mxu0 %v124
  %320 = vmatprep.subr.mxu0 0.0
  %321 = vmatpush1.msra.mxu0 %v125
  %322 = vmatprep.subr.mxu0 0.0
  %323 = vmatpush1.msra.mxu0 %v126
  %324 = vmatprep.subr.mxu0 0.0
  %325 = vmatpush1.msra.mxu0 %v127
  %326 = vmatprep.subr.mxu0 0.0
  %327 = vmatpush1.msra.mxu0 %v128
  %328 = vmatprep.subr.mxu0 0.0
  %329 = vmatpush1.msra.mxu0 %v129
  %330 = vmatprep.subr.mxu0 0.0
  %331 = vmatpush1.msra.mxu0 %v130
  %332 = vmatprep.subr.mxu0 0.0
  %333 = vmatpush1.msra.mxu0 %v131
  %334 = vmatprep.subr.mxu0 0.0
  %335 = vmatpush1.msra.mxu0 %v132
  %336 = vmatprep.subr.mxu0 0.0
  %337 = vmatpush1.msra.mxu0 %v133
  %338 = vmatprep.subr.mxu0 0.0
  %339 = vmatpush1.msra.mxu0 %v134
  %340 = vmatprep.subr.mxu0 0.0
  %341 = vmatpush1.msra.mxu0 %v135
  %342 = vmatprep.subr.mxu0 0.0
  %343 = vmatpush1.msra.mxu0 %v136
  %344 = vmatprep.subr.mxu0 0.0
  %345 = vmatpush1.msra.mxu0 %v137
  %346 = vmatprep.subr.mxu0 0.0
  %347 = vmatpush1.msra.mxu0 %v138
  %348 = vmatprep.subr.mxu0 0.0
  %349 = vmatpush1.msra.mxu0 %v139
  %350 = vmatprep.subr.mxu0 0.0
  %351 = vmatpush1.msra.mxu0 %v140
  %352 = vmatprep.subr.mxu0 0.0
  %353 = vmatpush1.msra.mxu0 %v141
  %354 = vmatprep.subr.mxu0 0.0
  %355 = vmatpush1.msra.mxu0 %v142
  %356 = vmatprep.subr.mxu0 0.0
  %357 = vmatpush1.msra.mxu0 %v143
  %358 = vmatprep.subr.mxu0 0.0
  %359 = vmatpush1.msra.mxu0 %v144
  %360 = vmatprep.subr.mxu0 0.0
  %361 = vmatpush1.msra.mxu0 %v145
  %362 = vmatprep.subr.mxu0 0.0
  %363 = vmatpush1.msra.mxu0 %v146
  %364 = vmatprep.mubr.f32.mxu0 %v49
  %365 = vmatmul.mubr.f32.gmra.mrb[0].mxu0 %v48
  %v366 = vpop.f32.mrb[0].mxu0
  %v367 = vadd.f32 %v297, %v366
  %v368 = vpop.f32.mrb[0].mxu0
  %369 = vdwg.mxu0
  %370 = vmatprep.subr.mxu0 0.0
  %371 = vmatpush1.msra.mxu0 %v147
  %372 = vmatprep.subr.mxu0 0.0
  %373 = vmatpush1.msra.mxu0 %v148
  %374 = vmatprep.subr.mxu0 0.0
  %375 = vmatpush1.msra.mxu0 0.0
  %376 = vmatprep.subr.mxu0 0.0
  %377 = vmatpush1.msra.mxu0 0.0
  %378 = vmatprep.subr.mxu0 0.0
  %379 = vmatpush1.msra.mxu0 0.0
  %380 = vmatprep.subr.mxu0 0.0
  %381 = vmatpush1.msra.mxu0 0.0
  %382 = vmatprep.subr.mxu0 0.0
  %383 = vmatpush1.msra.mxu0 0.0
  %384 = vmatprep.subr.mxu0 0.0
  %385 = vmatpush1.msra.mxu0 0.0
  %386 = vmatprep.subr.mxu0 0.0
  %387 = vmatpush1.msra.mxu0 0.0
  %388 = vmatprep.subr.mxu0 0.0
  %389 = vmatpush1.msra.mxu0 0.0
  %390 = vmatprep.subr.mxu0 0.0
  %391 = vmatpush1.msra.mxu0 0.0
  %392 = vmatprep.subr.mxu0 0.0
  %393 = vmatpush1.msra.mxu0 0.0
  %394 = vmatprep.subr.mxu0 0.0
  %395 = vmatpush1.msra.mxu0 0.0
  %396 = vmatprep.subr.mxu0 0.0
  %397 = vmatpush1.msra.mxu0 0.0
  %398 = vmatprep.subr.mxu0 0.0
  %399 = vmatpush1.msra.mxu0 0.0
  %400 = vmatprep.subr.mxu0 0.0
  %401 = vmatpush1.msra.mxu0 0.0
  %402 = vmatprep.subr.mxu0 0.0
  %403 = vmatpush1.msra.mxu0 0.0
  %404 = vmatprep.subr.mxu0 0.0
  %405 = vmatpush1.msra.mxu0 0.0
  %406 = vmatprep.subr.mxu0 0.0
  %407 = vmatpush1.msra.mxu0 0.0
  %408 = vmatprep.subr.mxu0 0.0
  %409 = vmatpush1.msra.mxu0 0.0
  %410 = vmatprep.subr.mxu0 0.0
  %411 = vmatpush1.msra.mxu0 0.0
  %412 = vmatprep.subr.mxu0 0.0
  %413 = vmatpush1.msra.mxu0 0.0
  %414 = vmatprep.subr.mxu0 0.0
  %415 = vmatpush1.msra.mxu0 0.0
  %416 = vmatprep.subr.mxu0 0.0
  %417 = vmatpush1.msra.mxu0 0.0
  %418 = vmatprep.subr.mxu0 0.0
  %419 = vmatpush1.msra.mxu0 0.0
  %420 = vmatprep.subr.mxu0 0.0
  %421 = vmatpush1.msra.mxu0 0.0
  %422 = vmatprep.subr.mxu0 0.0
  %423 = vmatpush1.msra.mxu0 0.0
  %424 = vmatprep.subr.mxu0 0.0
  %425 = vmatpush1.msra.mxu0 0.0
  %426 = vmatprep.subr.mxu0 0.0
  %427 = vmatpush1.msra.mxu0 0.0
  %428 = vmatprep.subr.mxu0 0.0
  %429 = vmatpush1.msra.mxu0 0.0
  %430 = vmatprep.subr.mxu0 0.0
  %431 = vmatpush1.msra.mxu0 0.0
  %432 = vmatprep.subr.mxu0 0.0
  %433 = vmatpush1.msra.mxu0 0.0
  %434 = vmatprep.mubr.f32.mxu0 0.0
  %435 = vmatmul.mubr.f32.gmra.mrb[0].mxu0 %v158
  %v436 = vpop.f32.mrb[0].mxu0
  %v437 = vadd.f32 %v367, %v436
  %v438 = vpop.f32.mrb[0].mxu0
  %439 = vdwg.mxu0
  %v440 = vmax.f32 %v437, 0.0
  %v441 = vld [vmem:[%s3] sm:$0xff]
  %v442 = vld [vmem:[%s3 + $0x8] sm:$0xff]
  %v443 = vld [vmem:[%s3 + $0x10] sm:$0xff]
  %v444 = vld [vmem:[%s3 + $0x18] sm:$0xff]
  %v445 = vld [vmem:[%s4] sm:$0x1]
  %v447 = vlaneseq
  %v448 = vshrl.u32 %v447, 7
  %v449 = vsub.s32 0, %v448
  %v450 = vrot.slane %v445, %v449
  %vm452 = vcmask 261120
  %v454 = vsel %vm452, %v440, 0
  %456 = vmatprep.subr.mxu0 0.0
  %457 = vmatpush1.msra.mxu0 %v441
  %458 = vmatprep.subr.mxu0 0.0
  %459 = vmatpush1.msra.mxu0 %v442
  %460 = vmatprep.subr.mxu0 0.0
  %461 = vmatpush1.msra.mxu0 %v443
  %462 = vmatprep.subr.mxu0 0.0
  %463 = vmatpush1.msra.mxu0 %v444
  %464 = vmatprep.subr.mxu0 0.0
  %465 = vmatpush1.msra.mxu0 0.0
  %466 = vmatprep.subr.mxu0 0.0
  %467 = vmatpush1.msra.mxu0 0.0
  %468 = vmatprep.subr.mxu0 0.0
  %469 = vmatpush1.msra.mxu0 0.0
  %470 = vmatprep.subr.mxu0 0.0
  %471 = vmatpush1.msra.mxu0 0.0
  %472 = vmatprep.subr.mxu0 0.0
  %473 = vmatpush1.msra.mxu0 0.0
  %474 = vmatprep.subr.mxu0 0.0
  %475 = vmatpush1.msra.mxu0 0.0
  %476 = vmatprep.subr.mxu0 0.0
  %477 = vmatpush1.msra.mxu0 0.0
  %478 = vmatprep.subr.mxu0 0.0
  %479 = vmatpush1.msra.mxu0 0.0
  %480 = vmatprep.subr.mxu0 0.0
  %481 = vmatpush1.msra.mxu0 0.0
  %482 = vmatprep.subr.mxu0 0.0
  %483 = vmatpush1.msra.mxu0 0.0
  %484 = vmatprep.subr.mxu0 0.0
  %485 = vmatpush1.msra.mxu0 0.0
  %486 = vmatprep.subr.mxu0 0.0
  %487 = vmatpush1.msra.mxu0 0.0
  %488 = vmatprep.subr.mxu0 0.0
  %489 = vmatpush1.msra.mxu0 0.0
  %490 = vmatprep.subr.mxu0 0.0
  %491 = vmatpush1.msra.mxu0 0.0
  %492 = vmatprep.subr.mxu0 0.0
  %493 = vmatpush1.msra.mxu0 0.0
  %494 = vmatprep.subr.mxu0 0.0
  %495 = vmatpush1.msra.mxu0 0.0
  %496 = vmatprep.subr.mxu0 0.0
  %497 = vmatpush1.msra.mxu0 0.0
  %498 = vmatprep.subr.mxu0 0.0
  %499 = vmatpush1.msra.mxu0 0.0
  %500 = vmatprep.subr.mxu0 0.0
  %501 = vmatpush1.msra.mxu0 0.0
  %502 = vmatprep.subr.mxu0 0.0
  %503 = vmatpush1.msra.mxu0 0.0
  %504 = vmatprep.subr.mxu0 0.0
  %505 = vmatpush1.msra.mxu0 0.0
  %506 = vmatprep.subr.mxu0 0.0
  %507 = vmatpush1.msra.mxu0 0.0
  %508 = vmatprep.subr.mxu0 0.0
  %509 = vmatpush1.msra.mxu0 0.0
  %510 = vmatprep.subr.mxu0 0.0
  %511 = vmatpush1.msra.mxu0 0.0
  %512 = vmatprep.subr.mxu0 0.0
  %513 = vmatpush1.msra.mxu0 0.0
  %514 = vmatprep.subr.mxu0 0.0
  %515 = vmatpush1.msra.mxu0 0.0
  %516 = vmatprep.subr.mxu0 0.0
  %517 = vmatpush1.msra.mxu0 0.0
  %518 = vmatprep.subr.mxu0 0.0
  %519 = vmatpush1.msra.mxu0 0.0
  %520 = vmatprep.mubr.f32.mxu0 0.0
  %521 = vmatmul.mubr.f32.gmra.mrb[0].mxu0 %v454
  %v522 = vpop.f32.mrb[0].mxu0
  %v523 = vadd.f32 %v450, %v522
  %v524 = vpop.f32.mrb[0].mxu0
  %525 = vdwg.mxu0
  %v526 = vmax.f32 %v523, 0.0
  %v527 = vld [vmem:[%s5] sm:$0xff]
  %v528 = vld [vmem:[%s5 + $0x8] sm:$0xff]
  %v529 = vld [vmem:[%s5 + $0x10] sm:$0x3]
  %v530 = vld [vmem:[%s5 + $0x18] sm:$0x3]
  %v531 = vld [vmem:[%s6] sm:$0x1]
  %v532 = vld [vmem:[%s7] sm:$0x1]
  %v533 = vld [vmem:[%s8] sm:$0xff]
  %v534 = vld [vmem:[%s8 + $0x8] sm:$0xff]
  %v535 = vld [vmem:[%s8 + $0x10] sm:$0xff]
  %v536 = vld [vmem:[%s8 + $0x18] sm:$0xff]
  %v537 = vld [vmem:[%s8 + $0x20] sm:$0xff]
  %v538 = vld [vmem:[%s8 + $0x28] sm:$0xff]
  %v539 = vld [vmem:[%s8 + $0x30] sm:$0xff]
  %v540 = vld [vmem:[%s8 + $0x38] sm:$0xff]
  %v541 = vld [vmem:[%s8 + $0x40] sm:$0xff]
  %v542 = vld [vmem:[%s8 + $0x48] sm:$0xff]
  %v543 = vld [vmem:[%s8 + $0x50] sm:$0xff]
  %v544 = vld [vmem:[%s8 + $0x58] sm:$0xff]
  %v545 = vld [vmem:[%s8 + $0x60] sm:$0xff]
  %v546 = vld [vmem:[%s8 + $0x68] sm:$0xff]
  %v547 = vld [vmem:[%s8 + $0x70] sm:$0xff]
  %v548 = vld [vmem:[%s8 + $0x78] sm:$0xff]
  %v549 = vld [vmem:[%s8 + $0x80] sm:$0xff]
  %v550 = vld [vmem:[%s8 + $0x88] sm:$0xff]
  %v551 = vld [vmem:[%s8 + $0x90] sm:$0xff]
  %v552 = vld [vmem:[%s8 + $0x98] sm:$0xff]
  %v553 = vld [vmem:[%s8 + $0xa0] sm:$0xff]
  %v554 = vld [vmem:[%s8 + $0xa8] sm:$0xff]
  %v555 = vld [vmem:[%s8 + $0xb0] sm:$0xff]
  %v556 = vld [vmem:[%s8 + $0xb8] sm:$0xff]
  %v557 = vld [vmem:[%s8 + $0xc0] sm:$0xff]
  %v558 = vld [vmem:[%s9] sm:$0xff]
  %v559 = vld [vmem:[%s9 + $0x8] sm:$0xff]
  %v560 = vld [vmem:[%s9 + $0x10] sm:$0x3]
  %v561 = vld [vmem:[%s9 + $0x18] sm:$0x3]
  %v562 = vld [vmem:[%s10] sm:$0xff]
  %v563 = vld [vmem:[%s10 + $0x8] sm:$0xff]
  %v564 = vld [vmem:[%s10 + $0x10] sm:$0xff]
  %v565 = vld [vmem:[%s10 + $0x18] sm:$0xff]
  %v566 = vld [vmem:[%s10 + $0x20] sm:$0xff]
  %v567 = vld [vmem:[%s10 + $0x28] sm:$0xff]
  %v568 = vld [vmem:[%s10 + $0x30] sm:$0xff]
  %v569 = vld [vmem:[%s10 + $0x38] sm:$0xff]
  %v570 = vld [vmem:[%s10 + $0x40] sm:$0xff]
  %v571 = vld [vmem:[%s10 + $0x48] sm:$0xff]
  %v572 = vld [vmem:[%s10 + $0x50] sm:$0xff]
  %v573 = vld [vmem:[%s10 + $0x58] sm:$0xff]
  %v574 = vld [vmem:[%s10 + $0x60] sm:$0xff]
  %v575 = vld [vmem:[%s10 + $0x68] sm:$0xff]
  %v576 = vld [vmem:[%s10 + $0x70] sm:$0xff]
  %v577 = vld [vmem:[%s10 + $0x78] sm:$0xff]
  %v578 = vld [vmem:[%s10 + $0x80] sm:$0xff]
  %v579 = vld [vmem:[%s10 + $0x88] sm:$0xff]
  %v580 = vld [vmem:[%s10 + $0x90] sm:$0xff]
  %v581 = vld [vmem:[%s10 + $0x98] sm:$0xff]
  %v582 = vld [vmem:[%s10 + $0xa0] sm:$0xff]
  %v583 = vld [vmem:[%s10 + $0xa8] sm:$0xff]
  %v584 = vld [vmem:[%s10 + $0xb0] sm:$0xff]
  %v585 = vld [vmem:[%s10 + $0xb8] sm:$0xff]
  %v586 = vld [vmem:[%s10 + $0xc0] sm:$0xff]
  %v587 = vld [vmem:[%s11] sm:$0xff]
  %v588 = vld [vmem:[%s11 + $0x8] sm:$0xff]
  %v589 = vld [vmem:[%s11 + $0x10] sm:$0xff]
  %v590 = vld [vmem:[%s11 + $0x18] sm:$0xff]
  %v591 = vld [vmem:[%s11 + $0x20] sm:$0xff]
  %v592 = vld [vmem:[%s11 + $0x28] sm:$0xff]
  %v593 = vld [vmem:[%s11 + $0x30] sm:$0xff]
  %v594 = vld [vmem:[%s11 + $0x38] sm:$0xff]
  %v595 = vld [vmem:[%s11 + $0x40] sm:$0xff]
  %v596 = vld [vmem:[%s11 + $0x48] sm:$0xff]
  %v597 = vld [vmem:[%s11 + $0x50] sm:$0xff]
  %v598 = vld [vmem:[%s11 + $0x58] sm:$0xff]
  %v599 = vld [vmem:[%s11 + $0x60] sm:$0xf]
  %v600 = vld [vmem:[%s12] sm:$0x3]
  loop: start=0, step=1, limit=20
  $region54: #{optnet_forward.1} parent=0 // loop_pre_header
    _
  $region55: #{optnet_forward.1} parent=0 // loop_header
    %s602 = sphi 0, %s606
    %p603 = scmp.ge.s32.totalorder %s602, 20
    %v607 = vphi 0.0, %v3724
    %v608 = vphi 1.0, %v3727
    %v609 = vphi 1.0, %v3728
    %v610 = vphi 1.0, %v3731
    %v611 = vphi 1.0, %v3732
  $region56: #{optnet_forward.1} parent=0 // loop_header_branch
    %605 = sbr.rel (%p603) target = $region60
  $region57: #{optnet_forward.1} parent=0 // loop_body
    %v612 = vmax.f32 %v608, 1e-08
    %v613 = vmax.f32 %v609, 1e-08
    %v614 = vrcp.pop %v612
    %v615 = vrcp.pop %v613
    %v616 = vrcp.pop %v612
    %v617 = vmul.f32 %v610, %v616
    %v618 = vrcp.pop %v613
    %v619 = vmul.f32 %v611, %v618
    %v620 = vmin.f32 %v617, 10000000.0
    %v621 = vmin.f32 %v619, 10000000.0
    %vm622 = vcmask 80896
    %v624 = vsel %vm622, %v607, 0
    %vm626 = vcmask 1041408
    %v628 = vsel %vm626, %v529, 0
    %v631 = vsel %vm626, %v530, 0
    %633 = vmatprep.subr.mxu0 %v528
    %634 = vmatpush1.msra.mxu0 %v527
    %635 = vmatprep.subr.mxu0 %v631
    %636 = vmatpush1.msra.mxu0 %v628
    %637 = vmatprep.subr.mxu0 0.0
    %638 = vmatpush1.msra.mxu0 0.0
    %639 = vmatprep.subr.mxu0 0.0
    %640 = vmatpush1.msra.mxu0 0.0
    %641 = vmatprep.subr.mxu0 0.0
    %642 = vmatpush1.msra.mxu0 0.0
    %643 = vmatprep.subr.mxu0 0.0
    %644 = vmatpush1.msra.mxu0 0.0
    %645 = vmatprep.subr.mxu0 0.0
    %646 = vmatpush1.msra.mxu0 0.0
    %647 = vmatprep.subr.mxu0 0.0
    %648 = vmatpush1.msra.mxu0 0.0
    %649 = vmatprep.subr.mxu0 0.0
    %650 = vmatpush1.msra.mxu0 0.0
    %651 = vmatprep.subr.mxu0 0.0
    %652 = vmatpush1.msra.mxu0 0.0
    %653 = vmatprep.subr.mxu0 0.0
    %654 = vmatpush1.msra.mxu0 0.0
    %655 = vmatprep.subr.mxu0 0.0
    %656 = vmatpush1.msra.mxu0 0.0
    %657 = vmatprep.subr.mxu0 0.0
    %658 = vmatpush1.msra.mxu0 0.0
    %659 = vmatprep.subr.mxu0 0.0
    %660 = vmatpush1.msra.mxu0 0.0
    %661 = vmatprep.subr.mxu0 0.0
    %662 = vmatpush1.msra.mxu0 0.0
    %663 = vmatprep.subr.mxu0 0.0
    %664 = vmatpush1.msra.mxu0 0.0
    %665 = vmatprep.subr.mxu0 0.0
    %666 = vmatpush1.msra.mxu0 0.0
    %667 = vmatprep.subr.mxu0 0.0
    %668 = vmatpush1.msra.mxu0 0.0
    %669 = vmatprep.subr.mxu0 0.0
    %670 = vmatpush1.msra.mxu0 0.0
    %671 = vmatprep.subr.mxu0 0.0
    %672 = vmatpush1.msra.mxu0 0.0
    %673 = vmatprep.subr.mxu0 0.0
    %674 = vmatpush1.msra.mxu0 0.0
    %675 = vmatprep.subr.mxu0 0.0
    %676 = vmatpush1.msra.mxu0 0.0
    %677 = vmatprep.subr.mxu0 0.0
    %678 = vmatpush1.msra.mxu0 0.0
    %679 = vmatprep.subr.mxu0 0.0
    %680 = vmatpush1.msra.mxu0 0.0
    %681 = vmatprep.subr.mxu0 0.0
    %682 = vmatpush1.msra.mxu0 0.0
    %683 = vmatprep.subr.mxu0 0.0
    %684 = vmatpush1.msra.mxu0 0.0
    %685 = vmatprep.subr.mxu0 0.0
    %686 = vmatpush1.msra.mxu0 0.0
    %687 = vmatprep.subr.mxu0 0.0
    %688 = vmatpush1.msra.mxu0 0.0
    %689 = vmatprep.subr.mxu0 0.0
    %690 = vmatpush1.msra.mxu0 0.0
    %691 = vmatprep.subr.mxu0 0.0
    %692 = vmatpush1.msra.mxu0 0.0
    %693 = vmatprep.subr.mxu0 0.0
    %694 = vmatpush1.msra.mxu0 0.0
    %695 = vmatprep.subr.mxu0 0.0
    %696 = vmatpush1.msra.mxu0 0.0
    %697 = vmatprep.mubr.f32.mxu0 0.0
    %698 = vmatmul.mubr.f32.gmra.mrb[0].mxu0 %v624
    %v699 = vpop.f32.mrb[0].mxu0
    %v700 = vadd.f32 0.0, %v699
    %v701 = vpop.f32.mrb[0].mxu0
    %v702 = vadd.f32 0.0, %v701
    %703 = vdwg.mxu0
    %705 = vrot.lane.b32.xlu0 %v526, 72
    %v706 = vpop.permute.xlu0 %705
    %v708 = vadd.f32 %v702, %v706
    %vm709 = vcmask 588800
    %v711 = vsel %vm709, %v611, 0
    %713 = vmatprep.subr.mxu0 0.0
    %714 = vmatpush1.msra.mxu0 %v533
    %715 = vmatprep.subr.mxu0 0.0
    %716 = vmatpush1.msra.mxu0 %v534
    %717 = vmatprep.subr.mxu0 0.0
    %718 = vmatpush1.msra.mxu0 %v535
    %719 = vmatprep.subr.mxu0 0.0
    %720 = vmatpush1.msra.mxu0 %v536
    %721 = vmatprep.subr.mxu0 0.0
    %722 = vmatpush1.msra.mxu0 %v537
    %723 = vmatprep.subr.mxu0 0.0
    %724 = vmatpush1.msra.mxu0 %v538
    %725 = vmatprep.subr.mxu0 0.0
    %726 = vmatpush1.msra.mxu0 %v539
    %727 = vmatprep.subr.mxu0 0.0
    %728 = vmatpush1.msra.mxu0 %v540
    %729 = vmatprep.subr.mxu0 0.0
    %730 = vmatpush1.msra.mxu0 %v541
    %731 = vmatprep.subr.mxu0 0.0
    %732 = vmatpush1.msra.mxu0 %v542
    %733 = vmatprep.subr.mxu0 0.0
    %734 = vmatpush1.msra.mxu0 %v543
    %735 = vmatprep.subr.mxu0 0.0
    %736 = vmatpush1.msra.mxu0 %v544
    %737 = vmatprep.subr.mxu0 0.0
    %738 = vmatpush1.msra.mxu0 %v545
    %739 = vmatprep.subr.mxu0 0.0
    %740 = vmatpush1.msra.mxu0 %v546
    %741 = vmatprep.subr.mxu0 0.0
    %742 = vmatpush1.msra.mxu0 %v547
    %743 = vmatprep.subr.mxu0 0.0
    %744 = vmatpush1.msra.mxu0 %v548
    %745 = vmatprep.subr.mxu0 0.0
    %746 = vmatpush1.msra.mxu0 %v549
    %747 = vmatprep.subr.mxu0 0.0
    %748 = vmatpush1.msra.mxu0 %v550
    %749 = vmatprep.subr.mxu0 0.0
    %750 = vmatpush1.msra.mxu0 %v551
    %751 = vmatprep.subr.mxu0 0.0
    %752 = vmatpush1.msra.mxu0 %v552
    %753 = vmatprep.subr.mxu0 0.0
    %754 = vmatpush1.msra.mxu0 %v553
    %755 = vmatprep.subr.mxu0 0.0
    %756 = vmatpush1.msra.mxu0 %v554
    %757 = vmatprep.subr.mxu0 0.0
    %758 = vmatpush1.msra.mxu0 %v555
    %759 = vmatprep.subr.mxu0 0.0
    %760 = vmatpush1.msra.mxu0 %v556
    %761 = vmatprep.subr.mxu0 0.0
    %762 = vmatpush1.msra.mxu0 %v557
    %763 = vmatprep.subr.mxu0 0.0
    %764 = vmatpush1.msra.mxu0 0.0
    %765 = vmatprep.subr.mxu0 0.0
    %766 = vmatpush1.msra.mxu0 0.0
    %767 = vmatprep.subr.mxu0 0.0
    %768 = vmatpush1.msra.mxu0 0.0
    %769 = vmatprep.subr.mxu0 0.0
    %770 = vmatpush1.msra.mxu0 0.0
    %771 = vmatprep.subr.mxu0 0.0
    %772 = vmatpush1.msra.mxu0 0.0
    %773 = vmatprep.subr.mxu0 0.0
    %774 = vmatpush1.msra.mxu0 0.0
    %775 = vmatprep.subr.mxu0 0.0
    %776 = vmatpush1.msra.mxu0 0.0
    %777 = vmatprep.mubr.f32.mxu0 %v711
    %778 = vmatmul.mubr.f32.gmra.mrb[0].mxu0 %v610
    %v779 = vpop.f32.mrb[0].mxu0
    %v780 = vadd.f32 0.0, %v779
    %v781 = vpop.f32.mrb[0].mxu0
    %782 = vdwg.mxu0
    %784 = vrot.lane.b32.xlu0 %v780, 72
    %v785 = vpop.permute.xlu0 %784
    %v787 = vadd.f32 %v708, %v785
    %v788 = vadd.f32 %v700, %v608
    %v789 = vadd.f32 %v702, %v609
    %v791 = vlaneseq
    %v792 = vshrl.u32 %v791, 7
    %v793 = vsub.s32 0, %v792
    %v794 = vrot.slane %v600, %v793
    %v795 = vlaneseq
    %v796 = vshrl.u32 %v795, 7
    %v797 = vsub.s32 1, %v796
    %v798 = vrot.slane %v600, %v797
    %v801 = vsub.f32 %v788, %v794
    %v802 = vsub.f32 %v789, %v798
    %v803 = vmul.f32 %v608, %v610
    %v804 = vmul.f32 %v609, %v611
    %v805 = vsel %vm709, %v804, 0.0
    %v806 = vadd.f32 %v803, %v805
    %807 = vadd.xlane.f32.xlu0 %v806
    %v808 = vpop.xlane.xlu0 %807
    %v809 = vrcp.pop 200.0
    %v810 = vmul.f32 %v808, %v809
    %v812 = vsel %vm709, %v621, 0
    %814 = vmatprep.subr.mxu0 0.0
    %815 = vmatpush1.msra.mxu0 %v562
    %816 = vmatprep.subr.mxu0 0.0
    %817 = vmatpush1.msra.mxu0 %v563
    %818 = vmatprep.subr.mxu0 0.0
    %819 = vmatpush1.msra.mxu0 %v564
    %820 = vmatprep.subr.mxu0 0.0
    %821 = vmatpush1.msra.mxu0 %v565
    %822 = vmatprep.subr.mxu0 0.0
    %823 = vmatpush1.msra.mxu0 %v566
    %824 = vmatprep.subr.mxu0 0.0
    %825 = vmatpush1.msra.mxu0 %v567
    %826 = vmatprep.subr.mxu0 0.0
    %827 = vmatpush1.msra.mxu0 %v568
    %828 = vmatprep.subr.mxu0 0.0
    %829 = vmatpush1.msra.mxu0 %v569
    %830 = vmatprep.subr.mxu0 0.0
    %831 = vmatpush1.msra.mxu0 %v570
    %832 = vmatprep.subr.mxu0 0.0
    %833 = vmatpush1.msra.mxu0 %v571
    %834 = vmatprep.subr.mxu0 0.0
    %835 = vmatpush1.msra.mxu0 %v572
    %836 = vmatprep.subr.mxu0 0.0
    %837 = vmatpush1.msra.mxu0 %v573
    %838 = vmatprep.subr.mxu0 0.0
    %839 = vmatpush1.msra.mxu0 %v574
    %840 = vmatprep.subr.mxu0 0.0
    %841 = vmatpush1.msra.mxu0 %v575
    %842 = vmatprep.subr.mxu0 0.0
    %843 = vmatpush1.msra.mxu0 %v576
    %844 = vmatprep.subr.mxu0 0.0
    %845 = vmatpush1.msra.mxu0 %v577
    %846 = vmatprep.subr.mxu0 0.0
    %847 = vmatpush1.msra.mxu0 %v578
    %848 = vmatprep.subr.mxu0 0.0
    %849 = vmatpush1.msra.mxu0 %v579
    %850 = vmatprep.subr.mxu0 0.0
    %851 = vmatpush1.msra.mxu0 %v580
    %852 = vmatprep.subr.mxu0 0.0
    %853 = vmatpush1.msra.mxu0 %v581
    %854 = vmatprep.subr.mxu0 0.0
    %855 = vmatpush1.msra.mxu0 %v582
    %856 = vmatprep.subr.mxu0 0.0
    %857 = vmatpush1.msra.mxu0 %v583
    %858 = vmatprep.subr.mxu0 0.0
    %859 = vmatpush1.msra.mxu0 %v584
    %860 = vmatprep.subr.mxu0 0.0
    %861 = vmatpush1.msra.mxu0 %v585
    %862 = vmatprep.subr.mxu0 0.0
    %863 = vmatpush1.msra.mxu0 %v586
    %864 = vmatprep.subr.mxu0 0.0
    %865 = vmatpush1.msra.mxu0 0.0
    %866 = vmatprep.subr.mxu0 0.0
    %867 = vmatpush1.msra.mxu0 0.0
    %868 = vmatprep.subr.mxu0 0.0
    %869 = vmatpush1.msra.mxu0 0.0
    %870 = vmatprep.subr.mxu0 0.0
    %871 = vmatpush1.msra.mxu0 0.0
    %872 = vmatprep.subr.mxu0 0.0
    %873 = vmatpush1.msra.mxu0 0.0
    %874 = vmatprep.subr.mxu0 0.0
    %875 = vmatpush1.msra.mxu0 0.0
    %876 = vmatprep.subr.mxu0 0.0
    %877 = vmatpush1.msra.mxu0 0.0
    %878 = vmatprep.mubr.f32.mxu0 %v812
    %879 = vmatmul.mubr.f32.gmra.mrb[0].mxu0 %v620
    %v880 = vpop.f32.mrb[0].mxu0
    %v881 = vadd.f32 0.0, %v880
    %v882 = vpop.f32.mrb[0].mxu0
    %883 = vdwg.mxu0
    %v885 = vlaneseq
    %v886 = vshrl.u32 %v885, 7
    %v887 = vsub.s32 0, %v886
    %v888 = vrot.slane %v531, %v887
    %v890 = vadd.f32 %v888, %v881
    %v892 = vlaneseq
    %v893 = vshrl.u32 %v892, 7
    %v894 = vsub.s32 0, %v893
    %v895 = vrot.slane %v532, %v894
    %898 = vrot.lane.b32.xlu0 %v881, 28
    %v899 = vpop.permute.xlu0 %898
    %v901 = vadd.f32 %v895, %v899
    %v902 = vrcp.pop %v901
    %v903 = vsub.f32 0.0, %v803
    %v904 = vsub.f32 0.0, %v804
    %v905 = vmul.f32 %v610, %v801
    %v906 = vmul.f32 %v611, %v802
    %v907 = vadd.f32 %v903, %v905
    %v908 = vadd.f32 %v904, %v906
    %v909 = vmul.f32 %v907, %v614
    %v910 = vmul.f32 %v908, %v615
    %v911 = vsub.f32 0.0, %v787
    %v913 = vsel %vm709, %v910, 0
    %915 = vmatprep.subr.mxu0 0.0
    %916 = vmatpush1.msra.mxu0 %v533
    %917 = vmatprep.subr.mxu0 0.0
    %918 = vmatpush1.msra.mxu0 %v534
    %919 = vmatprep.subr.mxu0 0.0
    %920 = vmatpush1.msra.mxu0 %v535
    %921 = vmatprep.subr.mxu0 0.0
    %922 = vmatpush1.msra.mxu0 %v536
    %923 = vmatprep.subr.mxu0 0.0
    %924 = vmatpush1.msra.mxu0 %v537
    %925 = vmatprep.subr.mxu0 0.0
    %926 = vmatpush1.msra.mxu0 %v538
    %927 = vmatprep.subr.mxu0 0.0
    %928 = vmatpush1.msra.mxu0 %v539
    %929 = vmatprep.subr.mxu0 0.0
    %930 = vmatpush1.msra.mxu0 %v540
    %931 = vmatprep.subr.mxu0 0.0
    %932 = vmatpush1.msra.mxu0 %v541
    %933 = vmatprep.subr.mxu0 0.0
    %934 = vmatpush1.msra.mxu0 %v542
    %935 = vmatprep.subr.mxu0 0.0
    %936 = vmatpush1.msra.mxu0 %v543
    %937 = vmatprep.subr.mxu0 0.0
    %938 = vmatpush1.msra.mxu0 %v544
    %939 = vmatprep.subr.mxu0 0.0
    %940 = vmatpush1.msra.mxu0 %v545
    %941 = vmatprep.subr.mxu0 0.0
    %942 = vmatpush1.msra.mxu0 %v546
    %943 = vmatprep.subr.mxu0 0.0
    %944 = vmatpush1.msra.mxu0 %v547
    %945 = vmatprep.subr.mxu0 0.0
    %946 = vmatpush1.msra.mxu0 %v548
    %947 = vmatprep.subr.mxu0 0.0
    %948 = vmatpush1.msra.mxu0 %v549
    %949 = vmatprep.subr.mxu0 0.0
    %950 = vmatpush1.msra.mxu0 %v550
    %951 = vmatprep.subr.mxu0 0.0
    %952 = vmatpush1.msra.mxu0 %v551
    %953 = vmatprep.subr.mxu0 0.0
    %954 = vmatpush1.msra.mxu0 %v552
    %955 = vmatprep.subr.mxu0 0.0
    %956 = vmatpush1.msra.mxu0 %v553
    %957 = vmatprep.subr.mxu0 0.0
    %958 = vmatpush1.msra.mxu0 %v554
    %959 = vmatprep.subr.mxu0 0.0
    %960 = vmatpush1.msra.mxu0 %v555
    %961 = vmatprep.subr.mxu0 0.0
    %962 = vmatpush1.msra.mxu0 %v556
    %963 = vmatprep.subr.mxu0 0.0
    %964 = vmatpush1.msra.mxu0 %v557
    %965 = vmatprep.subr.mxu0 0.0
    %966 = vmatpush1.msra.mxu0 0.0
    %967 = vmatprep.subr.mxu0 0.0
    %968 = vmatpush1.msra.mxu0 0.0
    %969 = vmatprep.subr.mxu0 0.0
    %970 = vmatpush1.msra.mxu0 0.0
    %971 = vmatprep.subr.mxu0 0.0
    %972 = vmatpush1.msra.mxu0 0.0
    %973 = vmatprep.subr.mxu0 0.0
    %974 = vmatpush1.msra.mxu0 0.0
    %975 = vmatprep.subr.mxu0 0.0
    %976 = vmatpush1.msra.mxu0 0.0
    %977 = vmatprep.subr.mxu0 0.0
    %978 = vmatpush1.msra.mxu0 0.0
    %979 = vmatprep.mubr.f32.mxu0 %v913
    %980 = vmatmul.mubr.f32.gmra.mrb[0].mxu0 %v909
    %v981 = vpop.f32.mrb[0].mxu0
    %v982 = vadd.f32 0.0, %v981
    %v983 = vpop.f32.mrb[0].mxu0
    %984 = vdwg.mxu0
    %986 = vrot.lane.b32.xlu0 %v982, 72
    %v987 = vpop.permute.xlu0 %986
    %v989 = vsub.f32 %v911, %v987
    %991 = vrot.lane.b32.xlu0 %v989, 56
    %v992 = vpop.permute.xlu0 %991
    %v994 = vmul.f32 %v902, %v992
    %996 = vrot.lane.b32.xlu0 %v994, 72
    %v997 = vpop.permute.xlu0 %996
    %v999 = vmul.f32 %v989, %v997
    %1001 = vrot.lane.b32.xlu0 %v999, 56
    %v1002 = vpop.permute.xlu0 %1001
    %v1004 = vsel %vm622, %v1002, 0.0
    %1005 = vadd.xlane.f32.xlu0 %v1004
    %v1006 = vpop.xlane.xlu0 %1005
    %1007 = vrot.lane.b32.xlu0 %v994, 10
    %v1008 = vpop.permute.xlu0 %1007
    %1010 = vrot.lane.b32.xlu0 %v994, 20
    %v1011 = vpop.permute.xlu0 %1010
    %1013 = vrot.lane.b32.xlu0 %v994, 30
    %v1014 = vpop.permute.xlu0 %1013
    %1016 = vrot.lane.b32.xlu0 %v994, 40
    %v1017 = vpop.permute.xlu0 %1016
    %1019 = vrot.lane.b32.xlu0 %v994, 50
    %v1020 = vpop.permute.xlu0 %1019
    %1022 = vrot.lane.b32.xlu0 %v994, 60
    %v1023 = vpop.permute.xlu0 %1022
    %1025 = vrot.lane.b32.xlu0 %v994, 70
    %v1026 = vpop.permute.xlu0 %1025
    %1028 = vrot.lane.b32.xlu0 %v994, 80
    %v1029 = vpop.permute.xlu0 %1028
    %1031 = vrot.lane.b32.xlu0 %v994, 90
    %v1032 = vpop.permute.xlu0 %1031
    %v1034 = vsel %vm622, %v994, %v1008
    %vm1035 = vcmask 162816
    %v1036 = vsel %vm1035, %v1034, %v1011
    %vm1037 = vcmask 244736
    %v1038 = vsel %vm1037, %v1036, %v1014
    %vm1039 = vcmask 326656
    %v1040 = vsel %vm1039, %v1038, %v1017
    %vm1041 = vcmask 408576
    %v1042 = vsel %vm1041, %v1040, %v1020
    %vm1043 = vcmask 490496
    %v1044 = vsel %vm1043, %v1042, %v1023
    %vm1045 = vcmask 572416
    %v1046 = vsel %vm1045, %v1044, %v1026
    %vm1047 = vcmask 654336
    %v1048 = vsel %vm1047, %v1046, %v1029
    %vm1049 = vcmask 736256
    %v1050 = vsel %vm1049, %v1048, %v1032
    %v1051 = vmul.f32 %v890, %v1050
    %vm1052 = vcmask 818176
    %v1054 = vsel %vm1052, %v1051, 0
    %vm1056 = vcmask 1043456
    %v1058 = vsel %vm1056, %v599, 0
    %1060 = vmatprep.subr.mxu0 0.0
    %1061 = vmatpush1.msra.mxu0 %v587
    %1062 = vmatprep.subr.mxu0 0.0
    %1063 = vmatpush1.msra.mxu0 %v588
    %1064 = vmatprep.subr.mxu0 0.0
    %1065 = vmatpush1.msra.mxu0 %v589
    %1066 = vmatprep.subr.mxu0 0.0
    %1067 = vmatpush1.msra.mxu0 %v590
    %1068 = vmatprep.subr.mxu0 0.0
    %1069 = vmatpush1.msra.mxu0 %v591
    %1070 = vmatprep.subr.mxu0 0.0
    %1071 = vmatpush1.msra.mxu0 %v592
    %1072 = vmatprep.subr.mxu0 0.0
    %1073 = vmatpush1.msra.mxu0 %v593
    %1074 = vmatprep.subr.mxu0 0.0
    %1075 = vmatpush1.msra.mxu0 %v594
    %1076 = vmatprep.subr.mxu0 0.0
    %1077 = vmatpush1.msra.mxu0 %v595
    %1078 = vmatprep.subr.mxu0 0.0
    %1079 = vmatpush1.msra.mxu0 %v596
    %1080 = vmatprep.subr.mxu0 0.0
    %1081 = vmatpush1.msra.mxu0 %v597
    %1082 = vmatprep.subr.mxu0 0.0
    %1083 = vmatpush1.msra.mxu0 %v598
    %1084 = vmatprep.subr.mxu0 0.0
    %1085 = vmatpush1.msra.mxu0 %v1058
    %1086 = vmatprep.subr.mxu0 0.0
    %1087 = vmatpush1.msra.mxu0 0.0
    %1088 = vmatprep.subr.mxu0 0.0
    %1089 = vmatpush1.msra.mxu0 0.0
    %1090 = vmatprep.subr.mxu0 0.0
    %1091 = vmatpush1.msra.mxu0 0.0
    %1092 = vmatprep.subr.mxu0 0.0
    %1093 = vmatpush1.msra.mxu0 0.0
    %1094 = vmatprep.subr.mxu0 0.0
    %1095 = vmatpush1.msra.mxu0 0.0
    %1096 = vmatprep.subr.mxu0 0.0
    %1097 = vmatpush1.msra.mxu0 0.0
    %1098 = vmatprep.subr.mxu0 0.0
    %1099 = vmatpush1.msra.mxu0 0.0
    %1100 = vmatprep.subr.mxu0 0.0
    %1101 = vmatpush1.msra.mxu0 0.0
    %1102 = vmatprep.subr.mxu0 0.0
    %1103 = vmatpush1.msra.mxu0 0.0
    %1104 = vmatprep.subr.mxu0 0.0
    %1105 = vmatpush1.msra.mxu0 0.0
    %1106 = vmatprep.subr.mxu0 0.0
    %1107 = vmatpush1.msra.mxu0 0.0
    %1108 = vmatprep.subr.mxu0 0.0
    %1109 = vmatpush1.msra.mxu0 0.0
    %1110 = vmatprep.subr.mxu0 0.0
    %1111 = vmatpush1.msra.mxu0 0.0
    %1112 = vmatprep.subr.mxu0 0.0
    %1113 = vmatpush1.msra.mxu0 0.0
    %1114 = vmatprep.subr.mxu0 0.0
    %1115 = vmatpush1.msra.mxu0 0.0
    %1116 = vmatprep.subr.mxu0 0.0
    %1117 = vmatpush1.msra.mxu0 0.0
    %1118 = vmatprep.subr.mxu0 0.0
    %1119 = vmatpush1.msra.mxu0 0.0
    %1120 = vmatprep.subr.mxu0 0.0
    %1121 = vmatpush1.msra.mxu0 0.0
    %1122 = vmatprep.subr.mxu0 0.0
    %1123 = vmatpush1.msra.mxu0 0.0
    %1124 = vmatprep.mubr.f32.mxu0 0.0
    %1125 = vmatmul.mubr.f32.gmra.mrb[0].mxu0 %v1054
    %v1126 = vpop.f32.mrb[0].mxu0
    %v1127 = vadd.f32 0.0, %v1126
    %v1128 = vpop.f32.mrb[0].mxu0
    %1129 = vdwg.mxu0
    %v1130 = vmul.f32 %v994, %v1127
    %v1131 = vsel %vm622, %v1130, 0.0
    %1132 = vadd.xlane.f32.xlu0 %v1131
    %v1133 = vpop.xlane.xlu0 %1132
    %vm1134 = vcmp.gt.f32.partialorder %v1133, 1e-08
    %v1135 = vmax.f32 %v1133, 1e-08
    %v1136 = vrcp.pop %v1135
    %v1137 = vmul.f32 %v1006, %v1136
    %v1138 = vsel %vm1134, %v1137, 0.0
    %v1139 = vmul.f32 %v1138, %v994
    %v1140 = vadd.f32 %v1139, 0.0
    %v1141 = vmul.f32 %v1138, %v1127
    %1143 = vrot.lane.b32.xlu0 %v1141, 72
    %v1144 = vpop.permute.xlu0 %1143
    %v1146 = vsub.f32 %v989, %v1144
    %1148 = vrot.lane.b32.xlu0 %v1146, 56
    %v1149 = vpop.permute.xlu0 %1148
    %v1151 = vmul.f32 %v902, %v1149
    %1153 = vrot.lane.b32.xlu0 %v1151, 72
    %v1154 = vpop.permute.xlu0 %1153
    %v1156 = vmul.f32 %v1146, %v1154
    %1158 = vrot.lane.b32.xlu0 %v1156, 56
    %v1159 = vpop.permute.xlu0 %1158
    %v1161 = vsel %vm622, %v1159, 0.0
    %1162 = vadd.xlane.f32.xlu0 %v1161
    %v1163 = vpop.xlane.xlu0 %1162
    %v1164 = vmax.f32 %v1006, 1e-08
    %v1165 = vrcp.pop %v1164
    %v1166 = vmul.f32 %v1163, %v1165
    %v1167 = vmul.f32 %v1166, %v994
    %v1168 = vadd.f32 %v1151, %v1167
    %1170 = vrot.lane.b32.xlu0 %v1168, 10
    %v1171 = vpop.permute.xlu0 %1170
    %1173 = vrot.lane.b32.xlu0 %v1168, 20
    %v1174 = vpop.permute.xlu0 %1173
    %1176 = vrot.lane.b32.xlu0 %v1168, 30
    %v1177 = vpop.permute.xlu0 %1176
    %1179 = vrot.lane.b32.xlu0 %v1168, 40
    %v1180 = vpop.permute.xlu0 %1179
    %1182 = vrot.lane.b32.xlu0 %v1168, 50
    %v1183 = vpop.permute.xlu0 %1182
    %1185 = vrot.lane.b32.xlu0 %v1168, 60
    %v1186 = vpop.permute.xlu0 %1185
    %1188 = vrot.lane.b32.xlu0 %v1168, 70
    %v1189 = vpop.permute.xlu0 %1188
    %1191 = vrot.lane.b32.xlu0 %v1168, 80
    %v1192 = vpop.permute.xlu0 %1191
    %1194 = vrot.lane.b32.xlu0 %v1168, 90
    %v1195 = vpop.permute.xlu0 %1194
    %v1197 = vsel %vm622, %v1168, %v1171
    %v1198 = vsel %vm1035, %v1197, %v1174
    %v1199 = vsel %vm1037, %v1198, %v1177
    %v1200 = vsel %vm1039, %v1199, %v1180
    %v1201 = vsel %vm1041, %v1200, %v1183
    %v1202 = vsel %vm1043, %v1201, %v1186
    %v1203 = vsel %vm1045, %v1202, %v1189
    %v1204 = vsel %vm1047, %v1203, %v1192
    %v1205 = vsel %vm1049, %v1204, %v1195
    %v1206 = vmul.f32 %v890, %v1205
    %v1208 = vsel %vm1052, %v1206, 0
    %1210 = vmatprep.subr.mxu0 0.0
    %1211 = vmatpush1.msra.mxu0 %v587
    %1212 = vmatprep.subr.mxu0 0.0
    %1213 = vmatpush1.msra.mxu0 %v588
    %1214 = vmatprep.subr.mxu0 0.0
    %1215 = vmatpush1.msra.mxu0 %v589
    %1216 = vmatprep.subr.mxu0 0.0
    %1217 = vmatpush1.msra.mxu0 %v590
    %1218 = vmatprep.subr.mxu0 0.0
    %1219 = vmatpush1.msra.mxu0 %v591
    %1220 = vmatprep.subr.mxu0 0.0
    %1221 = vmatpush1.msra.mxu0 %v592
    %1222 = vmatprep.subr.mxu0 0.0
    %1223 = vmatpush1.msra.mxu0 %v593
    %1224 = vmatprep.subr.mxu0 0.0
    %1225 = vmatpush1.msra.mxu0 %v594
    %1226 = vmatprep.subr.mxu0 0.0
    %1227 = vmatpush1.msra.mxu0 %v595
    %1228 = vmatprep.subr.mxu0 0.0
    %1229 = vmatpush1.msra.mxu0 %v596
    %1230 = vmatprep.subr.mxu0 0.0
    %1231 = vmatpush1.msra.mxu0 %v597
    %1232 = vmatprep.subr.mxu0 0.0
    %1233 = vmatpush1.msra.mxu0 %v598
    %1234 = vmatprep.subr.mxu0 0.0
    %1235 = vmatpush1.msra.mxu0 %v1058
    %1236 = vmatprep.subr.mxu0 0.0
    %1237 = vmatpush1.msra.mxu0 0.0
    %1238 = vmatprep.subr.mxu0 0.0
    %1239 = vmatpush1.msra.mxu0 0.0
    %1240 = vmatprep.subr.mxu0 0.0
    %1241 = vmatpush1.msra.mxu0 0.0
    %1242 = vmatprep.subr.mxu0 0.0
    %1243 = vmatpush1.msra.mxu0 0.0
    %1244 = vmatprep.subr.mxu0 0.0
    %1245 = vmatpush1.msra.mxu0 0.0
    %1246 = vmatprep.subr.mxu0 0.0
    %1247 = vmatpush1.msra.mxu0 0.0
    %1248 = vmatprep.subr.mxu0 0.0
    %1249 = vmatpush1.msra.mxu0 0.0
    %1250 = vmatprep.subr.mxu0 0.0
    %1251 = vmatpush1.msra.mxu0 0.0
    %1252 = vmatprep.subr.mxu0 0.0
    %1253 = vmatpush1.msra.mxu0 0.0
    %1254 = vmatprep.subr.mxu0 0.0
    %1255 = vmatpush1.msra.mxu0 0.0
    %1256 = vmatprep.subr.mxu0 0.0
    %1257 = vmatpush1.msra.mxu0 0.0
    %1258 = vmatprep.subr.mxu0 0.0
    %1259 = vmatpush1.msra.mxu0 0.0
    %1260 = vmatprep.subr.mxu0 0.0
    %1261 = vmatpush1.msra.mxu0 0.0
    %1262 = vmatprep.subr.mxu0 0.0
    %1263 = vmatpush1.msra.mxu0 0.0
    %1264 = vmatprep.subr.mxu0 0.0
    %1265 = vmatpush1.msra.mxu0 0.0
    %1266 = vmatprep.subr.mxu0 0.0
    %1267 = vmatpush1.msra.mxu0 0.0
    %1268 = vmatprep.subr.mxu0 0.0
    %1269 = vmatpush1.msra.mxu0 0.0
    %1270 = vmatprep.subr.mxu0 0.0
    %1271 = vmatpush1.msra.mxu0 0.0
    %1272 = vmatprep.subr.mxu0 0.0
    %1273 = vmatpush1.msra.mxu0 0.0
    %1274 = vmatprep.mubr.f32.mxu0 0.0
    %1275 = vmatmul.mubr.f32.gmra.mrb[0].mxu0 %v1208
    %v1276 = vpop.f32.mrb[0].mxu0
    %v1277 = vadd.f32 0.0, %v1276
    %v1278 = vpop.f32.mrb[0].mxu0
    %1279 = vdwg.mxu0
    %v1280 = vmul.f32 %v1168, %v1277
    %v1281 = vsel %vm622, %v1280, 0.0
    %1282 = vadd.xlane.f32.xlu0 %v1281
    %v1283 = vpop.xlane.xlu0 %1282
    %vm1284 = vcmp.gt.f32.partialorder %v1283, 1e-08
    %v1285 = vmax.f32 %v1283, 1e-08
    %v1286 = vrcp.pop %v1285
    %v1287 = vmul.f32 %v1163, %v1286
    %v1288 = vsel %vm1284, %v1287, 0.0
    %v1289 = vmul.f32 %v1288, %v1168
    %v1290 = vadd.f32 %v1140, %v1289
    %v1291 = vmul.f32 %v1288, %v1277
    %1293 = vrot.lane.b32.xlu0 %v1291, 72
    %v1294 = vpop.permute.xlu0 %1293
    %v1296 = vsub.f32 %v1146, %v1294
    %1298 = vrot.lane.b32.xlu0 %v1296, 56
    %v1299 = vpop.permute.xlu0 %1298
    %v1301 = vmul.f32 %v902, %v1299
    %1303 = vrot.lane.b32.xlu0 %v1301, 72
    %v1304 = vpop.permute.xlu0 %1303
    %v1306 = vmul.f32 %v1296, %v1304
    %1308 = vrot.lane.b32.xlu0 %v1306, 56
    %v1309 = vpop.permute.xlu0 %1308
    %v1311 = vsel %vm622, %v1309, 0.0
    %1312 = vadd.xlane.f32.xlu0 %v1311
    %v1313 = vpop.xlane.xlu0 %1312
    %v1314 = vmax.f32 %v1163, 1e-08
    %v1315 = vrcp.pop %v1314
    %v1316 = vmul.f32 %v1313, %v1315
    %v1317 = vmul.f32 %v1316, %v1168
    %v1318 = vadd.f32 %v1301, %v1317
    %1320 = vrot.lane.b32.xlu0 %v1318, 10
    %v1321 = vpop.permute.xlu0 %1320
    %1323 = vrot.lane.b32.xlu0 %v1318, 20
    %v1324 = vpop.permute.xlu0 %1323
    %1326 = vrot.lane.b32.xlu0 %v1318, 30
    %v1327 = vpop.permute.xlu0 %1326
    %1329 = vrot.lane.b32.xlu0 %v1318, 40
    %v1330 = vpop.permute.xlu0 %1329
    %1332 = vrot.lane.b32.xlu0 %v1318, 50
    %v1333 = vpop.permute.xlu0 %1332
    %1335 = vrot.lane.b32.xlu0 %v1318, 60
    %v1336 = vpop.permute.xlu0 %1335
    %1338 = vrot.lane.b32.xlu0 %v1318, 70
    %v1339 = vpop.permute.xlu0 %1338
    %1341 = vrot.lane.b32.xlu0 %v1318, 80
    %v1342 = vpop.permute.xlu0 %1341
    %1344 = vrot.lane.b32.xlu0 %v1318, 90
    %v1345 = vpop.permute.xlu0 %1344
    %v1347 = vsel %vm622, %v1318, %v1321
    %v1348 = vsel %vm1035, %v1347, %v1324
    %v1349 = vsel %vm1037, %v1348, %v1327
    %v1350 = vsel %vm1039, %v1349, %v1330
    %v1351 = vsel %vm1041, %v1350, %v1333
    %v1352 = vsel %vm1043, %v1351, %v1336
    %v1353 = vsel %vm1045, %v1352, %v1339
    %v1354 = vsel %vm1047, %v1353, %v1342
    %v1355 = vsel %vm1049, %v1354, %v1345
    %v1356 = vmul.f32 %v890, %v1355
    %v1358 = vsel %vm1052, %v1356, 0
    %1360 = vmatprep.subr.mxu0 0.0
    %1361 = vmatpush1.msra.mxu0 %v587
    %1362 = vmatprep.subr.mxu0 0.0
    %1363 = vmatpush1.msra.mxu0 %v588
    %1364 = vmatprep.subr.mxu0 0.0
    %1365 = vmatpush1.msra.mxu0 %v589
    %1366 = vmatprep.subr.mxu0 0.0
    %1367 = vmatpush1.msra.mxu0 %v590
    %1368 = vmatprep.subr.mxu0 0.0
    %1369 = vmatpush1.msra.mxu0 %v591
    %1370 = vmatprep.subr.mxu0 0.0
    %1371 = vmatpush1.msra.mxu0 %v592
    %1372 = vmatprep.subr.mxu0 0.0
    %1373 = vmatpush1.msra.mxu0 %v593
    %1374 = vmatprep.subr.mxu0 0.0
    %1375 = vmatpush1.msra.mxu0 %v594
    %1376 = vmatprep.subr.mxu0 0.0
    %1377 = vmatpush1.msra.mxu0 %v595
    %1378 = vmatprep.subr.mxu0 0.0
    %1379 = vmatpush1.msra.mxu0 %v596
    %1380 = vmatprep.subr.mxu0 0.0
    %1381 = vmatpush1.msra.mxu0 %v597
    %1382 = vmatprep.subr.mxu0 0.0
    %1383 = vmatpush1.msra.mxu0 %v598
    %1384 = vmatprep.subr.mxu0 0.0
    %1385 = vmatpush1.msra.mxu0 %v1058
    %1386 = vmatprep.subr.mxu0 0.0
    %1387 = vmatpush1.msra.mxu0 0.0
    %1388 = vmatprep.subr.mxu0 0.0
    %1389 = vmatpush1.msra.mxu0 0.0
    %1390 = vmatprep.subr.mxu0 0.0
    %1391 = vmatpush1.msra.mxu0 0.0
    %1392 = vmatprep.subr.mxu0 0.0
    %1393 = vmatpush1.msra.mxu0 0.0
    %1394 = vmatprep.subr.mxu0 0.0
    %1395 = vmatpush1.msra.mxu0 0.0
    %1396 = vmatprep.subr.mxu0 0.0
    %1397 = vmatpush1.msra.mxu0 0.0
    %1398 = vmatprep.subr.mxu0 0.0
    %1399 = vmatpush1.msra.mxu0 0.0
    %1400 = vmatprep.subr.mxu0 0.0
    %1401 = vmatpush1.msra.mxu0 0.0
    %1402 = vmatprep.subr.mxu0 0.0
    %1403 = vmatpush1.msra.mxu0 0.0
    %1404 = vmatprep.subr.mxu0 0.0
    %1405 = vmatpush1.msra.mxu0 0.0
    %1406 = vmatprep.subr.mxu0 0.0
    %1407 = vmatpush1.msra.mxu0 0.0
    %1408 = vmatprep.subr.mxu0 0.0
    %1409 = vmatpush1.msra.mxu0 0.0
    %1410 = vmatprep.subr.mxu0 0.0
    %1411 = vmatpush1.msra.mxu0 0.0
    %1412 = vmatprep.subr.mxu0 0.0
    %1413 = vmatpush1.msra.mxu0 0.0
    %1414 = vmatprep.subr.mxu0 0.0
    %1415 = vmatpush1.msra.mxu0 0.0
    %1416 = vmatprep.subr.mxu0 0.0
    %1417 = vmatpush1.msra.mxu0 0.0
    %1418 = vmatprep.subr.mxu0 0.0
    %1419 = vmatpush1.msra.mxu0 0.0
    %1420 = vmatprep.subr.mxu0 0.0
    %1421 = vmatpush1.msra.mxu0 0.0
    %1422 = vmatprep.subr.mxu0 0.0
    %1423 = vmatpush1.msra.mxu0 0.0
    %1424 = vmatprep.mubr.f32.mxu0 0.0
    %1425 = vmatmul.mubr.f32.gmra.mrb[0].mxu0 %v1358
    %v1426 = vpop.f32.mrb[0].mxu0
    %v1427 = vadd.f32 0.0, %v1426
    %v1428 = vpop.f32.mrb[0].mxu0
    %1429 = vdwg.mxu0
    %v1430 = vmul.f32 %v1318, %v1427
    %v1431 = vsel %vm622, %v1430, 0.0
    %1432 = vadd.xlane.f32.xlu0 %v1431
    %v1433 = vpop.xlane.xlu0 %1432
    %vm1434 = vcmp.gt.f32.partialorder %v1433, 1e-08
    %v1435 = vmax.f32 %v1433, 1e-08
    %v1436 = vrcp.pop %v1435
    %v1437 = vmul.f32 %v1313, %v1436
    %v1438 = vsel %vm1434, %v1437, 0.0
    %v1439 = vmul.f32 %v1438, %v1318
    %v1440 = vadd.f32 %v1290, %v1439
    %v1441 = vmul.f32 %v1438, %v1427
    %1443 = vrot.lane.b32.xlu0 %v1441, 72
    %v1444 = vpop.permute.xlu0 %1443
    %v1446 = vsub.f32 %v1296, %v1444
    %1448 = vrot.lane.b32.xlu0 %v1446, 56
    %v1449 = vpop.permute.xlu0 %1448
    %v1451 = vmul.f32 %v902, %v1449
    %1453 = vrot.lane.b32.xlu0 %v1451, 72
    %v1454 = vpop.permute.xlu0 %1453
    %v1456 = vmul.f32 %v1446, %v1454
    %1458 = vrot.lane.b32.xlu0 %v1456, 56
    %v1459 = vpop.permute.xlu0 %1458
    %v1461 = vsel %vm622, %v1459, 0.0
    %1462 = vadd.xlane.f32.xlu0 %v1461
    %v1463 = vpop.xlane.xlu0 %1462
    %v1464 = vmax.f32 %v1313, 1e-08
    %v1465 = vrcp.pop %v1464
    %v1466 = vmul.f32 %v1463, %v1465
    %v1467 = vmul.f32 %v1466, %v1318
    %v1468 = vadd.f32 %v1451, %v1467
    %1470 = vrot.lane.b32.xlu0 %v1468, 10
    %v1471 = vpop.permute.xlu0 %1470
    %1473 = vrot.lane.b32.xlu0 %v1468, 20
    %v1474 = vpop.permute.xlu0 %1473
    %1476 = vrot.lane.b32.xlu0 %v1468, 30
    %v1477 = vpop.permute.xlu0 %1476
    %1479 = vrot.lane.b32.xlu0 %v1468, 40
    %v1480 = vpop.permute.xlu0 %1479
    %1482 = vrot.lane.b32.xlu0 %v1468, 50
    %v1483 = vpop.permute.xlu0 %1482
    %1485 = vrot.lane.b32.xlu0 %v1468, 60
    %v1486 = vpop.permute.xlu0 %1485
    %1488 = vrot.lane.b32.xlu0 %v1468, 70
    %v1489 = vpop.permute.xlu0 %1488
    %1491 = vrot.lane.b32.xlu0 %v1468, 80
    %v1492 = vpop.permute.xlu0 %1491
    %1494 = vrot.lane.b32.xlu0 %v1468, 90
    %v1495 = vpop.permute.xlu0 %1494
    %v1497 = vsel %vm622, %v1468, %v1471
    %v1498 = vsel %vm1035, %v1497, %v1474
    %v1499 = vsel %vm1037, %v1498, %v1477
    %v1500 = vsel %vm1039, %v1499, %v1480
    %v1501 = vsel %vm1041, %v1500, %v1483
    %v1502 = vsel %vm1043, %v1501, %v1486
    %v1503 = vsel %vm1045, %v1502, %v1489
    %v1504 = vsel %vm1047, %v1503, %v1492
    %v1505 = vsel %vm1049, %v1504, %v1495
    %v1506 = vmul.f32 %v890, %v1505
    %v1508 = vsel %vm1052, %v1506, 0
    %1510 = vmatprep.subr.mxu0 0.0
    %1511 = vmatpush1.msra.mxu0 %v587
    %1512 = vmatprep.subr.mxu0 0.0
    %1513 = vmatpush1.msra.mxu0 %v588
    %1514 = vmatprep.subr.mxu0 0.0
    %1515 = vmatpush1.msra.mxu0 %v589
    %1516 = vmatprep.subr.mxu0 0.0
    %1517 = vmatpush1.msra.mxu0 %v590
    %1518 = vmatprep.subr.mxu0 0.0
    %1519 = vmatpush1.msra.mxu0 %v591
    %1520 = vmatprep.subr.mxu0 0.0
    %1521 = vmatpush1.msra.mxu0 %v592
    %1522 = vmatprep.subr.mxu0 0.0
    %1523 = vmatpush1.msra.mxu0 %v593
    %1524 = vmatprep.subr.mxu0 0.0
    %1525 = vmatpush1.msra.mxu0 %v594
    %1526 = vmatprep.subr.mxu0 0.0
    %1527 = vmatpush1.msra.mxu0 %v595
    %1528 = vmatprep.subr.mxu0 0.0
    %1529 = vmatpush1.msra.mxu0 %v596
    %1530 = vmatprep.subr.mxu0 0.0
    %1531 = vmatpush1.msra.mxu0 %v597
    %1532 = vmatprep.subr.mxu0 0.0
    %1533 = vmatpush1.msra.mxu0 %v598
    %1534 = vmatprep.subr.mxu0 0.0
    %1535 = vmatpush1.msra.mxu0 %v1058
    %1536 = vmatprep.subr.mxu0 0.0
    %1537 = vmatpush1.msra.mxu0 0.0
    %1538 = vmatprep.subr.mxu0 0.0
    %1539 = vmatpush1.msra.mxu0 0.0
    %1540 = vmatprep.subr.mxu0 0.0
    %1541 = vmatpush1.msra.mxu0 0.0
    %1542 = vmatprep.subr.mxu0 0.0
    %1543 = vmatpush1.msra.mxu0 0.0
    %1544 = vmatprep.subr.mxu0 0.0
    %1545 = vmatpush1.msra.mxu0 0.0
    %1546 = vmatprep.subr.mxu0 0.0
    %1547 = vmatpush1.msra.mxu0 0.0
    %1548 = vmatprep.subr.mxu0 0.0
    %1549 = vmatpush1.msra.mxu0 0.0
    %1550 = vmatprep.subr.mxu0 0.0
    %1551 = vmatpush1.msra.mxu0 0.0
    %1552 = vmatprep.subr.mxu0 0.0
    %1553 = vmatpush1.msra.mxu0 0.0
    %1554 = vmatprep.subr.mxu0 0.0
    %1555 = vmatpush1.msra.mxu0 0.0
    %1556 = vmatprep.subr.mxu0 0.0
    %1557 = vmatpush1.msra.mxu0 0.0
    %1558 = vmatprep.subr.mxu0 0.0
    %1559 = vmatpush1.msra.mxu0 0.0
    %1560 = vmatprep.subr.mxu0 0.0
    %1561 = vmatpush1.msra.mxu0 0.0
    %1562 = vmatprep.subr.mxu0 0.0
    %1563 = vmatpush1.msra.mxu0 0.0
    %1564 = vmatprep.subr.mxu0 0.0
    %1565 = vmatpush1.msra.mxu0 0.0
    %1566 = vmatprep.subr.mxu0 0.0
    %1567 = vmatpush1.msra.mxu0 0.0
    %1568 = vmatprep.subr.mxu0 0.0
    %1569 = vmatpush1.msra.mxu0 0.0
    %1570 = vmatprep.subr.mxu0 0.0
    %1571 = vmatpush1.msra.mxu0 0.0
    %1572 = vmatprep.subr.mxu0 0.0
    %1573 = vmatpush1.msra.mxu0 0.0
    %1574 = vmatprep.mubr.f32.mxu0 0.0
    %1575 = vmatmul.mubr.f32.gmra.mrb[0].mxu0 %v1508
    %v1576 = vpop.f32.mrb[0].mxu0
    %v1577 = vadd.f32 0.0, %v1576
    %v1578 = vpop.f32.mrb[0].mxu0
    %1579 = vdwg.mxu0
    %v1580 = vmul.f32 %v1468, %v1577
    %v1581 = vsel %vm622, %v1580, 0.0
    %1582 = vadd.xlane.f32.xlu0 %v1581
    %v1583 = vpop.xlane.xlu0 %1582
    %vm1584 = vcmp.gt.f32.partialorder %v1583, 1e-08
    %v1585 = vmax.f32 %v1583, 1e-08
    %v1586 = vrcp.pop %v1585
    %v1587 = vmul.f32 %v1463, %v1586
    %v1588 = vsel %vm1584, %v1587, 0.0
    %v1589 = vmul.f32 %v1588, %v1468
    %v1590 = vadd.f32 %v1440, %v1589
    %v1591 = vmul.f32 %v1588, %v1577
    %1593 = vrot.lane.b32.xlu0 %v1591, 72
    %v1594 = vpop.permute.xlu0 %1593
    %v1596 = vsub.f32 %v1446, %v1594
    %1598 = vrot.lane.b32.xlu0 %v1596, 56
    %v1599 = vpop.permute.xlu0 %1598
    %v1601 = vmul.f32 %v902, %v1599
    %1603 = vrot.lane.b32.xlu0 %v1601, 72
    %v1604 = vpop.permute.xlu0 %1603
    %v1606 = vmul.f32 %v1596, %v1604
    %1608 = vrot.lane.b32.xlu0 %v1606, 56
    %v1609 = vpop.permute.xlu0 %1608
    %v1611 = vsel %vm622, %v1609, 0.0
    %1612 = vadd.xlane.f32.xlu0 %v1611
    %v1613 = vpop.xlane.xlu0 %1612
    %v1614 = vmax.f32 %v1463, 1e-08
    %v1615 = vrcp.pop %v1614
    %v1616 = vmul.f32 %v1613, %v1615
    %v1617 = vmul.f32 %v1616, %v1468
    %v1618 = vadd.f32 %v1601, %v1617
    %1620 = vrot.lane.b32.xlu0 %v1618, 10
    %v1621 = vpop.permute.xlu0 %1620
    %1623 = vrot.lane.b32.xlu0 %v1618, 20
    %v1624 = vpop.permute.xlu0 %1623
    %1626 = vrot.lane.b32.xlu0 %v1618, 30
    %v1627 = vpop.permute.xlu0 %1626
    %1629 = vrot.lane.b32.xlu0 %v1618, 40
    %v1630 = vpop.permute.xlu0 %1629
    %1632 = vrot.lane.b32.xlu0 %v1618, 50
    %v1633 = vpop.permute.xlu0 %1632
    %1635 = vrot.lane.b32.xlu0 %v1618, 60
    %v1636 = vpop.permute.xlu0 %1635
    %1638 = vrot.lane.b32.xlu0 %v1618, 70
    %v1639 = vpop.permute.xlu0 %1638
    %1641 = vrot.lane.b32.xlu0 %v1618, 80
    %v1642 = vpop.permute.xlu0 %1641
    %1644 = vrot.lane.b32.xlu0 %v1618, 90
    %v1645 = vpop.permute.xlu0 %1644
    %v1647 = vsel %vm622, %v1618, %v1621
    %v1648 = vsel %vm1035, %v1647, %v1624
    %v1649 = vsel %vm1037, %v1648, %v1627
    %v1650 = vsel %vm1039, %v1649, %v1630
    %v1651 = vsel %vm1041, %v1650, %v1633
    %v1652 = vsel %vm1043, %v1651, %v1636
    %v1653 = vsel %vm1045, %v1652, %v1639
    %v1654 = vsel %vm1047, %v1653, %v1642
    %v1655 = vsel %vm1049, %v1654, %v1645
    %v1656 = vmul.f32 %v890, %v1655
    %v1658 = vsel %vm1052, %v1656, 0
    %1660 = vmatprep.subr.mxu0 0.0
    %1661 = vmatpush1.msra.mxu0 %v587
    %1662 = vmatprep.subr.mxu0 0.0
    %1663 = vmatpush1.msra.mxu0 %v588
    %1664 = vmatprep.subr.mxu0 0.0
    %1665 = vmatpush1.msra.mxu0 %v589
    %1666 = vmatprep.subr.mxu0 0.0
    %1667 = vmatpush1.msra.mxu0 %v590
    %1668 = vmatprep.subr.mxu0 0.0
    %1669 = vmatpush1.msra.mxu0 %v591
    %1670 = vmatprep.subr.mxu0 0.0
    %1671 = vmatpush1.msra.mxu0 %v592
    %1672 = vmatprep.subr.mxu0 0.0
    %1673 = vmatpush1.msra.mxu0 %v593
    %1674 = vmatprep.subr.mxu0 0.0
    %1675 = vmatpush1.msra.mxu0 %v594
    %1676 = vmatprep.subr.mxu0 0.0
    %1677 = vmatpush1.msra.mxu0 %v595
    %1678 = vmatprep.subr.mxu0 0.0
    %1679 = vmatpush1.msra.mxu0 %v596
    %1680 = vmatprep.subr.mxu0 0.0
    %1681 = vmatpush1.msra.mxu0 %v597
    %1682 = vmatprep.subr.mxu0 0.0
    %1683 = vmatpush1.msra.mxu0 %v598
    %1684 = vmatprep.subr.mxu0 0.0
    %1685 = vmatpush1.msra.mxu0 %v1058
    %1686 = vmatprep.subr.mxu0 0.0
    %1687 = vmatpush1.msra.mxu0 0.0
    %1688 = vmatprep.subr.mxu0 0.0
    %1689 = vmatpush1.msra.mxu0 0.0
    %1690 = vmatprep.subr.mxu0 0.0
    %1691 = vmatpush1.msra.mxu0 0.0
    %1692 = vmatprep.subr.mxu0 0.0
    %1693 = vmatpush1.msra.mxu0 0.0
    %1694 = vmatprep.subr.mxu0 0.0
    %1695 = vmatpush1.msra.mxu0 0.0
    %1696 = vmatprep.subr.mxu0 0.0
    %1697 = vmatpush1.msra.mxu0 0.0
    %1698 = vmatprep.subr.mxu0 0.0
    %1699 = vmatpush1.msra.mxu0 0.0
    %1700 = vmatprep.subr.mxu0 0.0
    %1701 = vmatpush1.msra.mxu0 0.0
    %1702 = vmatprep.subr.mxu0 0.0
    %1703 = vmatpush1.msra.mxu0 0.0
    %1704 = vmatprep.subr.mxu0 0.0
    %1705 = vmatpush1.msra.mxu0 0.0
    %1706 = vmatprep.subr.mxu0 0.0
    %1707 = vmatpush1.msra.mxu0 0.0
    %1708 = vmatprep.subr.mxu0 0.0
    %1709 = vmatpush1.msra.mxu0 0.0
    %1710 = vmatprep.subr.mxu0 0.0
    %1711 = vmatpush1.msra.mxu0 0.0
    %1712 = vmatprep.subr.mxu0 0.0
    %1713 = vmatpush1.msra.mxu0 0.0
    %1714 = vmatprep.subr.mxu0 0.0
    %1715 = vmatpush1.msra.mxu0 0.0
    %1716 = vmatprep.subr.mxu0 0.0
    %1717 = vmatpush1.msra.mxu0 0.0
    %1718 = vmatprep.subr.mxu0 0.0
    %1719 = vmatpush1.msra.mxu0 0.0
    %1720 = vmatprep.subr.mxu0 0.0
    %1721 = vmatpush1.msra.mxu0 0.0
    %1722 = vmatprep.subr.mxu0 0.0
    %1723 = vmatpush1.msra.mxu0 0.0
    %1724 = vmatprep.mubr.f32.mxu0 0.0
    %1725 = vmatmul.mubr.f32.gmra.mrb[0].mxu0 %v1658
    %v1726 = vpop.f32.mrb[0].mxu0
    %v1727 = vadd.f32 0.0, %v1726
    %v1728 = vpop.f32.mrb[0].mxu0
    %1729 = vdwg.mxu0
    %v1730 = vmul.f32 %v1618, %v1727
    %v1731 = vsel %vm622, %v1730, 0.0
    %1732 = vadd.xlane.f32.xlu0 %v1731
    %v1733 = vpop.xlane.xlu0 %1732
    %vm1734 = vcmp.gt.f32.partialorder %v1733, 1e-08
    %v1735 = vmax.f32 %v1733, 1e-08
    %v1736 = vrcp.pop %v1735
    %v1737 = vmul.f32 %v1613, %v1736
    %v1738 = vsel %vm1734, %v1737, 0.0
    %v1739 = vmul.f32 %v1738, %v1618
    %v1740 = vadd.f32 %v1590, %v1739
    %v1741 = vmul.f32 %v1738, %v1727
    %1743 = vrot.lane.b32.xlu0 %v1741, 72
    %v1744 = vpop.permute.xlu0 %1743
    %v1746 = vsub.f32 %v1596, %v1744
    %1748 = vrot.lane.b32.xlu0 %v1746, 56
    %v1749 = vpop.permute.xlu0 %1748
    %v1751 = vmul.f32 %v902, %v1749
    %1753 = vrot.lane.b32.xlu0 %v1751, 72
    %v1754 = vpop.permute.xlu0 %1753
    %v1756 = vmul.f32 %v1746, %v1754
    %1758 = vrot.lane.b32.xlu0 %v1756, 56
    %v1759 = vpop.permute.xlu0 %1758
    %v1761 = vsel %vm622, %v1759, 0.0
    %1762 = vadd.xlane.f32.xlu0 %v1761
    %v1763 = vpop.xlane.xlu0 %1762
    %v1764 = vmax.f32 %v1613, 1e-08
    %v1765 = vrcp.pop %v1764
    %v1766 = vmul.f32 %v1763, %v1765
    %v1767 = vmul.f32 %v1766, %v1618
    %v1768 = vadd.f32 %v1751, %v1767
    %1770 = vrot.lane.b32.xlu0 %v1768, 10
    %v1771 = vpop.permute.xlu0 %1770
    %1773 = vrot.lane.b32.xlu0 %v1768, 20
    %v1774 = vpop.permute.xlu0 %1773
    %1776 = vrot.lane.b32.xlu0 %v1768, 30
    %v1777 = vpop.permute.xlu0 %1776
    %1779 = vrot.lane.b32.xlu0 %v1768, 40
    %v1780 = vpop.permute.xlu0 %1779
    %1782 = vrot.lane.b32.xlu0 %v1768, 50
    %v1783 = vpop.permute.xlu0 %1782
    %1785 = vrot.lane.b32.xlu0 %v1768, 60
    %v1786 = vpop.permute.xlu0 %1785
    %1788 = vrot.lane.b32.xlu0 %v1768, 70
    %v1789 = vpop.permute.xlu0 %1788
    %1791 = vrot.lane.b32.xlu0 %v1768, 80
    %v1792 = vpop.permute.xlu0 %1791
    %1794 = vrot.lane.b32.xlu0 %v1768, 90
    %v1795 = vpop.permute.xlu0 %1794
    %v1797 = vsel %vm622, %v1768, %v1771
    %v1798 = vsel %vm1035, %v1797, %v1774
    %v1799 = vsel %vm1037, %v1798, %v1777
    %v1800 = vsel %vm1039, %v1799, %v1780
    %v1801 = vsel %vm1041, %v1800, %v1783
    %v1802 = vsel %vm1043, %v1801, %v1786
    %v1803 = vsel %vm1045, %v1802, %v1789
    %v1804 = vsel %vm1047, %v1803, %v1792
    %v1805 = vsel %vm1049, %v1804, %v1795
    %v1806 = vmul.f32 %v890, %v1805
    %v1808 = vsel %vm1052, %v1806, 0
    %1810 = vmatprep.subr.mxu0 0.0
    %1811 = vmatpush1.msra.mxu0 %v587
    %1812 = vmatprep.subr.mxu0 0.0
    %1813 = vmatpush1.msra.mxu0 %v588
    %1814 = vmatprep.subr.mxu0 0.0
    %1815 = vmatpush1.msra.mxu0 %v589
    %1816 = vmatprep.subr.mxu0 0.0
    %1817 = vmatpush1.msra.mxu0 %v590
    %1818 = vmatprep.subr.mxu0 0.0
    %1819 = vmatpush1.msra.mxu0 %v591
    %1820 = vmatprep.subr.mxu0 0.0
    %1821 = vmatpush1.msra.mxu0 %v592
    %1822 = vmatprep.subr.mxu0 0.0
    %1823 = vmatpush1.msra.mxu0 %v593
    %1824 = vmatprep.subr.mxu0 0.0
    %1825 = vmatpush1.msra.mxu0 %v594
    %1826 = vmatprep.subr.mxu0 0.0
    %1827 = vmatpush1.msra.mxu0 %v595
    %1828 = vmatprep.subr.mxu0 0.0
    %1829 = vmatpush1.msra.mxu0 %v596
    %1830 = vmatprep.subr.mxu0 0.0
    %1831 = vmatpush1.msra.mxu0 %v597
    %1832 = vmatprep.subr.mxu0 0.0
    %1833 = vmatpush1.msra.mxu0 %v598
    %1834 = vmatprep.subr.mxu0 0.0
    %1835 = vmatpush1.msra.mxu0 %v1058
    %1836 = vmatprep.subr.mxu0 0.0
    %1837 = vmatpush1.msra.mxu0 0.0
    %1838 = vmatprep.subr.mxu0 0.0
    %1839 = vmatpush1.msra.mxu0 0.0
    %1840 = vmatprep.subr.mxu0 0.0
    %1841 = vmatpush1.msra.mxu0 0.0
    %1842 = vmatprep.subr.mxu0 0.0
    %1843 = vmatpush1.msra.mxu0 0.0
    %1844 = vmatprep.subr.mxu0 0.0
    %1845 = vmatpush1.msra.mxu0 0.0
    %1846 = vmatprep.subr.mxu0 0.0
    %1847 = vmatpush1.msra.mxu0 0.0
    %1848 = vmatprep.subr.mxu0 0.0
    %1849 = vmatpush1.msra.mxu0 0.0
    %1850 = vmatprep.subr.mxu0 0.0
    %1851 = vmatpush1.msra.mxu0 0.0
    %1852 = vmatprep.subr.mxu0 0.0
    %1853 = vmatpush1.msra.mxu0 0.0
    %1854 = vmatprep.subr.mxu0 0.0
    %1855 = vmatpush1.msra.mxu0 0.0
    %1856 = vmatprep.subr.mxu0 0.0
    %1857 = vmatpush1.msra.mxu0 0.0
    %1858 = vmatprep.subr.mxu0 0.0
    %1859 = vmatpush1.msra.mxu0 0.0
    %1860 = vmatprep.subr.mxu0 0.0
    %1861 = vmatpush1.msra.mxu0 0.0
    %1862 = vmatprep.subr.mxu0 0.0
    %1863 = vmatpush1.msra.mxu0 0.0
    %1864 = vmatprep.subr.mxu0 0.0
    %1865 = vmatpush1.msra.mxu0 0.0
    %1866 = vmatprep.subr.mxu0 0.0
    %1867 = vmatpush1.msra.mxu0 0.0
    %1868 = vmatprep.subr.mxu0 0.0
    %1869 = vmatpush1.msra.mxu0 0.0
    %1870 = vmatprep.subr.mxu0 0.0
    %1871 = vmatpush1.msra.mxu0 0.0
    %1872 = vmatprep.subr.mxu0 0.0
    %1873 = vmatpush1.msra.mxu0 0.0
    %1874 = vmatprep.mubr.f32.mxu0 0.0
    %1875 = vmatmul.mubr.f32.gmra.mrb[0].mxu0 %v1808
    %v1876 = vpop.f32.mrb[0].mxu0
    %v1877 = vadd.f32 0.0, %v1876
    %v1878 = vpop.f32.mrb[0].mxu0
    %1879 = vdwg.mxu0
    %v1880 = vmul.f32 %v1768, %v1877
    %v1881 = vsel %vm622, %v1880, 0.0
    %1882 = vadd.xlane.f32.xlu0 %v1881
    %v1883 = vpop.xlane.xlu0 %1882
    %vm1884 = vcmp.gt.f32.partialorder %v1883, 1e-08
    %v1885 = vmax.f32 %v1883, 1e-08
    %v1886 = vrcp.pop %v1885
    %v1887 = vmul.f32 %v1763, %v1886
    %v1888 = vsel %vm1884, %v1887, 0.0
    %v1889 = vmul.f32 %v1888, %v1768
    %v1890 = vadd.f32 %v1740, %v1889
    %v1891 = vmul.f32 %v1888, %v1877
    %1893 = vrot.lane.b32.xlu0 %v1891, 72
    %v1894 = vpop.permute.xlu0 %1893
    %v1896 = vsub.f32 %v1746, %v1894
    %1898 = vrot.lane.b32.xlu0 %v1896, 56
    %v1899 = vpop.permute.xlu0 %1898
    %v1901 = vmul.f32 %v902, %v1899
    %1903 = vrot.lane.b32.xlu0 %v1901, 72
    %v1904 = vpop.permute.xlu0 %1903
    %v1906 = vmul.f32 %v1896, %v1904
    %1908 = vrot.lane.b32.xlu0 %v1906, 56
    %v1909 = vpop.permute.xlu0 %1908
    %v1911 = vsel %vm622, %v1909, 0.0
    %1912 = vadd.xlane.f32.xlu0 %v1911
    %v1913 = vpop.xlane.xlu0 %1912
    %v1914 = vmax.f32 %v1763, 1e-08
    %v1915 = vrcp.pop %v1914
    %v1916 = vmul.f32 %v1913, %v1915
    %v1917 = vmul.f32 %v1916, %v1768
    %v1918 = vadd.f32 %v1901, %v1917
    %1920 = vrot.lane.b32.xlu0 %v1918, 10
    %v1921 = vpop.permute.xlu0 %1920
    %1923 = vrot.lane.b32.xlu0 %v1918, 20
    %v1924 = vpop.permute.xlu0 %1923
    %1926 = vrot.lane.b32.xlu0 %v1918, 30
    %v1927 = vpop.permute.xlu0 %1926
    %1929 = vrot.lane.b32.xlu0 %v1918, 40
    %v1930 = vpop.permute.xlu0 %1929
    %1932 = vrot.lane.b32.xlu0 %v1918, 50
    %v1933 = vpop.permute.xlu0 %1932
    %1935 = vrot.lane.b32.xlu0 %v1918, 60
    %v1936 = vpop.permute.xlu0 %1935
    %1938 = vrot.lane.b32.xlu0 %v1918, 70
    %v1939 = vpop.permute.xlu0 %1938
    %1941 = vrot.lane.b32.xlu0 %v1918, 80
    %v1942 = vpop.permute.xlu0 %1941
    %1944 = vrot.lane.b32.xlu0 %v1918, 90
    %v1945 = vpop.permute.xlu0 %1944
    %v1947 = vsel %vm622, %v1918, %v1921
    %v1948 = vsel %vm1035, %v1947, %v1924
    %v1949 = vsel %vm1037, %v1948, %v1927
    %v1950 = vsel %vm1039, %v1949, %v1930
    %v1951 = vsel %vm1041, %v1950, %v1933
    %v1952 = vsel %vm1043, %v1951, %v1936
    %v1953 = vsel %vm1045, %v1952, %v1939
    %v1954 = vsel %vm1047, %v1953, %v1942
    %v1955 = vsel %vm1049, %v1954, %v1945
    %v1956 = vmul.f32 %v890, %v1955
    %v1958 = vsel %vm1052, %v1956, 0
    %1960 = vmatprep.subr.mxu0 0.0
    %1961 = vmatpush1.msra.mxu0 %v587
    %1962 = vmatprep.subr.mxu0 0.0
    %1963 = vmatpush1.msra.mxu0 %v588
    %1964 = vmatprep.subr.mxu0 0.0
    %1965 = vmatpush1.msra.mxu0 %v589
    %1966 = vmatprep.subr.mxu0 0.0
    %1967 = vmatpush1.msra.mxu0 %v590
    %1968 = vmatprep.subr.mxu0 0.0
    %1969 = vmatpush1.msra.mxu0 %v591
    %1970 = vmatprep.subr.mxu0 0.0
    %1971 = vmatpush1.msra.mxu0 %v592
    %1972 = vmatprep.subr.mxu0 0.0
    %1973 = vmatpush1.msra.mxu0 %v593
    %1974 = vmatprep.subr.mxu0 0.0
    %1975 = vmatpush1.msra.mxu0 %v594
    %1976 = vmatprep.subr.mxu0 0.0
    %1977 = vmatpush1.msra.mxu0 %v595
    %1978 = vmatprep.subr.mxu0 0.0
    %1979 = vmatpush1.msra.mxu0 %v596
    %1980 = vmatprep.subr.mxu0 0.0
    %1981 = vmatpush1.msra.mxu0 %v597
    %1982 = vmatprep.subr.mxu0 0.0
    %1983 = vmatpush1.msra.mxu0 %v598
    %1984 = vmatprep.subr.mxu0 0.0
    %1985 = vmatpush1.msra.mxu0 %v1058
    %1986 = vmatprep.subr.mxu0 0.0
    %1987 = vmatpush1.msra.mxu0 0.0
    %1988 = vmatprep.subr.mxu0 0.0
    %1989 = vmatpush1.msra.mxu0 0.0
    %1990 = vmatprep.subr.mxu0 0.0
    %1991 = vmatpush1.msra.mxu0 0.0
    %1992 = vmatprep.subr.mxu0 0.0
    %1993 = vmatpush1.msra.mxu0 0.0
    %1994 = vmatprep.subr.mxu0 0.0
    %1995 = vmatpush1.msra.mxu0 0.0
    %1996 = vmatprep.subr.mxu0 0.0
    %1997 = vmatpush1.msra.mxu0 0.0
    %1998 = vmatprep.subr.mxu0 0.0
    %1999 = vmatpush1.msra.mxu0 0.0
    %2000 = vmatprep.subr.mxu0 0.0
    %2001 = vmatpush1.msra.mxu0 0.0
    %2002 = vmatprep.subr.mxu0 0.0
    %2003 = vmatpush1.msra.mxu0 0.0
    %2004 = vmatprep.subr.mxu0 0.0
    %2005 = vmatpush1.msra.mxu0 0.0
    %2006 = vmatprep.subr.mxu0 0.0
    %2007 = vmatpush1.msra.mxu0 0.0
    %2008 = vmatprep.subr.mxu0 0.0
    %2009 = vmatpush1.msra.mxu0 0.0
    %2010 = vmatprep.subr.mxu0 0.0
    %2011 = vmatpush1.msra.mxu0 0.0
    %2012 = vmatprep.subr.mxu0 0.0
    %2013 = vmatpush1.msra.mxu0 0.0
    %2014 = vmatprep.subr.mxu0 0.0
    %2015 = vmatpush1.msra.mxu0 0.0
    %2016 = vmatprep.subr.mxu0 0.0
    %2017 = vmatpush1.msra.mxu0 0.0
    %2018 = vmatprep.subr.mxu0 0.0
    %2019 = vmatpush1.msra.mxu0 0.0
    %2020 = vmatprep.subr.mxu0 0.0
    %2021 = vmatpush1.msra.mxu0 0.0
    %2022 = vmatprep.subr.mxu0 0.0
    %2023 = vmatpush1.msra.mxu0 0.0
    %2024 = vmatprep.mubr.f32.mxu0 0.0
    %2025 = vmatmul.mubr.f32.gmra.mrb[0].mxu0 %v1958
    %v2026 = vpop.f32.mrb[0].mxu0
    %v2027 = vadd.f32 0.0, %v2026
    %v2028 = vpop.f32.mrb[0].mxu0
    %2029 = vdwg.mxu0
    %v2030 = vmul.f32 %v1918, %v2027
    %v2031 = vsel %vm622, %v2030, 0.0
    %2032 = vadd.xlane.f32.xlu0 %v2031
    %v2033 = vpop.xlane.xlu0 %2032
    %vm2034 = vcmp.gt.f32.partialorder %v2033, 1e-08
    %v2035 = vmax.f32 %v2033, 1e-08
    %v2036 = vrcp.pop %v2035
    %v2037 = vmul.f32 %v1913, %v2036
    %v2038 = vsel %vm2034, %v2037, 0.0
    %v2039 = vmul.f32 %v2038, %v1918
    %v2040 = vadd.f32 %v1890, %v2039
    %v2041 = vmul.f32 %v2038, %v2027
    %2043 = vrot.lane.b32.xlu0 %v2041, 72
    %v2044 = vpop.permute.xlu0 %2043
    %v2046 = vsub.f32 %v1896, %v2044
    %2048 = vrot.lane.b32.xlu0 %v2046, 56
    %v2049 = vpop.permute.xlu0 %2048
    %v2051 = vmul.f32 %v902, %v2049
    %2053 = vrot.lane.b32.xlu0 %v2051, 72
    %v2054 = vpop.permute.xlu0 %2053
    %v2056 = vmul.f32 %v2046, %v2054
    %2058 = vrot.lane.b32.xlu0 %v2056, 56
    %v2059 = vpop.permute.xlu0 %2058
    %v2061 = vsel %vm622, %v2059, 0.0
    %2062 = vadd.xlane.f32.xlu0 %v2061
    %v2063 = vpop.xlane.xlu0 %2062
    %v2064 = vmax.f32 %v1913, 1e-08
    %v2065 = vrcp.pop %v2064
    %v2066 = vmul.f32 %v2063, %v2065
    %v2067 = vmul.f32 %v2066, %v1918
    %v2068 = vadd.f32 %v2051, %v2067
    %2070 = vrot.lane.b32.xlu0 %v2068, 10
    %v2071 = vpop.permute.xlu0 %2070
    %2073 = vrot.lane.b32.xlu0 %v2068, 20
    %v2074 = vpop.permute.xlu0 %2073
    %2076 = vrot.lane.b32.xlu0 %v2068, 30
    %v2077 = vpop.permute.xlu0 %2076
    %2079 = vrot.lane.b32.xlu0 %v2068, 40
    %v2080 = vpop.permute.xlu0 %2079
    %2082 = vrot.lane.b32.xlu0 %v2068, 50
    %v2083 = vpop.permute.xlu0 %2082
    %2085 = vrot.lane.b32.xlu0 %v2068, 60
    %v2086 = vpop.permute.xlu0 %2085
    %2088 = vrot.lane.b32.xlu0 %v2068, 70
    %v2089 = vpop.permute.xlu0 %2088
    %2091 = vrot.lane.b32.xlu0 %v2068, 80
    %v2092 = vpop.permute.xlu0 %2091
    %2094 = vrot.lane.b32.xlu0 %v2068, 90
    %v2095 = vpop.permute.xlu0 %2094
    %v2097 = vsel %vm622, %v2068, %v2071
    %v2098 = vsel %vm1035, %v2097, %v2074
    %v2099 = vsel %vm1037, %v2098, %v2077
    %v2100 = vsel %vm1039, %v2099, %v2080
    %v2101 = vsel %vm1041, %v2100, %v2083
    %v2102 = vsel %vm1043, %v2101, %v2086
    %v2103 = vsel %vm1045, %v2102, %v2089
    %v2104 = vsel %vm1047, %v2103, %v2092
    %v2105 = vsel %vm1049, %v2104, %v2095
    %v2106 = vmul.f32 %v890, %v2105
    %v2108 = vsel %vm1052, %v2106, 0
    %2110 = vmatprep.subr.mxu0 0.0
    %2111 = vmatpush1.msra.mxu0 %v587
    %2112 = vmatprep.subr.mxu0 0.0
    %2113 = vmatpush1.msra.mxu0 %v588
    %2114 = vmatprep.subr.mxu0 0.0
    %2115 = vmatpush1.msra.mxu0 %v589
    %2116 = vmatprep.subr.mxu0 0.0
    %2117 = vmatpush1.msra.mxu0 %v590
    %2118 = vmatprep.subr.mxu0 0.0
    %2119 = vmatpush1.msra.mxu0 %v591
    %2120 = vmatprep.subr.mxu0 0.0
    %2121 = vmatpush1.msra.mxu0 %v592
    %2122 = vmatprep.subr.mxu0 0.0
    %2123 = vmatpush1.msra.mxu0 %v593
    %2124 = vmatprep.subr.mxu0 0.0
    %2125 = vmatpush1.msra.mxu0 %v594
    %2126 = vmatprep.subr.mxu0 0.0
    %2127 = vmatpush1.msra.mxu0 %v595
    %2128 = vmatprep.subr.mxu0 0.0
    %2129 = vmatpush1.msra.mxu0 %v596
    %2130 = vmatprep.subr.mxu0 0.0
    %2131 = vmatpush1.msra.mxu0 %v597
    %2132 = vmatprep.subr.mxu0 0.0
    %2133 = vmatpush1.msra.mxu0 %v598
    %2134 = vmatprep.subr.mxu0 0.0
    %2135 = vmatpush1.msra.mxu0 %v1058
    %2136 = vmatprep.subr.mxu0 0.0
    %2137 = vmatpush1.msra.mxu0 0.0
    %2138 = vmatprep.subr.mxu0 0.0
    %2139 = vmatpush1.msra.mxu0 0.0
    %2140 = vmatprep.subr.mxu0 0.0
    %2141 = vmatpush1.msra.mxu0 0.0
    %2142 = vmatprep.subr.mxu0 0.0
    %2143 = vmatpush1.msra.mxu0 0.0
    %2144 = vmatprep.subr.mxu0 0.0
    %2145 = vmatpush1.msra.mxu0 0.0
    %2146 = vmatprep.subr.mxu0 0.0
    %2147 = vmatpush1.msra.mxu0 0.0
    %2148 = vmatprep.subr.mxu0 0.0
    %2149 = vmatpush1.msra.mxu0 0.0
    %2150 = vmatprep.subr.mxu0 0.0
    %2151 = vmatpush1.msra.mxu0 0.0
    %2152 = vmatprep.subr.mxu0 0.0
    %2153 = vmatpush1.msra.mxu0 0.0
    %2154 = vmatprep.subr.mxu0 0.0
    %2155 = vmatpush1.msra.mxu0 0.0
    %2156 = vmatprep.subr.mxu0 0.0
    %2157 = vmatpush1.msra.mxu0 0.0
    %2158 = vmatprep.subr.mxu0 0.0
    %2159 = vmatpush1.msra.mxu0 0.0
    %2160 = vmatprep.subr.mxu0 0.0
    %2161 = vmatpush1.msra.mxu0 0.0
    %2162 = vmatprep.subr.mxu0 0.0
    %2163 = vmatpush1.msra.mxu0 0.0
    %2164 = vmatprep.subr.mxu0 0.0
    %2165 = vmatpush1.msra.mxu0 0.0
    %2166 = vmatprep.subr.mxu0 0.0
    %2167 = vmatpush1.msra.mxu0 0.0
    %2168 = vmatprep.subr.mxu0 0.0
    %2169 = vmatpush1.msra.mxu0 0.0
    %2170 = vmatprep.subr.mxu0 0.0
    %2171 = vmatpush1.msra.mxu0 0.0
    %2172 = vmatprep.subr.mxu0 0.0
    %2173 = vmatpush1.msra.mxu0 0.0
    %2174 = vmatprep.mubr.f32.mxu0 0.0
    %2175 = vmatmul.mubr.f32.gmra.mrb[0].mxu0 %v2108
    %v2176 = vpop.f32.mrb[0].mxu0
    %v2177 = vadd.f32 0.0, %v2176
    %v2178 = vpop.f32.mrb[0].mxu0
    %2179 = vdwg.mxu0
    %v2180 = vmul.f32 %v2068, %v2177
    %v2181 = vsel %vm622, %v2180, 0.0
    %2182 = vadd.xlane.f32.xlu0 %v2181
    %v2183 = vpop.xlane.xlu0 %2182
    %vm2184 = vcmp.gt.f32.partialorder %v2183, 1e-08
    %v2185 = vmax.f32 %v2183, 1e-08
    %v2186 = vrcp.pop %v2185
    %v2187 = vmul.f32 %v2063, %v2186
    %v2188 = vsel %vm2184, %v2187, 0.0
    %v2189 = vmul.f32 %v2188, %v2068
    %v2190 = vadd.f32 %v2040, %v2189
    %v2192 = vsel %vm622, %v2190, 0
    %v2195 = vsel %vm626, %v560, 0
    %v2198 = vsel %vm626, %v561, 0
    %2200 = vmatprep.subr.mxu0 %v559
    %2201 = vmatpush1.msra.mxu0 %v558
    %2202 = vmatprep.subr.mxu0 %v2198
    %2203 = vmatpush1.msra.mxu0 %v2195
    %2204 = vmatprep.subr.mxu0 0.0
    %2205 = vmatpush1.msra.mxu0 0.0
    %2206 = vmatprep.subr.mxu0 0.0
    %2207 = vmatpush1.msra.mxu0 0.0
    %2208 = vmatprep.subr.mxu0 0.0
    %2209 = vmatpush1.msra.mxu0 0.0
    %2210 = vmatprep.subr.mxu0 0.0
    %2211 = vmatpush1.msra.mxu0 0.0
    %2212 = vmatprep.subr.mxu0 0.0
    %2213 = vmatpush1.msra.mxu0 0.0
    %2214 = vmatprep.subr.mxu0 0.0
    %2215 = vmatpush1.msra.mxu0 0.0
    %2216 = vmatprep.subr.mxu0 0.0
    %2217 = vmatpush1.msra.mxu0 0.0
    %2218 = vmatprep.subr.mxu0 0.0
    %2219 = vmatpush1.msra.mxu0 0.0
    %2220 = vmatprep.subr.mxu0 0.0
    %2221 = vmatpush1.msra.mxu0 0.0
    %2222 = vmatprep.subr.mxu0 0.0
    %2223 = vmatpush1.msra.mxu0 0.0
    %2224 = vmatprep.subr.mxu0 0.0
    %2225 = vmatpush1.msra.mxu0 0.0
    %2226 = vmatprep.subr.mxu0 0.0
    %2227 = vmatpush1.msra.mxu0 0.0
    %2228 = vmatprep.subr.mxu0 0.0
    %2229 = vmatpush1.msra.mxu0 0.0
    %2230 = vmatprep.subr.mxu0 0.0
    %2231 = vmatpush1.msra.mxu0 0.0
    %2232 = vmatprep.subr.mxu0 0.0
    %2233 = vmatpush1.msra.mxu0 0.0
    %2234 = vmatprep.subr.mxu0 0.0
    %2235 = vmatpush1.msra.mxu0 0.0
    %2236 = vmatprep.subr.mxu0 0.0
    %2237 = vmatpush1.msra.mxu0 0.0
    %2238 = vmatprep.subr.mxu0 0.0
    %2239 = vmatpush1.msra.mxu0 0.0
    %2240 = vmatprep.subr.mxu0 0.0
    %2241 = vmatpush1.msra.mxu0 0.0
    %2242 = vmatprep.subr.mxu0 0.0
    %2243 = vmatpush1.msra.mxu0 0.0
    %2244 = vmatprep.subr.mxu0 0.0
    %2245 = vmatpush1.msra.mxu0 0.0
    %2246 = vmatprep.subr.mxu0 0.0
    %2247 = vmatpush1.msra.mxu0 0.0
    %2248 = vmatprep.subr.mxu0 0.0
    %2249 = vmatpush1.msra.mxu0 0.0
    %2250 = vmatprep.subr.mxu0 0.0
    %2251 = vmatpush1.msra.mxu0 0.0
    %2252 = vmatprep.subr.mxu0 0.0
    %2253 = vmatpush1.msra.mxu0 0.0
    %2254 = vmatprep.subr.mxu0 0.0
    %2255 = vmatpush1.msra.mxu0 0.0
    %2256 = vmatprep.subr.mxu0 0.0
    %2257 = vmatpush1.msra.mxu0 0.0
    %2258 = vmatprep.subr.mxu0 0.0
    %2259 = vmatpush1.msra.mxu0 0.0
    %2260 = vmatprep.subr.mxu0 0.0
    %2261 = vmatpush1.msra.mxu0 0.0
    %2262 = vmatprep.subr.mxu0 0.0
    %2263 = vmatpush1.msra.mxu0 0.0
    %2264 = vmatprep.mubr.f32.mxu0 0.0
    %2265 = vmatmul.mubr.f32.gmra.mrb[0].mxu0 %v2192
    %v2266 = vpop.f32.mrb[0].mxu0
    %v2267 = vadd.f32 0.0, %v2266
    %v2268 = vpop.f32.mrb[0].mxu0
    %v2269 = vadd.f32 0.0, %v2268
    %2270 = vdwg.mxu0
    %v2271 = vsub.f32 0.0, %v801
    %v2272 = vsub.f32 0.0, %v802
    %v2273 = vsub.f32 %v2271, %v2267
    %v2274 = vsub.f32 %v2272, %v2269
    %v2275 = vmul.f32 %v620, %v2267
    %v2276 = vmul.f32 %v621, %v2269
    %v2277 = vadd.f32 %v909, %v2275
    %v2278 = vadd.f32 %v910, %v2276
    %vm2279 = vcmp.lt.f32.partialorder %v2273, 0.0
    %vm2280 = vcmp.lt.f32.partialorder %v2274, 0.0
    %v2281 = vsel %vm2279, %v2273, -1.0
    %v2282 = vsel %vm2280, %v2274, -1.0
    %v2283 = vrcp.pop %v2281
    %v2284 = vrcp.pop %v2282
    %vm2285 = vcmp.lt.f32.partialorder %v2277, 0.0
    %vm2286 = vcmp.lt.f32.partialorder %v2278, 0.0
    %v2287 = vsel %vm2285, %v2277, -1.0
    %v2288 = vsel %vm2286, %v2278, -1.0
    %v2289 = vrcp.pop %v2287
    %v2290 = vrcp.pop %v2288
    %v2291 = vsub.f32 0.0, %v608
    %v2292 = vsub.f32 0.0, %v609
    %v2293 = vmul.f32 %v2291, %v2283
    %v2294 = vmul.f32 %v2292, %v2284
    %v2295 = vsel %vm2279, %v2293, 1e+30
    %v2296 = vsel %vm2280, %v2294, 1e+30
    %v2297 = vsub.f32 0.0, %v610
    %v2298 = vsub.f32 0.0, %v611
    %v2299 = vmul.f32 %v2297, %v2289
    %v2300 = vmul.f32 %v2298, %v2290
    %v2301 = vsel %vm2285, %v2299, 1e+30
    %v2302 = vsel %vm2286, %v2300, 1e+30
    %v2303 = vsel %vm709, %v2296, inf
    %v2304 = vmin.f32 %v2295, %v2303
    %2305 = vmin.xlane.f32.xlu0 %v2304
    %v2306 = vpop.xlane.xlu0 %2305
    %v2307 = vsel %vm709, %v2302, inf
    %v2308 = vmin.f32 %v2301, %v2307
    %2309 = vmin.xlane.f32.xlu0 %v2308
    %v2310 = vpop.xlane.xlu0 %2309
    %v2311 = vmin.f32 %v2306, %v2310
    %v2312 = vmin.f32 %v2311, 1.0
    %v2313 = vmul.f32 %v2312, %v2273
    %v2314 = vmul.f32 %v2312, %v2274
    %v2315 = vadd.f32 %v608, %v2313
    %v2316 = vadd.f32 %v609, %v2314
    %v2317 = vmul.f32 %v2312, %v2277
    %v2318 = vmul.f32 %v2312, %v2278
    %v2319 = vadd.f32 %v610, %v2317
    %v2320 = vadd.f32 %v611, %v2318
    %v2321 = vmul.f32 %v2315, %v2319
    %v2322 = vmul.f32 %v2316, %v2320
    %v2323 = vsel %vm709, %v2322, 0.0
    %v2324 = vadd.f32 %v2321, %v2323
    %2325 = vadd.xlane.f32.xlu0 %v2324
    %v2326 = vpop.xlane.xlu0 %2325
    %v2327 = vmul.f32 %v2326, %v809
    %v2328 = vmax.f32 %v810, 1e-08
    %v2329 = vrcp.pop %v2328
    %v2330 = vmul.f32 %v2327, %v2329
    %v2331 = vmul.f32 %v2330, %v2330
    %v2332 = vmul.f32 %v2331, %v2330
    %v2333 = vmax.f32 %v2332, 0.0
    %v2334 = vmin.f32 %v2333, 1.0
    %v2335 = vmul.f32 %v2273, %v2277
    %v2336 = vmul.f32 %v2274, %v2278
    %v2337 = vsub.f32 %v903, %v2335
    %v2338 = vsub.f32 %v904, %v2336
    %v2339 = vmul.f32 %v2334, %v810
    %v2340 = vadd.f32 %v2337, %v2339
    %v2341 = vadd.f32 %v2338, %v2339
    %v2342 = vadd.f32 %v2340, %v905
    %v2343 = vadd.f32 %v2341, %v906
    %v2344 = vmul.f32 %v2342, %v614
    %v2345 = vmul.f32 %v2343, %v615
    %v2347 = vsel %vm709, %v2345, 0
    %2349 = vmatprep.subr.mxu0 0.0
    %2350 = vmatpush1.msra.mxu0 %v533
    %2351 = vmatprep.subr.mxu0 0.0
    %2352 = vmatpush1.msra.mxu0 %v534
    %2353 = vmatprep.subr.mxu0 0.0
    %2354 = vmatpush1.msra.mxu0 %v535
    %2355 = vmatprep.subr.mxu0 0.0
    %2356 = vmatpush1.msra.mxu0 %v536
    %2357 = vmatprep.subr.mxu0 0.0
    %2358 = vmatpush1.msra.mxu0 %v537
    %2359 = vmatprep.subr.mxu0 0.0
    %2360 = vmatpush1.msra.mxu0 %v538
    %2361 = vmatprep.subr.mxu0 0.0
    %2362 = vmatpush1.msra.mxu0 %v539
    %2363 = vmatprep.subr.mxu0 0.0
    %2364 = vmatpush1.msra.mxu0 %v540
    %2365 = vmatprep.subr.mxu0 0.0
    %2366 = vmatpush1.msra.mxu0 %v541
    %2367 = vmatprep.subr.mxu0 0.0
    %2368 = vmatpush1.msra.mxu0 %v542
    %2369 = vmatprep.subr.mxu0 0.0
    %2370 = vmatpush1.msra.mxu0 %v543
    %2371 = vmatprep.subr.mxu0 0.0
    %2372 = vmatpush1.msra.mxu0 %v544
    %2373 = vmatprep.subr.mxu0 0.0
    %2374 = vmatpush1.msra.mxu0 %v545
    %2375 = vmatprep.subr.mxu0 0.0
    %2376 = vmatpush1.msra.mxu0 %v546
    %2377 = vmatprep.subr.mxu0 0.0
    %2378 = vmatpush1.msra.mxu0 %v547
    %2379 = vmatprep.subr.mxu0 0.0
    %2380 = vmatpush1.msra.mxu0 %v548
    %2381 = vmatprep.subr.mxu0 0.0
    %2382 = vmatpush1.msra.mxu0 %v549
    %2383 = vmatprep.subr.mxu0 0.0
    %2384 = vmatpush1.msra.mxu0 %v550
    %2385 = vmatprep.subr.mxu0 0.0
    %2386 = vmatpush1.msra.mxu0 %v551
    %2387 = vmatprep.subr.mxu0 0.0
    %2388 = vmatpush1.msra.mxu0 %v552
    %2389 = vmatprep.subr.mxu0 0.0
    %2390 = vmatpush1.msra.mxu0 %v553
    %2391 = vmatprep.subr.mxu0 0.0
    %2392 = vmatpush1.msra.mxu0 %v554
    %2393 = vmatprep.subr.mxu0 0.0
    %2394 = vmatpush1.msra.mxu0 %v555
    %2395 = vmatprep.subr.mxu0 0.0
    %2396 = vmatpush1.msra.mxu0 %v556
    %2397 = vmatprep.subr.mxu0 0.0
    %2398 = vmatpush1.msra.mxu0 %v557
    %2399 = vmatprep.subr.mxu0 0.0
    %2400 = vmatpush1.msra.mxu0 0.0
    %2401 = vmatprep.subr.mxu0 0.0
    %2402 = vmatpush1.msra.mxu0 0.0
    %2403 = vmatprep.subr.mxu0 0.0
    %2404 = vmatpush1.msra.mxu0 0.0
    %2405 = vmatprep.subr.mxu0 0.0
    %2406 = vmatpush1.msra.mxu0 0.0
    %2407 = vmatprep.subr.mxu0 0.0
    %2408 = vmatpush1.msra.mxu0 0.0
    %2409 = vmatprep.subr.mxu0 0.0
    %2410 = vmatpush1.msra.mxu0 0.0
    %2411 = vmatprep.subr.mxu0 0.0
    %2412 = vmatpush1.msra.mxu0 0.0
    %2413 = vmatprep.mubr.f32.mxu0 %v2347
    %2414 = vmatmul.mubr.f32.gmra.mrb[0].mxu0 %v2344
    %v2415 = vpop.f32.mrb[0].mxu0
    %v2416 = vadd.f32 0.0, %v2415
    %v2417 = vpop.f32.mrb[0].mxu0
    %2418 = vdwg.mxu0
    %2420 = vrot.lane.b32.xlu0 %v2416, 72
    %v2421 = vpop.permute.xlu0 %2420
    %v2423 = vsub.f32 %v911, %v2421
    %2425 = vrot.lane.b32.xlu0 %v2423, 56
    %v2426 = vpop.permute.xlu0 %2425
    %v2428 = vmul.f32 %v902, %v2426
    %2430 = vrot.lane.b32.xlu0 %v2428, 72
    %v2431 = vpop.permute.xlu0 %2430
    %v2433 = vmul.f32 %v2423, %v2431
    %2435 = vrot.lane.b32.xlu0 %v2433, 56
    %v2436 = vpop.permute.xlu0 %2435
    %v2438 = vsel %vm622, %v2436, 0.0
    %2439 = vadd.xlane.f32.xlu0 %v2438
    %v2440 = vpop.xlane.xlu0 %2439
    %2441 = vrot.lane.b32.xlu0 %v2428, 10
    %v2442 = vpop.permute.xlu0 %2441
    %2444 = vrot.lane.b32.xlu0 %v2428, 20
    %v2445 = vpop.permute.xlu0 %2444
    %2447 = vrot.lane.b32.xlu0 %v2428, 30
    %v2448 = vpop.permute.xlu0 %2447
    %2450 = vrot.lane.b32.xlu0 %v2428, 40
    %v2451 = vpop.permute.xlu0 %2450
    %2453 = vrot.lane.b32.xlu0 %v2428, 50
    %v2454 = vpop.permute.xlu0 %2453
    %2456 = vrot.lane.b32.xlu0 %v2428, 60
    %v2457 = vpop.permute.xlu0 %2456
    %2459 = vrot.lane.b32.xlu0 %v2428, 70
    %v2460 = vpop.permute.xlu0 %2459
    %2462 = vrot.lane.b32.xlu0 %v2428, 80
    %v2463 = vpop.permute.xlu0 %2462
    %2465 = vrot.lane.b32.xlu0 %v2428, 90
    %v2466 = vpop.permute.xlu0 %2465
    %v2468 = vsel %vm622, %v2428, %v2442
    %v2469 = vsel %vm1035, %v2468, %v2445
    %v2470 = vsel %vm1037, %v2469, %v2448
    %v2471 = vsel %vm1039, %v2470, %v2451
    %v2472 = vsel %vm1041, %v2471, %v2454
    %v2473 = vsel %vm1043, %v2472, %v2457
    %v2474 = vsel %vm1045, %v2473, %v2460
    %v2475 = vsel %vm1047, %v2474, %v2463
    %v2476 = vsel %vm1049, %v2475, %v2466
    %v2477 = vmul.f32 %v890, %v2476
    %v2479 = vsel %vm1052, %v2477, 0
    %2481 = vmatprep.subr.mxu0 0.0
    %2482 = vmatpush1.msra.mxu0 %v587
    %2483 = vmatprep.subr.mxu0 0.0
    %2484 = vmatpush1.msra.mxu0 %v588
    %2485 = vmatprep.subr.mxu0 0.0
    %2486 = vmatpush1.msra.mxu0 %v589
    %2487 = vmatprep.subr.mxu0 0.0
    %2488 = vmatpush1.msra.mxu0 %v590
    %2489 = vmatprep.subr.mxu0 0.0
    %2490 = vmatpush1.msra.mxu0 %v591
    %2491 = vmatprep.subr.mxu0 0.0
    %2492 = vmatpush1.msra.mxu0 %v592
    %2493 = vmatprep.subr.mxu0 0.0
    %2494 = vmatpush1.msra.mxu0 %v593
    %2495 = vmatprep.subr.mxu0 0.0
    %2496 = vmatpush1.msra.mxu0 %v594
    %2497 = vmatprep.subr.mxu0 0.0
    %2498 = vmatpush1.msra.mxu0 %v595
    %2499 = vmatprep.subr.mxu0 0.0
    %2500 = vmatpush1.msra.mxu0 %v596
    %2501 = vmatprep.subr.mxu0 0.0
    %2502 = vmatpush1.msra.mxu0 %v597
    %2503 = vmatprep.subr.mxu0 0.0
    %2504 = vmatpush1.msra.mxu0 %v598
    %2505 = vmatprep.subr.mxu0 0.0
    %2506 = vmatpush1.msra.mxu0 %v1058
    %2507 = vmatprep.subr.mxu0 0.0
    %2508 = vmatpush1.msra.mxu0 0.0
    %2509 = vmatprep.subr.mxu0 0.0
    %2510 = vmatpush1.msra.mxu0 0.0
    %2511 = vmatprep.subr.mxu0 0.0
    %2512 = vmatpush1.msra.mxu0 0.0
    %2513 = vmatprep.subr.mxu0 0.0
    %2514 = vmatpush1.msra.mxu0 0.0
    %2515 = vmatprep.subr.mxu0 0.0
    %2516 = vmatpush1.msra.mxu0 0.0
    %2517 = vmatprep.subr.mxu0 0.0
    %2518 = vmatpush1.msra.mxu0 0.0
    %2519 = vmatprep.subr.mxu0 0.0
    %2520 = vmatpush1.msra.mxu0 0.0
    %2521 = vmatprep.subr.mxu0 0.0
    %2522 = vmatpush1.msra.mxu0 0.0
    %2523 = vmatprep.subr.mxu0 0.0
    %2524 = vmatpush1.msra.mxu0 0.0
    %2525 = vmatprep.subr.mxu0 0.0
    %2526 = vmatpush1.msra.mxu0 0.0
    %2527 = vmatprep.subr.mxu0 0.0
    %2528 = vmatpush1.msra.mxu0 0.0
    %2529 = vmatprep.subr.mxu0 0.0
    %2530 = vmatpush1.msra.mxu0 0.0
    %2531 = vmatprep.subr.mxu0 0.0
    %2532 = vmatpush1.msra.mxu0 0.0
    %2533 = vmatprep.subr.mxu0 0.0
    %2534 = vmatpush1.msra.mxu0 0.0
    %2535 = vmatprep.subr.mxu0 0.0
    %2536 = vmatpush1.msra.mxu0 0.0
    %2537 = vmatprep.subr.mxu0 0.0
    %2538 = vmatpush1.msra.mxu0 0.0
    %2539 = vmatprep.subr.mxu0 0.0
    %2540 = vmatpush1.msra.mxu0 0.0
    %2541 = vmatprep.subr.mxu0 0.0
    %2542 = vmatpush1.msra.mxu0 0.0
    %2543 = vmatprep.subr.mxu0 0.0
    %2544 = vmatpush1.msra.mxu0 0.0
    %2545 = vmatprep.mubr.f32.mxu0 0.0
    %2546 = vmatmul.mubr.f32.gmra.mrb[0].mxu0 %v2479
    %v2547 = vpop.f32.mrb[0].mxu0
    %v2548 = vadd.f32 0.0, %v2547
    %v2549 = vpop.f32.mrb[0].mxu0
    %2550 = vdwg.mxu0
    %v2551 = vmul.f32 %v2428, %v2548
    %v2552 = vsel %vm622, %v2551, 0.0
    %2553 = vadd.xlane.f32.xlu0 %v2552
    %v2554 = vpop.xlane.xlu0 %2553
    %vm2555 = vcmp.gt.f32.partialorder %v2554, 1e-08
    %v2556 = vmax.f32 %v2554, 1e-08
    %v2557 = vrcp.pop %v2556
    %v2558 = vmul.f32 %v2440, %v2557
    %v2559 = vsel %vm2555, %v2558, 0.0
    %v2560 = vmul.f32 %v2559, %v2428
    %v2561 = vadd.f32 %v2560, 0.0
    %v2562 = vmul.f32 %v2559, %v2548
    %2564 = vrot.lane.b32.xlu0 %v2562, 72
    %v2565 = vpop.permute.xlu0 %2564
    %v2567 = vsub.f32 %v2423, %v2565
    %2569 = vrot.lane.b32.xlu0 %v2567, 56
    %v2570 = vpop.permute.xlu0 %2569
    %v2572 = vmul.f32 %v902, %v2570
    %2574 = vrot.lane.b32.xlu0 %v2572, 72
    %v2575 = vpop.permute.xlu0 %2574
    %v2577 = vmul.f32 %v2567, %v2575
    %2579 = vrot.lane.b32.xlu0 %v2577, 56
    %v2580 = vpop.permute.xlu0 %2579
    %v2582 = vsel %vm622, %v2580, 0.0
    %2583 = vadd.xlane.f32.xlu0 %v2582
    %v2584 = vpop.xlane.xlu0 %2583
    %v2585 = vmax.f32 %v2440, 1e-08
    %v2586 = vrcp.pop %v2585
    %v2587 = vmul.f32 %v2584, %v2586
    %v2588 = vmul.f32 %v2587, %v2428
    %v2589 = vadd.f32 %v2572, %v2588
    %2591 = vrot.lane.b32.xlu0 %v2589, 10
    %v2592 = vpop.permute.xlu0 %2591
    %2594 = vrot.lane.b32.xlu0 %v2589, 20
    %v2595 = vpop.permute.xlu0 %2594
    %2597 = vrot.lane.b32.xlu0 %v2589, 30
    %v2598 = vpop.permute.xlu0 %2597
    %2600 = vrot.lane.b32.xlu0 %v2589, 40
    %v2601 = vpop.permute.xlu0 %2600
    %2603 = vrot.lane.b32.xlu0 %v2589, 50
    %v2604 = vpop.permute.xlu0 %2603
    %2606 = vrot.lane.b32.xlu0 %v2589, 60
    %v2607 = vpop.permute.xlu0 %2606
    %2609 = vrot.lane.b32.xlu0 %v2589, 70
    %v2610 = vpop.permute.xlu0 %2609
    %2612 = vrot.lane.b32.xlu0 %v2589, 80
    %v2613 = vpop.permute.xlu0 %2612
    %2615 = vrot.lane.b32.xlu0 %v2589, 90
    %v2616 = vpop.permute.xlu0 %2615
    %v2618 = vsel %vm622, %v2589, %v2592
    %v2619 = vsel %vm1035, %v2618, %v2595
    %v2620 = vsel %vm1037, %v2619, %v2598
    %v2621 = vsel %vm1039, %v2620, %v2601
    %v2622 = vsel %vm1041, %v2621, %v2604
    %v2623 = vsel %vm1043, %v2622, %v2607
    %v2624 = vsel %vm1045, %v2623, %v2610
    %v2625 = vsel %vm1047, %v2624, %v2613
    %v2626 = vsel %vm1049, %v2625, %v2616
    %v2627 = vmul.f32 %v890, %v2626
    %v2629 = vsel %vm1052, %v2627, 0
    %2631 = vmatprep.subr.mxu0 0.0
    %2632 = vmatpush1.msra.mxu0 %v587
    %2633 = vmatprep.subr.mxu0 0.0
    %2634 = vmatpush1.msra.mxu0 %v588
    %2635 = vmatprep.subr.mxu0 0.0
    %2636 = vmatpush1.msra.mxu0 %v589
    %2637 = vmatprep.subr.mxu0 0.0
    %2638 = vmatpush1.msra.mxu0 %v590
    %2639 = vmatprep.subr.mxu0 0.0
    %2640 = vmatpush1.msra.mxu0 %v591
    %2641 = vmatprep.subr.mxu0 0.0
    %2642 = vmatpush1.msra.mxu0 %v592
    %2643 = vmatprep.subr.mxu0 0.0
    %2644 = vmatpush1.msra.mxu0 %v593
    %2645 = vmatprep.subr.mxu0 0.0
    %2646 = vmatpush1.msra.mxu0 %v594
    %2647 = vmatprep.subr.mxu0 0.0
    %2648 = vmatpush1.msra.mxu0 %v595
    %2649 = vmatprep.subr.mxu0 0.0
    %2650 = vmatpush1.msra.mxu0 %v596
    %2651 = vmatprep.subr.mxu0 0.0
    %2652 = vmatpush1.msra.mxu0 %v597
    %2653 = vmatprep.subr.mxu0 0.0
    %2654 = vmatpush1.msra.mxu0 %v598
    %2655 = vmatprep.subr.mxu0 0.0
    %2656 = vmatpush1.msra.mxu0 %v1058
    %2657 = vmatprep.subr.mxu0 0.0
    %2658 = vmatpush1.msra.mxu0 0.0
    %2659 = vmatprep.subr.mxu0 0.0
    %2660 = vmatpush1.msra.mxu0 0.0
    %2661 = vmatprep.subr.mxu0 0.0
    %2662 = vmatpush1.msra.mxu0 0.0
    %2663 = vmatprep.subr.mxu0 0.0
    %2664 = vmatpush1.msra.mxu0 0.0
    %2665 = vmatprep.subr.mxu0 0.0
    %2666 = vmatpush1.msra.mxu0 0.0
    %2667 = vmatprep.subr.mxu0 0.0
    %2668 = vmatpush1.msra.mxu0 0.0
    %2669 = vmatprep.subr.mxu0 0.0
    %2670 = vmatpush1.msra.mxu0 0.0
    %2671 = vmatprep.subr.mxu0 0.0
    %2672 = vmatpush1.msra.mxu0 0.0
    %2673 = vmatprep.subr.mxu0 0.0
    %2674 = vmatpush1.msra.mxu0 0.0
    %2675 = vmatprep.subr.mxu0 0.0
    %2676 = vmatpush1.msra.mxu0 0.0
    %2677 = vmatprep.subr.mxu0 0.0
    %2678 = vmatpush1.msra.mxu0 0.0
    %2679 = vmatprep.subr.mxu0 0.0
    %2680 = vmatpush1.msra.mxu0 0.0
    %2681 = vmatprep.subr.mxu0 0.0
    %2682 = vmatpush1.msra.mxu0 0.0
    %2683 = vmatprep.subr.mxu0 0.0
    %2684 = vmatpush1.msra.mxu0 0.0
    %2685 = vmatprep.subr.mxu0 0.0
    %2686 = vmatpush1.msra.mxu0 0.0
    %2687 = vmatprep.subr.mxu0 0.0
    %2688 = vmatpush1.msra.mxu0 0.0
    %2689 = vmatprep.subr.mxu0 0.0
    %2690 = vmatpush1.msra.mxu0 0.0
    %2691 = vmatprep.subr.mxu0 0.0
    %2692 = vmatpush1.msra.mxu0 0.0
    %2693 = vmatprep.subr.mxu0 0.0
    %2694 = vmatpush1.msra.mxu0 0.0
    %2695 = vmatprep.mubr.f32.mxu0 0.0
    %2696 = vmatmul.mubr.f32.gmra.mrb[0].mxu0 %v2629
    %v2697 = vpop.f32.mrb[0].mxu0
    %v2698 = vadd.f32 0.0, %v2697
    %v2699 = vpop.f32.mrb[0].mxu0
    %2700 = vdwg.mxu0
    %v2701 = vmul.f32 %v2589, %v2698
    %v2702 = vsel %vm622, %v2701, 0.0
    %2703 = vadd.xlane.f32.xlu0 %v2702
    %v2704 = vpop.xlane.xlu0 %2703
    %vm2705 = vcmp.gt.f32.partialorder %v2704, 1e-08
    %v2706 = vmax.f32 %v2704, 1e-08
    %v2707 = vrcp.pop %v2706
    %v2708 = vmul.f32 %v2584, %v2707
    %v2709 = vsel %vm2705, %v2708, 0.0
    %v2710 = vmul.f32 %v2709, %v2589
    %v2711 = vadd.f32 %v2561, %v2710
    %v2712 = vmul.f32 %v2709, %v2698
    %2714 = vrot.lane.b32.xlu0 %v2712, 72
    %v2715 = vpop.permute.xlu0 %2714
    %v2717 = vsub.f32 %v2567, %v2715
    %2719 = vrot.lane.b32.xlu0 %v2717, 56
    %v2720 = vpop.permute.xlu0 %2719
    %v2722 = vmul.f32 %v902, %v2720
    %2724 = vrot.lane.b32.xlu0 %v2722, 72
    %v2725 = vpop.permute.xlu0 %2724
    %v2727 = vmul.f32 %v2717, %v2725
    %2729 = vrot.lane.b32.xlu0 %v2727, 56
    %v2730 = vpop.permute.xlu0 %2729
    %v2732 = vsel %vm622, %v2730, 0.0
    %2733 = vadd.xlane.f32.xlu0 %v2732
    %v2734 = vpop.xlane.xlu0 %2733
    %v2735 = vmax.f32 %v2584, 1e-08
    %v2736 = vrcp.pop %v2735
    %v2737 = vmul.f32 %v2734, %v2736
    %v2738 = vmul.f32 %v2737, %v2589
    %v2739 = vadd.f32 %v2722, %v2738
    %2741 = vrot.lane.b32.xlu0 %v2739, 10
    %v2742 = vpop.permute.xlu0 %2741
    %2744 = vrot.lane.b32.xlu0 %v2739, 20
    %v2745 = vpop.permute.xlu0 %2744
    %2747 = vrot.lane.b32.xlu0 %v2739, 30
    %v2748 = vpop.permute.xlu0 %2747
    %2750 = vrot.lane.b32.xlu0 %v2739, 40
    %v2751 = vpop.permute.xlu0 %2750
    %2753 = vrot.lane.b32.xlu0 %v2739, 50
    %v2754 = vpop.permute.xlu0 %2753
    %2756 = vrot.lane.b32.xlu0 %v2739, 60
    %v2757 = vpop.permute.xlu0 %2756
    %2759 = vrot.lane.b32.xlu0 %v2739, 70
    %v2760 = vpop.permute.xlu0 %2759
    %2762 = vrot.lane.b32.xlu0 %v2739, 80
    %v2763 = vpop.permute.xlu0 %2762
    %2765 = vrot.lane.b32.xlu0 %v2739, 90
    %v2766 = vpop.permute.xlu0 %2765
    %v2768 = vsel %vm622, %v2739, %v2742
    %v2769 = vsel %vm1035, %v2768, %v2745
    %v2770 = vsel %vm1037, %v2769, %v2748
    %v2771 = vsel %vm1039, %v2770, %v2751
    %v2772 = vsel %vm1041, %v2771, %v2754
    %v2773 = vsel %vm1043, %v2772, %v2757
    %v2774 = vsel %vm1045, %v2773, %v2760
    %v2775 = vsel %vm1047, %v2774, %v2763
    %v2776 = vsel %vm1049, %v2775, %v2766
    %v2777 = vmul.f32 %v890, %v2776
    %v2779 = vsel %vm1052, %v2777, 0
    %2781 = vmatprep.subr.mxu0 0.0
    %2782 = vmatpush1.msra.mxu0 %v587
    %2783 = vmatprep.subr.mxu0 0.0
    %2784 = vmatpush1.msra.mxu0 %v588
    %2785 = vmatprep.subr.mxu0 0.0
    %2786 = vmatpush1.msra.mxu0 %v589
    %2787 = vmatprep.subr.mxu0 0.0
    %2788 = vmatpush1.msra.mxu0 %v590
    %2789 = vmatprep.subr.mxu0 0.0
    %2790 = vmatpush1.msra.mxu0 %v591
    %2791 = vmatprep.subr.mxu0 0.0
    %2792 = vmatpush1.msra.mxu0 %v592
    %2793 = vmatprep.subr.mxu0 0.0
    %2794 = vmatpush1.msra.mxu0 %v593
    %2795 = vmatprep.subr.mxu0 0.0
    %2796 = vmatpush1.msra.mxu0 %v594
    %2797 = vmatprep.subr.mxu0 0.0
    %2798 = vmatpush1.msra.mxu0 %v595
    %2799 = vmatprep.subr.mxu0 0.0
    %2800 = vmatpush1.msra.mxu0 %v596
    %2801 = vmatprep.subr.mxu0 0.0
    %2802 = vmatpush1.msra.mxu0 %v597
    %2803 = vmatprep.subr.mxu0 0.0
    %2804 = vmatpush1.msra.mxu0 %v598
    %2805 = vmatprep.subr.mxu0 0.0
    %2806 = vmatpush1.msra.mxu0 %v1058
    %2807 = vmatprep.subr.mxu0 0.0
    %2808 = vmatpush1.msra.mxu0 0.0
    %2809 = vmatprep.subr.mxu0 0.0
    %2810 = vmatpush1.msra.mxu0 0.0
    %2811 = vmatprep.subr.mxu0 0.0
    %2812 = vmatpush1.msra.mxu0 0.0
    %2813 = vmatprep.subr.mxu0 0.0
    %2814 = vmatpush1.msra.mxu0 0.0
    %2815 = vmatprep.subr.mxu0 0.0
    %2816 = vmatpush1.msra.mxu0 0.0
    %2817 = vmatprep.subr.mxu0 0.0
    %2818 = vmatpush1.msra.mxu0 0.0
    %2819 = vmatprep.subr.mxu0 0.0
    %2820 = vmatpush1.msra.mxu0 0.0
    %2821 = vmatprep.subr.mxu0 0.0
    %2822 = vmatpush1.msra.mxu0 0.0
    %2823 = vmatprep.subr.mxu0 0.0
    %2824 = vmatpush1.msra.mxu0 0.0
    %2825 = vmatprep.subr.mxu0 0.0
    %2826 = vmatpush1.msra.mxu0 0.0
    %2827 = vmatprep.subr.mxu0 0.0
    %2828 = vmatpush1.msra.mxu0 0.0
    %2829 = vmatprep.subr.mxu0 0.0
    %2830 = vmatpush1.msra.mxu0 0.0
    %2831 = vmatprep.subr.mxu0 0.0
    %2832 = vmatpush1.msra.mxu0 0.0
    %2833 = vmatprep.subr.mxu0 0.0
    %2834 = vmatpush1.msra.mxu0 0.0
    %2835 = vmatprep.subr.mxu0 0.0
    %2836 = vmatpush1.msra.mxu0 0.0
    %2837 = vmatprep.subr.mxu0 0.0
    %2838 = vmatpush1.msra.mxu0 0.0
    %2839 = vmatprep.subr.mxu0 0.0
    %2840 = vmatpush1.msra.mxu0 0.0
    %2841 = vmatprep.subr.mxu0 0.0
    %2842 = vmatpush1.msra.mxu0 0.0
    %2843 = vmatprep.subr.mxu0 0.0
    %2844 = vmatpush1.msra.mxu0 0.0
    %2845 = vmatprep.mubr.f32.mxu0 0.0
    %2846 = vmatmul.mubr.f32.gmra.mrb[0].mxu0 %v2779
    %v2847 = vpop.f32.mrb[0].mxu0
    %v2848 = vadd.f32 0.0, %v2847
    %v2849 = vpop.f32.mrb[0].mxu0
    %2850 = vdwg.mxu0
    %v2851 = vmul.f32 %v2739, %v2848
    %v2852 = vsel %vm622, %v2851, 0.0
    %2853 = vadd.xlane.f32.xlu0 %v2852
    %v2854 = vpop.xlane.xlu0 %2853
    %vm2855 = vcmp.gt.f32.partialorder %v2854, 1e-08
    %v2856 = vmax.f32 %v2854, 1e-08
    %v2857 = vrcp.pop %v2856
    %v2858 = vmul.f32 %v2734, %v2857
    %v2859 = vsel %vm2855, %v2858, 0.0
    %v2860 = vmul.f32 %v2859, %v2739
    %v2861 = vadd.f32 %v2711, %v2860
    %v2862 = vmul.f32 %v2859, %v2848
    %2864 = vrot.lane.b32.xlu0 %v2862, 72
    %v2865 = vpop.permute.xlu0 %2864
    %v2867 = vsub.f32 %v2717, %v2865
    %2869 = vrot.lane.b32.xlu0 %v2867, 56
    %v2870 = vpop.permute.xlu0 %2869
    %v2872 = vmul.f32 %v902, %v2870
    %2874 = vrot.lane.b32.xlu0 %v2872, 72
    %v2875 = vpop.permute.xlu0 %2874
    %v2877 = vmul.f32 %v2867, %v2875
    %2879 = vrot.lane.b32.xlu0 %v2877, 56
    %v2880 = vpop.permute.xlu0 %2879
    %v2882 = vsel %vm622, %v2880, 0.0
    %2883 = vadd.xlane.f32.xlu0 %v2882
    %v2884 = vpop.xlane.xlu0 %2883
    %v2885 = vmax.f32 %v2734, 1e-08
    %v2886 = vrcp.pop %v2885
    %v2887 = vmul.f32 %v2884, %v2886
    %v2888 = vmul.f32 %v2887, %v2739
    %v2889 = vadd.f32 %v2872, %v2888
    %2891 = vrot.lane.b32.xlu0 %v2889, 10
    %v2892 = vpop.permute.xlu0 %2891
    %2894 = vrot.lane.b32.xlu0 %v2889, 20
    %v2895 = vpop.permute.xlu0 %2894
    %2897 = vrot.lane.b32.xlu0 %v2889, 30
    %v2898 = vpop.permute.xlu0 %2897
    %2900 = vrot.lane.b32.xlu0 %v2889, 40
    %v2901 = vpop.permute.xlu0 %2900
    %2903 = vrot.lane.b32.xlu0 %v2889, 50
    %v2904 = vpop.permute.xlu0 %2903
    %2906 = vrot.lane.b32.xlu0 %v2889, 60
    %v2907 = vpop.permute.xlu0 %2906
    %2909 = vrot.lane.b32.xlu0 %v2889, 70
    %v2910 = vpop.permute.xlu0 %2909
    %2912 = vrot.lane.b32.xlu0 %v2889, 80
    %v2913 = vpop.permute.xlu0 %2912
    %2915 = vrot.lane.b32.xlu0 %v2889, 90
    %v2916 = vpop.permute.xlu0 %2915
    %v2918 = vsel %vm622, %v2889, %v2892
    %v2919 = vsel %vm1035, %v2918, %v2895
    %v2920 = vsel %vm1037, %v2919, %v2898
    %v2921 = vsel %vm1039, %v2920, %v2901
    %v2922 = vsel %vm1041, %v2921, %v2904
    %v2923 = vsel %vm1043, %v2922, %v2907
    %v2924 = vsel %vm1045, %v2923, %v2910
    %v2925 = vsel %vm1047, %v2924, %v2913
    %v2926 = vsel %vm1049, %v2925, %v2916
    %v2927 = vmul.f32 %v890, %v2926
    %v2929 = vsel %vm1052, %v2927, 0
    %2931 = vmatprep.subr.mxu0 0.0
    %2932 = vmatpush1.msra.mxu0 %v587
    %2933 = vmatprep.subr.mxu0 0.0
    %2934 = vmatpush1.msra.mxu0 %v588
    %2935 = vmatprep.subr.mxu0 0.0
    %2936 = vmatpush1.msra.mxu0 %v589
    %2937 = vmatprep.subr.mxu0 0.0
    %2938 = vmatpush1.msra.mxu0 %v590
    %2939 = vmatprep.subr.mxu0 0.0
    %2940 = vmatpush1.msra.mxu0 %v591
    %2941 = vmatprep.subr.mxu0 0.0
    %2942 = vmatpush1.msra.mxu0 %v592
    %2943 = vmatprep.subr.mxu0 0.0
    %2944 = vmatpush1.msra.mxu0 %v593
    %2945 = vmatprep.subr.mxu0 0.0
    %2946 = vmatpush1.msra.mxu0 %v594
    %2947 = vmatprep.subr.mxu0 0.0
    %2948 = vmatpush1.msra.mxu0 %v595
    %2949 = vmatprep.subr.mxu0 0.0
    %2950 = vmatpush1.msra.mxu0 %v596
    %2951 = vmatprep.subr.mxu0 0.0
    %2952 = vmatpush1.msra.mxu0 %v597
    %2953 = vmatprep.subr.mxu0 0.0
    %2954 = vmatpush1.msra.mxu0 %v598
    %2955 = vmatprep.subr.mxu0 0.0
    %2956 = vmatpush1.msra.mxu0 %v1058
    %2957 = vmatprep.subr.mxu0 0.0
    %2958 = vmatpush1.msra.mxu0 0.0
    %2959 = vmatprep.subr.mxu0 0.0
    %2960 = vmatpush1.msra.mxu0 0.0
    %2961 = vmatprep.subr.mxu0 0.0
    %2962 = vmatpush1.msra.mxu0 0.0
    %2963 = vmatprep.subr.mxu0 0.0
    %2964 = vmatpush1.msra.mxu0 0.0
    %2965 = vmatprep.subr.mxu0 0.0
    %2966 = vmatpush1.msra.mxu0 0.0
    %2967 = vmatprep.subr.mxu0 0.0
    %2968 = vmatpush1.msra.mxu0 0.0
    %2969 = vmatprep.subr.mxu0 0.0
    %2970 = vmatpush1.msra.mxu0 0.0
    %2971 = vmatprep.subr.mxu0 0.0
    %2972 = vmatpush1.msra.mxu0 0.0
    %2973 = vmatprep.subr.mxu0 0.0
    %2974 = vmatpush1.msra.mxu0 0.0
    %2975 = vmatprep.subr.mxu0 0.0
    %2976 = vmatpush1.msra.mxu0 0.0
    %2977 = vmatprep.subr.mxu0 0.0
    %2978 = vmatpush1.msra.mxu0 0.0
    %2979 = vmatprep.subr.mxu0 0.0
    %2980 = vmatpush1.msra.mxu0 0.0
    %2981 = vmatprep.subr.mxu0 0.0
    %2982 = vmatpush1.msra.mxu0 0.0
    %2983 = vmatprep.subr.mxu0 0.0
    %2984 = vmatpush1.msra.mxu0 0.0
    %2985 = vmatprep.subr.mxu0 0.0
    %2986 = vmatpush1.msra.mxu0 0.0
    %2987 = vmatprep.subr.mxu0 0.0
    %2988 = vmatpush1.msra.mxu0 0.0
    %2989 = vmatprep.subr.mxu0 0.0
    %2990 = vmatpush1.msra.mxu0 0.0
    %2991 = vmatprep.subr.mxu0 0.0
    %2992 = vmatpush1.msra.mxu0 0.0
    %2993 = vmatprep.subr.mxu0 0.0
    %2994 = vmatpush1.msra.mxu0 0.0
    %2995 = vmatprep.mubr.f32.mxu0 0.0
    %2996 = vmatmul.mubr.f32.gmra.mrb[0].mxu0 %v2929
    %v2997 = vpop.f32.mrb[0].mxu0
    %v2998 = vadd.f32 0.0, %v2997
    %v2999 = vpop.f32.mrb[0].mxu0
    %3000 = vdwg.mxu0
    %v3001 = vmul.f32 %v2889, %v2998
    %v3002 = vsel %vm622, %v3001, 0.0
    %3003 = vadd.xlane.f32.xlu0 %v3002
    %v3004 = vpop.xlane.xlu0 %3003
    %vm3005 = vcmp.gt.f32.partialorder %v3004, 1e-08
    %v3006 = vmax.f32 %v3004, 1e-08
    %v3007 = vrcp.pop %v3006
    %v3008 = vmul.f32 %v2884, %v3007
    %v3009 = vsel %vm3005, %v3008, 0.0
    %v3010 = vmul.f32 %v3009, %v2889
    %v3011 = vadd.f32 %v2861, %v3010
    %v3012 = vmul.f32 %v3009, %v2998
    %3014 = vrot.lane.b32.xlu0 %v3012, 72
    %v3015 = vpop.permute.xlu0 %3014
    %v3017 = vsub.f32 %v2867, %v3015
    %3019 = vrot.lane.b32.xlu0 %v3017, 56
    %v3020 = vpop.permute.xlu0 %3019
    %v3022 = vmul.f32 %v902, %v3020
    %3024 = vrot.lane.b32.xlu0 %v3022, 72
    %v3025 = vpop.permute.xlu0 %3024
    %v3027 = vmul.f32 %v3017, %v3025
    %3029 = vrot.lane.b32.xlu0 %v3027, 56
    %v3030 = vpop.permute.xlu0 %3029
    %v3032 = vsel %vm622, %v3030, 0.0
    %3033 = vadd.xlane.f32.xlu0 %v3032
    %v3034 = vpop.xlane.xlu0 %3033
    %v3035 = vmax.f32 %v2884, 1e-08
    %v3036 = vrcp.pop %v3035
    %v3037 = vmul.f32 %v3034, %v3036
    %v3038 = vmul.f32 %v3037, %v2889
    %v3039 = vadd.f32 %v3022, %v3038
    %3041 = vrot.lane.b32.xlu0 %v3039, 10
    %v3042 = vpop.permute.xlu0 %3041
    %3044 = vrot.lane.b32.xlu0 %v3039, 20
    %v3045 = vpop.permute.xlu0 %3044
    %3047 = vrot.lane.b32.xlu0 %v3039, 30
    %v3048 = vpop.permute.xlu0 %3047
    %3050 = vrot.lane.b32.xlu0 %v3039, 40
    %v3051 = vpop.permute.xlu0 %3050
    %3053 = vrot.lane.b32.xlu0 %v3039, 50
    %v3054 = vpop.permute.xlu0 %3053
    %3056 = vrot.lane.b32.xlu0 %v3039, 60
    %v3057 = vpop.permute.xlu0 %3056
    %3059 = vrot.lane.b32.xlu0 %v3039, 70
    %v3060 = vpop.permute.xlu0 %3059
    %3062 = vrot.lane.b32.xlu0 %v3039, 80
    %v3063 = vpop.permute.xlu0 %3062
    %3065 = vrot.lane.b32.xlu0 %v3039, 90
    %v3066 = vpop.permute.xlu0 %3065
    %v3068 = vsel %vm622, %v3039, %v3042
    %v3069 = vsel %vm1035, %v3068, %v3045
    %v3070 = vsel %vm1037, %v3069, %v3048
    %v3071 = vsel %vm1039, %v3070, %v3051
    %v3072 = vsel %vm1041, %v3071, %v3054
    %v3073 = vsel %vm1043, %v3072, %v3057
    %v3074 = vsel %vm1045, %v3073, %v3060
    %v3075 = vsel %vm1047, %v3074, %v3063
    %v3076 = vsel %vm1049, %v3075, %v3066
    %v3077 = vmul.f32 %v890, %v3076
    %v3079 = vsel %vm1052, %v3077, 0
    %3081 = vmatprep.subr.mxu0 0.0
    %3082 = vmatpush1.msra.mxu0 %v587
    %3083 = vmatprep.subr.mxu0 0.0
    %3084 = vmatpush1.msra.mxu0 %v588
    %3085 = vmatprep.subr.mxu0 0.0
    %3086 = vmatpush1.msra.mxu0 %v589
    %3087 = vmatprep.subr.mxu0 0.0
    %3088 = vmatpush1.msra.mxu0 %v590
    %3089 = vmatprep.subr.mxu0 0.0
    %3090 = vmatpush1.msra.mxu0 %v591
    %3091 = vmatprep.subr.mxu0 0.0
    %3092 = vmatpush1.msra.mxu0 %v592
    %3093 = vmatprep.subr.mxu0 0.0
    %3094 = vmatpush1.msra.mxu0 %v593
    %3095 = vmatprep.subr.mxu0 0.0
    %3096 = vmatpush1.msra.mxu0 %v594
    %3097 = vmatprep.subr.mxu0 0.0
    %3098 = vmatpush1.msra.mxu0 %v595
    %3099 = vmatprep.subr.mxu0 0.0
    %3100 = vmatpush1.msra.mxu0 %v596
    %3101 = vmatprep.subr.mxu0 0.0
    %3102 = vmatpush1.msra.mxu0 %v597
    %3103 = vmatprep.subr.mxu0 0.0
    %3104 = vmatpush1.msra.mxu0 %v598
    %3105 = vmatprep.subr.mxu0 0.0
    %3106 = vmatpush1.msra.mxu0 %v1058
    %3107 = vmatprep.subr.mxu0 0.0
    %3108 = vmatpush1.msra.mxu0 0.0
    %3109 = vmatprep.subr.mxu0 0.0
    %3110 = vmatpush1.msra.mxu0 0.0
    %3111 = vmatprep.subr.mxu0 0.0
    %3112 = vmatpush1.msra.mxu0 0.0
    %3113 = vmatprep.subr.mxu0 0.0
    %3114 = vmatpush1.msra.mxu0 0.0
    %3115 = vmatprep.subr.mxu0 0.0
    %3116 = vmatpush1.msra.mxu0 0.0
    %3117 = vmatprep.subr.mxu0 0.0
    %3118 = vmatpush1.msra.mxu0 0.0
    %3119 = vmatprep.subr.mxu0 0.0
    %3120 = vmatpush1.msra.mxu0 0.0
    %3121 = vmatprep.subr.mxu0 0.0
    %3122 = vmatpush1.msra.mxu0 0.0
    %3123 = vmatprep.subr.mxu0 0.0
    %3124 = vmatpush1.msra.mxu0 0.0
    %3125 = vmatprep.subr.mxu0 0.0
    %3126 = vmatpush1.msra.mxu0 0.0
    %3127 = vmatprep.subr.mxu0 0.0
    %3128 = vmatpush1.msra.mxu0 0.0
    %3129 = vmatprep.subr.mxu0 0.0
    %3130 = vmatpush1.msra.mxu0 0.0
    %3131 = vmatprep.subr.mxu0 0.0
    %3132 = vmatpush1.msra.mxu0 0.0
    %3133 = vmatprep.subr.mxu0 0.0
    %3134 = vmatpush1.msra.mxu0 0.0
    %3135 = vmatprep.subr.mxu0 0.0
    %3136 = vmatpush1.msra.mxu0 0.0
    %3137 = vmatprep.subr.mxu0 0.0
    %3138 = vmatpush1.msra.mxu0 0.0
    %3139 = vmatprep.subr.mxu0 0.0
    %3140 = vmatpush1.msra.mxu0 0.0
    %3141 = vmatprep.subr.mxu0 0.0
    %3142 = vmatpush1.msra.mxu0 0.0
    %3143 = vmatprep.subr.mxu0 0.0
    %3144 = vmatpush1.msra.mxu0 0.0
    %3145 = vmatprep.mubr.f32.mxu0 0.0
    %3146 = vmatmul.mubr.f32.gmra.mrb[0].mxu0 %v3079
    %v3147 = vpop.f32.mrb[0].mxu0
    %v3148 = vadd.f32 0.0, %v3147
    %v3149 = vpop.f32.mrb[0].mxu0
    %3150 = vdwg.mxu0
    %v3151 = vmul.f32 %v3039, %v3148
    %v3152 = vsel %vm622, %v3151, 0.0
    %3153 = vadd.xlane.f32.xlu0 %v3152
    %v3154 = vpop.xlane.xlu0 %3153
    %vm3155 = vcmp.gt.f32.partialorder %v3154, 1e-08
    %v3156 = vmax.f32 %v3154, 1e-08
    %v3157 = vrcp.pop %v3156
    %v3158 = vmul.f32 %v3034, %v3157
    %v3159 = vsel %vm3155, %v3158, 0.0
    %v3160 = vmul.f32 %v3159, %v3039
    %v3161 = vadd.f32 %v3011, %v3160
    %v3162 = vmul.f32 %v3159, %v3148
    %3164 = vrot.lane.b32.xlu0 %v3162, 72
    %v3165 = vpop.permute.xlu0 %3164
    %v3167 = vsub.f32 %v3017, %v3165
    %3169 = vrot.lane.b32.xlu0 %v3167, 56
    %v3170 = vpop.permute.xlu0 %3169
    %v3172 = vmul.f32 %v902, %v3170
    %3174 = vrot.lane.b32.xlu0 %v3172, 72
    %v3175 = vpop.permute.xlu0 %3174
    %v3177 = vmul.f32 %v3167, %v3175
    %3179 = vrot.lane.b32.xlu0 %v3177, 56
    %v3180 = vpop.permute.xlu0 %3179
    %v3182 = vsel %vm622, %v3180, 0.0
    %3183 = vadd.xlane.f32.xlu0 %v3182
    %v3184 = vpop.xlane.xlu0 %3183
    %v3185 = vmax.f32 %v3034, 1e-08
    %v3186 = vrcp.pop %v3185
    %v3187 = vmul.f32 %v3184, %v3186
    %v3188 = vmul.f32 %v3187, %v3039
    %v3189 = vadd.f32 %v3172, %v3188
    %3191 = vrot.lane.b32.xlu0 %v3189, 10
    %v3192 = vpop.permute.xlu0 %3191
    %3194 = vrot.lane.b32.xlu0 %v3189, 20
    %v3195 = vpop.permute.xlu0 %3194
    %3197 = vrot.lane.b32.xlu0 %v3189, 30
    %v3198 = vpop.permute.xlu0 %3197
    %3200 = vrot.lane.b32.xlu0 %v3189, 40
    %v3201 = vpop.permute.xlu0 %3200
    %3203 = vrot.lane.b32.xlu0 %v3189, 50
    %v3204 = vpop.permute.xlu0 %3203
    %3206 = vrot.lane.b32.xlu0 %v3189, 60
    %v3207 = vpop.permute.xlu0 %3206
    %3209 = vrot.lane.b32.xlu0 %v3189, 70
    %v3210 = vpop.permute.xlu0 %3209
    %3212 = vrot.lane.b32.xlu0 %v3189, 80
    %v3213 = vpop.permute.xlu0 %3212
    %3215 = vrot.lane.b32.xlu0 %v3189, 90
    %v3216 = vpop.permute.xlu0 %3215
    %v3218 = vsel %vm622, %v3189, %v3192
    %v3219 = vsel %vm1035, %v3218, %v3195
    %v3220 = vsel %vm1037, %v3219, %v3198
    %v3221 = vsel %vm1039, %v3220, %v3201
    %v3222 = vsel %vm1041, %v3221, %v3204
    %v3223 = vsel %vm1043, %v3222, %v3207
    %v3224 = vsel %vm1045, %v3223, %v3210
    %v3225 = vsel %vm1047, %v3224, %v3213
    %v3226 = vsel %vm1049, %v3225, %v3216
    %v3227 = vmul.f32 %v890, %v3226
    %v3229 = vsel %vm1052, %v3227, 0
    %3231 = vmatprep.subr.mxu0 0.0
    %3232 = vmatpush1.msra.mxu0 %v587
    %3233 = vmatprep.subr.mxu0 0.0
    %3234 = vmatpush1.msra.mxu0 %v588
    %3235 = vmatprep.subr.mxu0 0.0
    %3236 = vmatpush1.msra.mxu0 %v589
    %3237 = vmatprep.subr.mxu0 0.0
    %3238 = vmatpush1.msra.mxu0 %v590
    %3239 = vmatprep.subr.mxu0 0.0
    %3240 = vmatpush1.msra.mxu0 %v591
    %3241 = vmatprep.subr.mxu0 0.0
    %3242 = vmatpush1.msra.mxu0 %v592
    %3243 = vmatprep.subr.mxu0 0.0
    %3244 = vmatpush1.msra.mxu0 %v593
    %3245 = vmatprep.subr.mxu0 0.0
    %3246 = vmatpush1.msra.mxu0 %v594
    %3247 = vmatprep.subr.mxu0 0.0
    %3248 = vmatpush1.msra.mxu0 %v595
    %3249 = vmatprep.subr.mxu0 0.0
    %3250 = vmatpush1.msra.mxu0 %v596
    %3251 = vmatprep.subr.mxu0 0.0
    %3252 = vmatpush1.msra.mxu0 %v597
    %3253 = vmatprep.subr.mxu0 0.0
    %3254 = vmatpush1.msra.mxu0 %v598
    %3255 = vmatprep.subr.mxu0 0.0
    %3256 = vmatpush1.msra.mxu0 %v1058
    %3257 = vmatprep.subr.mxu0 0.0
    %3258 = vmatpush1.msra.mxu0 0.0
    %3259 = vmatprep.subr.mxu0 0.0
    %3260 = vmatpush1.msra.mxu0 0.0
    %3261 = vmatprep.subr.mxu0 0.0
    %3262 = vmatpush1.msra.mxu0 0.0
    %3263 = vmatprep.subr.mxu0 0.0
    %3264 = vmatpush1.msra.mxu0 0.0
    %3265 = vmatprep.subr.mxu0 0.0
    %3266 = vmatpush1.msra.mxu0 0.0
    %3267 = vmatprep.subr.mxu0 0.0
    %3268 = vmatpush1.msra.mxu0 0.0
    %3269 = vmatprep.subr.mxu0 0.0
    %3270 = vmatpush1.msra.mxu0 0.0
    %3271 = vmatprep.subr.mxu0 0.0
    %3272 = vmatpush1.msra.mxu0 0.0
    %3273 = vmatprep.subr.mxu0 0.0
    %3274 = vmatpush1.msra.mxu0 0.0
    %3275 = vmatprep.subr.mxu0 0.0
    %3276 = vmatpush1.msra.mxu0 0.0
    %3277 = vmatprep.subr.mxu0 0.0
    %3278 = vmatpush1.msra.mxu0 0.0
    %3279 = vmatprep.subr.mxu0 0.0
    %3280 = vmatpush1.msra.mxu0 0.0
    %3281 = vmatprep.subr.mxu0 0.0
    %3282 = vmatpush1.msra.mxu0 0.0
    %3283 = vmatprep.subr.mxu0 0.0
    %3284 = vmatpush1.msra.mxu0 0.0
    %3285 = vmatprep.subr.mxu0 0.0
    %3286 = vmatpush1.msra.mxu0 0.0
    %3287 = vmatprep.subr.mxu0 0.0
    %3288 = vmatpush1.msra.mxu0 0.0
    %3289 = vmatprep.subr.mxu0 0.0
    %3290 = vmatpush1.msra.mxu0 0.0
    %3291 = vmatprep.subr.mxu0 0.0
    %3292 = vmatpush1.msra.mxu0 0.0
    %3293 = vmatprep.subr.mxu0 0.0
    %3294 = vmatpush1.msra.mxu0 0.0
    %3295 = vmatprep.mubr.f32.mxu0 0.0
    %3296 = vmatmul.mubr.f32.gmra.mrb[0].mxu0 %v3229
    %v3297 = vpop.f32.mrb[0].mxu0
    %v3298 = vadd.f32 0.0, %v3297
    %v3299 = vpop.f32.mrb[0].mxu0
    %3300 = vdwg.mxu0
    %v3301 = vmul.f32 %v3189, %v3298
    %v3302 = vsel %vm622, %v3301, 0.0
    %3303 = vadd.xlane.f32.xlu0 %v3302
    %v3304 = vpop.xlane.xlu0 %3303
    %vm3305 = vcmp.gt.f32.partialorder %v3304, 1e-08
    %v3306 = vmax.f32 %v3304, 1e-08
    %v3307 = vrcp.pop %v3306
    %v3308 = vmul.f32 %v3184, %v3307
    %v3309 = vsel %vm3305, %v3308, 0.0
    %v3310 = vmul.f32 %v3309, %v3189
    %v3311 = vadd.f32 %v3161, %v3310
    %v3312 = vmul.f32 %v3309, %v3298
    %3314 = vrot.lane.b32.xlu0 %v3312, 72
    %v3315 = vpop.permute.xlu0 %3314
    %v3317 = vsub.f32 %v3167, %v3315
    %3319 = vrot.lane.b32.xlu0 %v3317, 56
    %v3320 = vpop.permute.xlu0 %3319
    %v3322 = vmul.f32 %v902, %v3320
    %3324 = vrot.lane.b32.xlu0 %v3322, 72
    %v3325 = vpop.permute.xlu0 %3324
    %v3327 = vmul.f32 %v3317, %v3325
    %3329 = vrot.lane.b32.xlu0 %v3327, 56
    %v3330 = vpop.permute.xlu0 %3329
    %v3332 = vsel %vm622, %v3330, 0.0
    %3333 = vadd.xlane.f32.xlu0 %v3332
    %v3334 = vpop.xlane.xlu0 %3333
    %v3335 = vmax.f32 %v3184, 1e-08
    %v3336 = vrcp.pop %v3335
    %v3337 = vmul.f32 %v3334, %v3336
    %v3338 = vmul.f32 %v3337, %v3189
    %v3339 = vadd.f32 %v3322, %v3338
    %3341 = vrot.lane.b32.xlu0 %v3339, 10
    %v3342 = vpop.permute.xlu0 %3341
    %3344 = vrot.lane.b32.xlu0 %v3339, 20
    %v3345 = vpop.permute.xlu0 %3344
    %3347 = vrot.lane.b32.xlu0 %v3339, 30
    %v3348 = vpop.permute.xlu0 %3347
    %3350 = vrot.lane.b32.xlu0 %v3339, 40
    %v3351 = vpop.permute.xlu0 %3350
    %3353 = vrot.lane.b32.xlu0 %v3339, 50
    %v3354 = vpop.permute.xlu0 %3353
    %3356 = vrot.lane.b32.xlu0 %v3339, 60
    %v3357 = vpop.permute.xlu0 %3356
    %3359 = vrot.lane.b32.xlu0 %v3339, 70
    %v3360 = vpop.permute.xlu0 %3359
    %3362 = vrot.lane.b32.xlu0 %v3339, 80
    %v3363 = vpop.permute.xlu0 %3362
    %3365 = vrot.lane.b32.xlu0 %v3339, 90
    %v3366 = vpop.permute.xlu0 %3365
    %v3368 = vsel %vm622, %v3339, %v3342
    %v3369 = vsel %vm1035, %v3368, %v3345
    %v3370 = vsel %vm1037, %v3369, %v3348
    %v3371 = vsel %vm1039, %v3370, %v3351
    %v3372 = vsel %vm1041, %v3371, %v3354
    %v3373 = vsel %vm1043, %v3372, %v3357
    %v3374 = vsel %vm1045, %v3373, %v3360
    %v3375 = vsel %vm1047, %v3374, %v3363
    %v3376 = vsel %vm1049, %v3375, %v3366
    %v3377 = vmul.f32 %v890, %v3376
    %v3379 = vsel %vm1052, %v3377, 0
    %3381 = vmatprep.subr.mxu0 0.0
    %3382 = vmatpush1.msra.mxu0 %v587
    %3383 = vmatprep.subr.mxu0 0.0
    %3384 = vmatpush1.msra.mxu0 %v588
    %3385 = vmatprep.subr.mxu0 0.0
    %3386 = vmatpush1.msra.mxu0 %v589
    %3387 = vmatprep.subr.mxu0 0.0
    %3388 = vmatpush1.msra.mxu0 %v590
    %3389 = vmatprep.subr.mxu0 0.0
    %3390 = vmatpush1.msra.mxu0 %v591
    %3391 = vmatprep.subr.mxu0 0.0
    %3392 = vmatpush1.msra.mxu0 %v592
    %3393 = vmatprep.subr.mxu0 0.0
    %3394 = vmatpush1.msra.mxu0 %v593
    %3395 = vmatprep.subr.mxu0 0.0
    %3396 = vmatpush1.msra.mxu0 %v594
    %3397 = vmatprep.subr.mxu0 0.0
    %3398 = vmatpush1.msra.mxu0 %v595
    %3399 = vmatprep.subr.mxu0 0.0
    %3400 = vmatpush1.msra.mxu0 %v596
    %3401 = vmatprep.subr.mxu0 0.0
    %3402 = vmatpush1.msra.mxu0 %v597
    %3403 = vmatprep.subr.mxu0 0.0
    %3404 = vmatpush1.msra.mxu0 %v598
    %3405 = vmatprep.subr.mxu0 0.0
    %3406 = vmatpush1.msra.mxu0 %v1058
    %3407 = vmatprep.subr.mxu0 0.0
    %3408 = vmatpush1.msra.mxu0 0.0
    %3409 = vmatprep.subr.mxu0 0.0
    %3410 = vmatpush1.msra.mxu0 0.0
    %3411 = vmatprep.subr.mxu0 0.0
    %3412 = vmatpush1.msra.mxu0 0.0
    %3413 = vmatprep.subr.mxu0 0.0
    %3414 = vmatpush1.msra.mxu0 0.0
    %3415 = vmatprep.subr.mxu0 0.0
    %3416 = vmatpush1.msra.mxu0 0.0
    %3417 = vmatprep.subr.mxu0 0.0
    %3418 = vmatpush1.msra.mxu0 0.0
    %3419 = vmatprep.subr.mxu0 0.0
    %3420 = vmatpush1.msra.mxu0 0.0
    %3421 = vmatprep.subr.mxu0 0.0
    %3422 = vmatpush1.msra.mxu0 0.0
    %3423 = vmatprep.subr.mxu0 0.0
    %3424 = vmatpush1.msra.mxu0 0.0
    %3425 = vmatprep.subr.mxu0 0.0
    %3426 = vmatpush1.msra.mxu0 0.0
    %3427 = vmatprep.subr.mxu0 0.0
    %3428 = vmatpush1.msra.mxu0 0.0
    %3429 = vmatprep.subr.mxu0 0.0
    %3430 = vmatpush1.msra.mxu0 0.0
    %3431 = vmatprep.subr.mxu0 0.0
    %3432 = vmatpush1.msra.mxu0 0.0
    %3433 = vmatprep.subr.mxu0 0.0
    %3434 = vmatpush1.msra.mxu0 0.0
    %3435 = vmatprep.subr.mxu0 0.0
    %3436 = vmatpush1.msra.mxu0 0.0
    %3437 = vmatprep.subr.mxu0 0.0
    %3438 = vmatpush1.msra.mxu0 0.0
    %3439 = vmatprep.subr.mxu0 0.0
    %3440 = vmatpush1.msra.mxu0 0.0
    %3441 = vmatprep.subr.mxu0 0.0
    %3442 = vmatpush1.msra.mxu0 0.0
    %3443 = vmatprep.subr.mxu0 0.0
    %3444 = vmatpush1.msra.mxu0 0.0
    %3445 = vmatprep.mubr.f32.mxu0 0.0
    %3446 = vmatmul.mubr.f32.gmra.mrb[0].mxu0 %v3379
    %v3447 = vpop.f32.mrb[0].mxu0
    %v3448 = vadd.f32 0.0, %v3447
    %v3449 = vpop.f32.mrb[0].mxu0
    %3450 = vdwg.mxu0
    %v3451 = vmul.f32 %v3339, %v3448
    %v3452 = vsel %vm622, %v3451, 0.0
    %3453 = vadd.xlane.f32.xlu0 %v3452
    %v3454 = vpop.xlane.xlu0 %3453
    %vm3455 = vcmp.gt.f32.partialorder %v3454, 1e-08
    %v3456 = vmax.f32 %v3454, 1e-08
    %v3457 = vrcp.pop %v3456
    %v3458 = vmul.f32 %v3334, %v3457
    %v3459 = vsel %vm3455, %v3458, 0.0
    %v3460 = vmul.f32 %v3459, %v3339
    %v3461 = vadd.f32 %v3311, %v3460
    %v3462 = vmul.f32 %v3459, %v3448
    %3464 = vrot.lane.b32.xlu0 %v3462, 72
    %v3465 = vpop.permute.xlu0 %3464
    %v3467 = vsub.f32 %v3317, %v3465
    %3469 = vrot.lane.b32.xlu0 %v3467, 56
    %v3470 = vpop.permute.xlu0 %3469
    %v3472 = vmul.f32 %v902, %v3470
    %3474 = vrot.lane.b32.xlu0 %v3472, 72
    %v3475 = vpop.permute.xlu0 %3474
    %v3477 = vmul.f32 %v3467, %v3475
    %3479 = vrot.lane.b32.xlu0 %v3477, 56
    %v3480 = vpop.permute.xlu0 %3479
    %v3482 = vsel %vm622, %v3480, 0.0
    %3483 = vadd.xlane.f32.xlu0 %v3482
    %v3484 = vpop.xlane.xlu0 %3483
    %v3485 = vmax.f32 %v3334, 1e-08
    %v3486 = vrcp.pop %v3485
    %v3487 = vmul.f32 %v3484, %v3486
    %v3488 = vmul.f32 %v3487, %v3339
    %v3489 = vadd.f32 %v3472, %v3488
    %3491 = vrot.lane.b32.xlu0 %v3489, 10
    %v3492 = vpop.permute.xlu0 %3491
    %3494 = vrot.lane.b32.xlu0 %v3489, 20
    %v3495 = vpop.permute.xlu0 %3494
    %3497 = vrot.lane.b32.xlu0 %v3489, 30
    %v3498 = vpop.permute.xlu0 %3497
    %3500 = vrot.lane.b32.xlu0 %v3489, 40
    %v3501 = vpop.permute.xlu0 %3500
    %3503 = vrot.lane.b32.xlu0 %v3489, 50
    %v3504 = vpop.permute.xlu0 %3503
    %3506 = vrot.lane.b32.xlu0 %v3489, 60
    %v3507 = vpop.permute.xlu0 %3506
    %3509 = vrot.lane.b32.xlu0 %v3489, 70
    %v3510 = vpop.permute.xlu0 %3509
    %3512 = vrot.lane.b32.xlu0 %v3489, 80
    %v3513 = vpop.permute.xlu0 %3512
    %3515 = vrot.lane.b32.xlu0 %v3489, 90
    %v3516 = vpop.permute.xlu0 %3515
    %v3518 = vsel %vm622, %v3489, %v3492
    %v3519 = vsel %vm1035, %v3518, %v3495
    %v3520 = vsel %vm1037, %v3519, %v3498
    %v3521 = vsel %vm1039, %v3520, %v3501
    %v3522 = vsel %vm1041, %v3521, %v3504
    %v3523 = vsel %vm1043, %v3522, %v3507
    %v3524 = vsel %vm1045, %v3523, %v3510
    %v3525 = vsel %vm1047, %v3524, %v3513
    %v3526 = vsel %vm1049, %v3525, %v3516
    %v3527 = vmul.f32 %v890, %v3526
    %v3529 = vsel %vm1052, %v3527, 0
    %3531 = vmatprep.subr.mxu0 0.0
    %3532 = vmatpush1.msra.mxu0 %v587
    %3533 = vmatprep.subr.mxu0 0.0
    %3534 = vmatpush1.msra.mxu0 %v588
    %3535 = vmatprep.subr.mxu0 0.0
    %3536 = vmatpush1.msra.mxu0 %v589
    %3537 = vmatprep.subr.mxu0 0.0
    %3538 = vmatpush1.msra.mxu0 %v590
    %3539 = vmatprep.subr.mxu0 0.0
    %3540 = vmatpush1.msra.mxu0 %v591
    %3541 = vmatprep.subr.mxu0 0.0
    %3542 = vmatpush1.msra.mxu0 %v592
    %3543 = vmatprep.subr.mxu0 0.0
    %3544 = vmatpush1.msra.mxu0 %v593
    %3545 = vmatprep.subr.mxu0 0.0
    %3546 = vmatpush1.msra.mxu0 %v594
    %3547 = vmatprep.subr.mxu0 0.0
    %3548 = vmatpush1.msra.mxu0 %v595
    %3549 = vmatprep.subr.mxu0 0.0
    %3550 = vmatpush1.msra.mxu0 %v596
    %3551 = vmatprep.subr.mxu0 0.0
    %3552 = vmatpush1.msra.mxu0 %v597
    %3553 = vmatprep.subr.mxu0 0.0
    %3554 = vmatpush1.msra.mxu0 %v598
    %3555 = vmatprep.subr.mxu0 0.0
    %3556 = vmatpush1.msra.mxu0 %v1058
    %3557 = vmatprep.subr.mxu0 0.0
    %3558 = vmatpush1.msra.mxu0 0.0
    %3559 = vmatprep.subr.mxu0 0.0
    %3560 = vmatpush1.msra.mxu0 0.0
    %3561 = vmatprep.subr.mxu0 0.0
    %3562 = vmatpush1.msra.mxu0 0.0
    %3563 = vmatprep.subr.mxu0 0.0
    %3564 = vmatpush1.msra.mxu0 0.0
    %3565 = vmatprep.subr.mxu0 0.0
    %3566 = vmatpush1.msra.mxu0 0.0
    %3567 = vmatprep.subr.mxu0 0.0
    %3568 = vmatpush1.msra.mxu0 0.0
    %3569 = vmatprep.subr.mxu0 0.0
    %3570 = vmatpush1.msra.mxu0 0.0
    %3571 = vmatprep.subr.mxu0 0.0
    %3572 = vmatpush1.msra.mxu0 0.0
    %3573 = vmatprep.subr.mxu0 0.0
    %3574 = vmatpush1.msra.mxu0 0.0
    %3575 = vmatprep.subr.mxu0 0.0
    %3576 = vmatpush1.msra.mxu0 0.0
    %3577 = vmatprep.subr.mxu0 0.0
    %3578 = vmatpush1.msra.mxu0 0.0
    %3579 = vmatprep.subr.mxu0 0.0
    %3580 = vmatpush1.msra.mxu0 0.0
    %3581 = vmatprep.subr.mxu0 0.0
    %3582 = vmatpush1.msra.mxu0 0.0
    %3583 = vmatprep.subr.mxu0 0.0
    %3584 = vmatpush1.msra.mxu0 0.0
    %3585 = vmatprep.subr.mxu0 0.0
    %3586 = vmatpush1.msra.mxu0 0.0
    %3587 = vmatprep.subr.mxu0 0.0
    %3588 = vmatpush1.msra.mxu0 0.0
    %3589 = vmatprep.subr.mxu0 0.0
    %3590 = vmatpush1.msra.mxu0 0.0
    %3591 = vmatprep.subr.mxu0 0.0
    %3592 = vmatpush1.msra.mxu0 0.0
    %3593 = vmatprep.subr.mxu0 0.0
    %3594 = vmatpush1.msra.mxu0 0.0
    %3595 = vmatprep.mubr.f32.mxu0 0.0
    %3596 = vmatmul.mubr.f32.gmra.mrb[0].mxu0 %v3529
    %v3597 = vpop.f32.mrb[0].mxu0
    %v3598 = vadd.f32 0.0, %v3597
    %v3599 = vpop.f32.mrb[0].mxu0
    %3600 = vdwg.mxu0
    %v3601 = vmul.f32 %v3489, %v3598
    %v3602 = vsel %vm622, %v3601, 0.0
    %3603 = vadd.xlane.f32.xlu0 %v3602
    %v3604 = vpop.xlane.xlu0 %3603
    %vm3605 = vcmp.gt.f32.partialorder %v3604, 1e-08
    %v3606 = vmax.f32 %v3604, 1e-08
    %v3607 = vrcp.pop %v3606
    %v3608 = vmul.f32 %v3484, %v3607
    %v3609 = vsel %vm3605, %v3608, 0.0
    %v3610 = vmul.f32 %v3609, %v3489
    %v3611 = vadd.f32 %v3461, %v3610
    %v3613 = vsel %vm622, %v3611, 0
    %3615 = vmatprep.subr.mxu0 %v559
    %3616 = vmatpush1.msra.mxu0 %v558
    %3617 = vmatprep.subr.mxu0 %v2198
    %3618 = vmatpush1.msra.mxu0 %v2195
    %3619 = vmatprep.subr.mxu0 0.0
    %3620 = vmatpush1.msra.mxu0 0.0
    %3621 = vmatprep.subr.mxu0 0.0
    %3622 = vmatpush1.msra.mxu0 0.0
    %3623 = vmatprep.subr.mxu0 0.0
    %3624 = vmatpush1.msra.mxu0 0.0
    %3625 = vmatprep.subr.mxu0 0.0
    %3626 = vmatpush1.msra.mxu0 0.0
    %3627 = vmatprep.subr.mxu0 0.0
    %3628 = vmatpush1.msra.mxu0 0.0
    %3629 = vmatprep.subr.mxu0 0.0
    %3630 = vmatpush1.msra.mxu0 0.0
    %3631 = vmatprep.subr.mxu0 0.0
    %3632 = vmatpush1.msra.mxu0 0.0
    %3633 = vmatprep.subr.mxu0 0.0
    %3634 = vmatpush1.msra.mxu0 0.0
    %3635 = vmatprep.subr.mxu0 0.0
    %3636 = vmatpush1.msra.mxu0 0.0
    %3637 = vmatprep.subr.mxu0 0.0
    %3638 = vmatpush1.msra.mxu0 0.0
    %3639 = vmatprep.subr.mxu0 0.0
    %3640 = vmatpush1.msra.mxu0 0.0
    %3641 = vmatprep.subr.mxu0 0.0
    %3642 = vmatpush1.msra.mxu0 0.0
    %3643 = vmatprep.subr.mxu0 0.0
    %3644 = vmatpush1.msra.mxu0 0.0
    %3645 = vmatprep.subr.mxu0 0.0
    %3646 = vmatpush1.msra.mxu0 0.0
    %3647 = vmatprep.subr.mxu0 0.0
    %3648 = vmatpush1.msra.mxu0 0.0
    %3649 = vmatprep.subr.mxu0 0.0
    %3650 = vmatpush1.msra.mxu0 0.0
    %3651 = vmatprep.subr.mxu0 0.0
    %3652 = vmatpush1.msra.mxu0 0.0
    %3653 = vmatprep.subr.mxu0 0.0
    %3654 = vmatpush1.msra.mxu0 0.0
    %3655 = vmatprep.subr.mxu0 0.0
    %3656 = vmatpush1.msra.mxu0 0.0
    %3657 = vmatprep.subr.mxu0 0.0
    %3658 = vmatpush1.msra.mxu0 0.0
    %3659 = vmatprep.subr.mxu0 0.0
    %3660 = vmatpush1.msra.mxu0 0.0
    %3661 = vmatprep.subr.mxu0 0.0
    %3662 = vmatpush1.msra.mxu0 0.0
    %3663 = vmatprep.subr.mxu0 0.0
    %3664 = vmatpush1.msra.mxu0 0.0
    %3665 = vmatprep.subr.mxu0 0.0
    %3666 = vmatpush1.msra.mxu0 0.0
    %3667 = vmatprep.subr.mxu0 0.0
    %3668 = vmatpush1.msra.mxu0 0.0
    %3669 = vmatprep.subr.mxu0 0.0
    %3670 = vmatpush1.msra.mxu0 0.0
    %3671 = vmatprep.subr.mxu0 0.0
    %3672 = vmatpush1.msra.mxu0 0.0
    %3673 = vmatprep.subr.mxu0 0.0
    %3674 = vmatpush1.msra.mxu0 0.0
    %3675 = vmatprep.subr.mxu0 0.0
    %3676 = vmatpush1.msra.mxu0 0.0
    %3677 = vmatprep.subr.mxu0 0.0
    %3678 = vmatpush1.msra.mxu0 0.0
    %3679 = vmatprep.mubr.f32.mxu0 0.0
    %3680 = vmatmul.mubr.f32.gmra.mrb[0].mxu0 %v3613
    %v3681 = vpop.f32.mrb[0].mxu0
    %v3682 = vadd.f32 0.0, %v3681
    %v3683 = vpop.f32.mrb[0].mxu0
    %v3684 = vadd.f32 0.0, %v3683
    %3685 = vdwg.mxu0
    %v3686 = vsub.f32 %v2271, %v3682
    %v3687 = vsub.f32 %v2272, %v3684
    %v3688 = vmul.f32 %v620, %v3682
    %v3689 = vmul.f32 %v621, %v3684
    %v3690 = vadd.f32 %v2344, %v3688
    %v3691 = vadd.f32 %v2345, %v3689
    %vm3692 = vcmp.lt.f32.partialorder %v3686, 0.0
    %vm3693 = vcmp.lt.f32.partialorder %v3687, 0.0
    %v3694 = vsel %vm3692, %v3686, -1.0
    %v3695 = vsel %vm3693, %v3687, -1.0
    %v3696 = vrcp.pop %v3694
    %v3697 = vrcp.pop %v3695
    %vm3698 = vcmp.lt.f32.partialorder %v3690, 0.0
    %vm3699 = vcmp.lt.f32.partialorder %v3691, 0.0
    %v3700 = vsel %vm3698, %v3690, -1.0
    %v3701 = vsel %vm3699, %v3691, -1.0
    %v3702 = vrcp.pop %v3700
    %v3703 = vrcp.pop %v3701
    %v3704 = vmul.f32 %v2291, %v3696
    %v3705 = vmul.f32 %v2292, %v3697
    %v3706 = vsel %vm3692, %v3704, 1e+30
    %v3707 = vsel %vm3693, %v3705, 1e+30
    %v3708 = vmul.f32 %v2297, %v3702
    %v3709 = vmul.f32 %v2298, %v3703
    %v3710 = vsel %vm3698, %v3708, 1e+30
    %v3711 = vsel %vm3699, %v3709, 1e+30
    %v3712 = vsel %vm709, %v3707, inf
    %v3713 = vmin.f32 %v3706, %v3712
    %3714 = vmin.xlane.f32.xlu0 %v3713
    %v3715 = vpop.xlane.xlu0 %3714
    %v3716 = vsel %vm709, %v3711, inf
    %v3717 = vmin.f32 %v3710, %v3716
    %3718 = vmin.xlane.f32.xlu0 %v3717
    %v3719 = vpop.xlane.xlu0 %3718
    %v3720 = vmin.f32 %v3715, %v3719
    %v3721 = vmul.f32 %v3720, 0.99
    %v3722 = vmin.f32 %v3721, 1.0
    %v3723 = vmul.f32 %v3722, %v3611
    %v3724 = vadd.f32 %v607, %v3723
    %v3725 = vmul.f32 %v3722, %v3686
    %v3726 = vmul.f32 %v3722, %v3687
    %v3727 = vadd.f32 %v608, %v3725
    %v3728 = vadd.f32 %v609, %v3726
    %v3729 = vmul.f32 %v3722, %v3690
    %v3730 = vmul.f32 %v3722, %v3691
    %v3731 = vadd.f32 %v610, %v3729
    %v3732 = vadd.f32 %v611, %v3730
  $region58: #{optnet_forward.1} parent=0 // loop_footer
    %s606 = sadd.s32 1, %s602
  $region59: #{optnet_forward.1} parent=0 // loop_footer_branch
    %601 = sbr.rel target = $region55
  $region60: #{optnet_forward.1} parent=0 // loop_exit
    _
  %vm3733 = vcmask 80896
  %v3734 = vsel %vm3733, %v607, -inf
  %3735 = vmax.xlane.f32.xlu0 %v3734
  %v3736 = vpop.xlane.xlu0 %3735
  %v3737 = vsub.f32 %v607, %v3736
  %v3738 = vmul.f32 %v3737, 1.442695
  %v3739 = vpow.pop %v3738
  %v3740 = vsel %vm3733, %v3739, 0.0
  %3741 = vadd.xlane.f32.xlu0 %v3740
  %v3742 = vpop.xlane.xlu0 %3741
  %v3743 = vlog2.pop %v3742
  %v3744 = vmul.f32 %v3743, 0.6931472
  %v3745 = vadd.f32 %v3736, %v3744
  %v3746 = vsub.f32 %v607, %v3745
  %3747 = vst.msk [vmem:[%s13] sm:$0xff] %vm3733, %v3746
  // Predicated region
  $region61: #{optnet_forward.1} parent=0 // pred_check
    _
  $region62: #{optnet_forward.1} parent=0 // pred_check_branch
    %3749 = sbr.rel (0) target = $region64
  $region63: #{optnet_forward.1} parent=0 // pred_region
    _
  $region64: #{optnet_forward.1} parent=0 // pred_fallthru
    _
  // Predicated region
  $region65: #{optnet_forward.1} parent=0 // pred_check
    _
  $region66: #{optnet_forward.1} parent=0 // pred_check_branch
    %3751 = sbr.rel (0) target = $region68
  $region67: #{optnet_forward.1} parent=0 // pred_region
    _
  $region68: #{optnet_forward.1} parent=0 // pred_fallthru
    _

</llo_original>
